<compile_context>
chip_gen: v6e
topology: v6e:2x2x1
jax: 0.10.0
libtpu: 0.0.40
codegen_flags: <defaults>
</compile_context>

<pallas_src>
import functools
import math

import jax
import jax.numpy as jnp
from jax.experimental import pallas as pl
from jax.experimental.pallas import tpu as pltpu

_MASK_VALUE = -1e30  # large finite negative; avoids exp(-inf - (-inf)) = NaN hazards


# --------------------------------------------------------------------------- kernels

def _attention_tail(q2, k2, v2, bias_ref, mask_ref, wfc_ref, bfc_ref, o_ref, *, n_heads):
    """Shared attention tail.

    q2/k2/v2 : (rows, hd) f32 projections (1/sqrt(d_k) already folded into q).
    bias_ref : (tb, T, H*T) f32 additive causal+pad bias, key-slot index z = h*T + k.
    mask_ref : (H*T, hd) f32 block mask, mask[z, c] = 1 iff z // T == c // d_k.
    """
    tb, T, ht = bias_ref.shape
    rows, hd = q2.shape
    mask_f = mask_ref[...]

    q3 = q2.reshape(tb, T, hd).astype(jnp.bfloat16)

    def blockify(x2):
        # (rows, hd) f32 -> (tb, H*T, hd) bf16, head-block masked.  Concat along the
        # sublane axis (T = 8 aligned) + one mask multiply; no lane slicing, no transpose.
        x3 = x2.reshape(tb, T, hd)
        rep = jnp.concatenate([x3] * n_heads, axis=1)          # (tb, H*T, hd)
        return (rep * mask_f).astype(jnp.bfloat16)

    k_blk = blockify(k2)
    v_blk = blockify(v2)

    # Per-head scores for all heads in one batched matmul:
    #   s[b, q, h*T + k] = <q_h[b, q, :], k_h[b, k, :]>   (block mask zeroes cross-head terms)
    s = jnp.einsum("bqc,bzc->bqz", q3, k_blk,
                   preferred_element_type=jnp.float32) + bias_ref[...]   # (tb, T, H*T) f32
    m = jnp.max(s, axis=-1, keepdims=True)      # shared per-row shift (valid for every head)
    p = jnp.exp(s - m)                          # f32; masked entries underflow to exactly 0

    # Unnormalized PV.  The block mask on v keeps heads separated in the lane dim, so the
    # result is already the concatenated-head layout (rows, hd) -- no head concat needed.
    o_un = jnp.einsum("bqz,bzc->bqc", p.astype(jnp.bfloat16), v_blk,
                      preferred_element_type=jnp.float32).reshape(rows, hd)

    # Per-head softmax denominator, broadcast onto that head's d_k lanes by the same mask.
    denom = jnp.dot(p.reshape(rows, ht), mask_f, preferred_element_type=jnp.float32)

    a = o_un * pl.reciprocal(denom, approx=True)               # EUP slot; ~free

    out = jnp.dot(a.astype(jnp.bfloat16), wfc_ref[...],
                  preferred_element_type=jnp.float32) + bfc_ref[...]
    o_ref[...] = out.astype(o_ref.dtype)


def _csa_fused_kernel(x_ref, bias_ref, mask_ref, wqkv_ref, bqkv_ref, wfc_ref, bfc_ref,
                      o_ref, *, n_heads, d_k):
    """Self-attention fast path (q = k = v): one fused QKV matmul."""
    hd = n_heads * d_k
    x = x_ref[...].astype(jnp.bfloat16)
    qkv = jnp.dot(x, wqkv_ref[...], preferred_element_type=jnp.float32) + bqkv_ref[...]
    _attention_tail(qkv[:, :hd], qkv[:, hd:2 * hd], qkv[:, 2 * hd:],
                    bias_ref, mask_ref, wfc_ref, bfc_ref, o_ref, n_heads=n_heads)


def _csa_general_kernel(xq_ref, xk_ref, xv_ref, bias_ref, mask_ref, wqkv_ref, bqkv_ref,
                        wfc_ref, bfc_ref, o_ref, *, n_heads, d_k):
    """General path (distinct q/k/v): leading-axis-indexed stacked weights (free views)."""
    def proj(ref, i):
        return (jnp.dot(ref[...].astype(jnp.bfloat16), wqkv_ref[i],
                        preferred_element_type=jnp.float32) + bqkv_ref[i])

    _attention_tail(proj(xq_ref, 0), proj(xk_ref, 1), proj(xv_ref, 2),
                    bias_ref, mask_ref, wfc_ref, bfc_ref, o_ref, n_heads=n_heads)


# --------------------------------------------------------------------------- wrapper

def _tensorcores_per_chip():
    # v7x has 2 TensorCores per chip -> keep >=2 'parallel' grid steps; v5e/v6e are
    # single-TC, where one big grid step (256 MXU rows) wins.
    try:
        kind = jax.devices()[0].device_kind.lower()
    except Exception:
        return 1
    return 2 if "v7" in kind else 1


def _pick_block_batch(n, t, num_cores, target_rows=256):
    """Largest divisor of n with block_batch*t <= target_rows and >= num_cores grid steps."""
    best = None
    for d in range(1, n + 1):
        if n % d == 0 and d * t <= target_rows and n // d >= num_cores:
            best = d
    if best is None:
        for d in range(1, n + 1):
            if n % d == 0 and d * t <= target_rows:
                best = d
    return best if best is not None else 1


@functools.partial(jax.jit, static_argnames=("n_heads", "d_k", "block_batch", "fused"))
def causal_self_attention(q, k, v, pad_mask, params, *, n_heads, d_k,
                          block_batch=None, fused=False):
    """q, k, v: (N, T, d_model) f32; pad_mask: (N, T) (1 keep / 0 pad) or None.

    params = (wq, bq, wk, bk, wv, bv, wfc, bfc); projection weights stored pre-transposed
    as [in_features, out_features], biases as (1, out_features).  Pass fused=True when q,
    k and v are the same tensor (true self-attention) to take the fused-QKV fast path.
    """
    N, T, d_model = q.shape
    hd = n_heads * d_k
    ht = n_heads * T
    wq, bq, wk, bk, wv, bv, wfc, bfc = params

    # ---- host-side prep (compiled once per parameter set under this jit) ----
    scale = 1.0 / math.sqrt(d_k)

    # Combined causal + pad additive bias, tiled per head along the key-slot axis
    # z = head*T + key  ->  bias[n, q, z] = causal[q, z % T] + pad[n, z % T].
    r = jnp.arange(T)
    causal = jnp.where(r[:, None] >= r[None, :], 0.0, _MASK_VALUE).astype(jnp.float32)
    causal_t = jnp.tile(causal, (1, n_heads))                              # (T, H*T)
    if pad_mask is None:
        bias = jnp.broadcast_to(causal_t[None], (N, T, ht)).astype(jnp.float32)
    else:
        pad_b = jnp.where(pad_mask == 0, _MASK_VALUE, 0.0).astype(jnp.float32)  # (N, T)
        bias = causal_t[None, :, :] + jnp.tile(pad_b, (1, n_heads))[:, None, :]

    # Head/feature block mask: mask[z, c] = 1 iff z // T == c // d_k.
    head_mask = (jnp.arange(ht)[:, None] // T ==
                 jnp.arange(hd)[None, :] // d_k).astype(jnp.float32)       # (H*T, hd)

    wfc_b = wfc.astype(jnp.bfloat16)
    bfc_f = bfc.reshape(1, d_model).astype(jnp.float32)

    if block_batch is None:
        block_batch = _pick_block_batch(N, T, _tensorcores_per_chip())
    tb = block_batch
    assert N % tb == 0, "block_batch must divide the batch size"
    rows = tb * T

    x_spec = pl.BlockSpec((rows, d_model), lambda b: (b, 0))
    bias_spec = pl.BlockSpec((tb, T, ht), lambda b: (b, 0, 0))
    mask_spec = pl.BlockSpec((ht, hd), lambda b: (0, 0))
    wfc_spec = pl.BlockSpec((hd, d_model), lambda b: (0, 0))
    bfc_spec = pl.BlockSpec((1, d_model), lambda b: (0, 0))
    out_spec = pl.BlockSpec((rows, d_model), lambda b: (b, 0))

    if fused:
        # One fused QKV matmul; 1/sqrt(d_k) folded into the q columns.
        w_qkv = jnp.concatenate([wq * scale, wk, wv], axis=1).astype(jnp.bfloat16)
        b_qkv = jnp.concatenate([bq * scale, bk, bv], axis=1).astype(jnp.float32)
        kernel = functools.partial(_csa_fused_kernel, n_heads=n_heads, d_k=d_k)
        in_specs = [x_spec, bias_spec, mask_spec,
                    pl.BlockSpec((d_model, 3 * hd), lambda b: (0, 0)),
                    pl.BlockSpec((1, 3 * hd), lambda b: (0, 0)),
                    wfc_spec, bfc_spec]
        args = (q.reshape(N * T, d_model), bias, head_mask, w_qkv, b_qkv, wfc_b, bfc_f)
    else:
        # Distinct q/k/v: stacked weights indexed on the leading axis in-kernel.
        w_qkv = jnp.stack([wq * scale, wk, wv], axis=0).astype(jnp.bfloat16)   # (3, dm, hd)
        b_qkv = jnp.stack([bq * scale, bk, bv], axis=0).astype(jnp.float32)    # (3, 1, hd)
        kernel = functools.partial(_csa_general_kernel, n_heads=n_heads, d_k=d_k)
        in_specs = [x_spec, x_spec, x_spec, bias_spec, mask_spec,
                    pl.BlockSpec((3, d_model, hd), lambda b: (0, 0, 0)),
                    pl.BlockSpec((3, 1, hd), lambda b: (0, 0, 0)),
                    wfc_spec, bfc_spec]
        args = (q.reshape(N * T, d_model), k.reshape(N * T, d_model),
                v.reshape(N * T, d_model), bias, head_mask, w_qkv, b_qkv, wfc_b, bfc_f)

    out = pl.pallas_call(
        kernel,
        out_shape=jax.ShapeDtypeStruct((N * T, d_model), q.dtype),
        grid_spec=pltpu.PrefetchScalarGridSpec(
            num_scalar_prefetch=0,
            grid=(N // tb,),
            in_specs=in_specs,
            out_specs=out_spec,
        ),
        compiler_params=pltpu.CompilerParams(dimension_semantics=("parallel",)),
    )(*args)
    # TODO(synk): for long sequences (T >~ 1k) the (tb, T, H*T) scores must be key-tiled
    # flash-style and vmem_limit_bytes set explicitly (v7x has only 64 MiB VMEM).
    return out.reshape(N, T, d_model)


# --------------------------------------------------------------------------- reference

def _reference(q, k, v, pad_mask, params, *, n_heads, d_k):
    """Plain-JAX f32 reference mirroring the PyTorch forward."""
    wq, bq, wk, bk, wv, bv, wfc, bfc = params
    N, T, _ = q.shape
    qp = q @ wq + bq[0]
    kp = k @ wk + bk[0]
    vp = v @ wv + bv[0]

    def split(x):
        return x.reshape(N, T, n_heads, d_k).transpose(0, 2, 1, 3)   # (N,H,T,dk)

    qh, kh, vh = split(qp), split(kp), split(vp)
    scores = jnp.einsum("nhtd,nhsd->nhts", qh, kh) / math.sqrt(d_k)
    if pad_mask is not None:
        scores = jnp.where(pad_mask[:, None, None, :] == 0, -jnp.inf, scores)
    causal = jnp.tril(jnp.ones((T, T), dtype=bool))
    scores = jnp.where(causal[None, None], scores, -jnp.inf)
    w = jax.nn.softmax(scores, axis=-1)
    a = jnp.einsum("nhts,nhsd->nhtd", w, vh)
    a = a.transpose(0, 2, 1, 3).reshape(N, T, n_heads * d_k)
    return a @ wfc + bfc[0]


# --------------------------------------------------------------------------- demo / test

if __name__ == "__main__":
    # d_model=32, n_heads=4, d_k=8, T=8, N=32:
    #  * v5e/v6e (1 TC): grid=1, one 256-row block per matmul.
    #  * v7x (2 TCs): grid=2 'parallel' steps of 128 rows each.
    N, T, d_model, n_heads, d_k = 32, 8, 32, 4, 8
    hd = n_heads * d_k

    key = jax.random.PRNGKey(0)
    ks = jax.random.split(key, 16)

    def init_w(kk, shape):
        bound = 1.0 / math.sqrt(shape[0])
        return jax.random.uniform(kk, shape, jnp.float32, -bound, bound)

    # Weights stored as [in, out] (pre-transposed nn.Linear weights).
    wq = init_w(ks[0], (d_model, hd)); bq = init_w(ks[1], (1, hd))
    wk = init_w(ks[2], (d_model, hd)); bk = init_w(ks[3], (1, hd))
    wv = init_w(ks[4], (d_model, hd)); bv = init_w(ks[5], (1, hd))
    wfc = init_w(ks[6], (hd, d_model)); bfc = init_w(ks[7], (1, d_model))
    params = (wq, bq, wk, bk, wv, bv, wfc, bfc)

    # Padded-sequence mask: every sequence has length >= 1 (no fully-masked rows).
    lengths = jax.random.randint(ks[9], (N,), 1, T + 1)
    pad_mask = (jnp.arange(T)[None, :] < lengths[:, None]).astype(jnp.float32)

    # 1) True self-attention (fused-QKV fast path): q = k = v = x.
    x = jax.random.normal(ks[8], (N, T, d_model), jnp.float32)
    out = jax.block_until_ready(
        causal_self_attention(x, x, x, pad_mask, params,
                              n_heads=n_heads, d_k=d_k, fused=True))
    ref = _reference(x, x, x, pad_mask, params, n_heads=n_heads, d_k=d_k)
    assert out.shape == (N, T, d_model)
    assert jnp.allclose(out, ref, atol=5e-2, rtol=5e-2), (
        "self-attn mismatch, max abs err = "
        f"{float(jnp.max(jnp.abs(out - ref)))}")

    # 2) General path (distinct q/k/v) to verify module-signature semantics.
    qin = jax.random.normal(ks[10], (N, T, d_model), jnp.float32)
    kin = jax.random.normal(ks[11], (N, T, d_model), jnp.float32)
    vin = jax.random.normal(ks[12], (N, T, d_model), jnp.float32)
    out2 = jax.block_until_ready(
        causal_self_attention(qin, kin, vin, pad_mask, params,
                              n_heads=n_heads, d_k=d_k, fused=False))
    ref2 = _reference(qin, kin, vin, pad_mask, params, n_heads=n_heads, d_k=d_k)
    assert jnp.allclose(out2, ref2, atol=5e-2, rtol=5e-2), (
        "cross-input mismatch, max abs err = "
        f"{float(jnp.max(jnp.abs(out2 - ref2)))}")

    print("KERNEL_OK")
</pallas_src>

<mosaic_0001>
module attributes {stable_mosaic.version = 11 : i64} {
  func.func @_csa_fused_kernel(%arg0: i32, %arg1: memref<256x32xf32, #tpu.memory_space<vmem>>, %arg2: memref<32x8x32xf32, #tpu.memory_space<vmem>>, %arg3: memref<32x32xf32, #tpu.memory_space<vmem>>, %arg4: memref<32x96xbf16, #tpu.memory_space<vmem>>, %arg5: memref<1x96xf32, #tpu.memory_space<vmem>>, %arg6: memref<32x32xbf16, #tpu.memory_space<vmem>>, %arg7: memref<1x32xf32, #tpu.memory_space<vmem>>, %arg8: memref<256x32xf32, #tpu.memory_space<vmem>>) attributes {dimension_semantics = [#tpu.dimension_semantics<parallel>], iteration_bounds = array<i64: 1>, scalar_prefetch = 0 : i64, scratch_operands = 0 : i64, tpu.core_type = #tpu.core_type<tc>, window_params = [{transform_indices = @transform_0, window_bounds = array<i64: 256, 32>}, {transform_indices = @transform_1, window_bounds = array<i64: 32, 8, 32>}, {pipeline_mode = #tpu.pipeline_mode<synchronous>, transform_indices = @transform_2, window_bounds = array<i64: 32, 32>}, {pipeline_mode = #tpu.pipeline_mode<synchronous>, transform_indices = @transform_3, window_bounds = array<i64: 32, 96>}, {pipeline_mode = #tpu.pipeline_mode<synchronous>, transform_indices = @transform_4, window_bounds = array<i64: 1, 96>}, {pipeline_mode = #tpu.pipeline_mode<synchronous>, transform_indices = @transform_5, window_bounds = array<i64: 32, 32>}, {pipeline_mode = #tpu.pipeline_mode<synchronous>, transform_indices = @transform_6, window_bounds = array<i64: 1, 32>}, {transform_indices = @transform_7, window_bounds = array<i64: 256, 32>}]} {
    %c0 = arith.constant 0 : index
    %c0_0 = arith.constant 0 : index
    %0 = vector.load %arg1[%c0, %c0_0] : memref<256x32xf32, #tpu.memory_space<vmem>>, vector<256x32xf32>
    %1 = arith.truncf %0 : vector<256x32xf32> to vector<256x32xbf16>
    %c0_1 = arith.constant 0 : index
    %c0_2 = arith.constant 0 : index
    %2 = vector.load %arg4[%c0_1, %c0_2] : memref<32x96xbf16, #tpu.memory_space<vmem>>, vector<32x96xbf16>
    %cst = arith.constant dense<0.000000e+00> : vector<256x96xf32>
    %3 = tpu.matmul %1, %2, %cst {dimension_numbers = #tpu.dot_dimension_numbers<[1], [0], [0], [1], [0, 0, 1, 1], [], []>} : vector<256x32xbf16>, vector<32x96xbf16>, vector<256x96xf32> -> vector<256x96xf32>
    %c0_3 = arith.constant 0 : index
    %c0_4 = arith.constant 0 : index
    %4 = vector.load %arg5[%c0_3, %c0_4] : memref<1x96xf32, #tpu.memory_space<vmem>>, vector<1x96xf32>
    %5 = vector.broadcast %4 : vector<1x96xf32> to vector<256x96xf32>
    %6 = arith.addf %3, %5 : vector<256x96xf32>
    %7 = vector.extract_strided_slice %6 {offsets = [0, 0], sizes = [256, 32], strides = [1, 1]} : vector<256x96xf32> to vector<256x32xf32>
    %8 = vector.extract_strided_slice %6 {offsets = [0, 32], sizes = [256, 32], strides = [1, 1]} : vector<256x96xf32> to vector<256x32xf32>
    %9 = vector.extract_strided_slice %6 {offsets = [0, 64], sizes = [256, 32], strides = [1, 1]} : vector<256x96xf32> to vector<256x32xf32>
    %c0_5 = arith.constant 0 : index
    %c0_6 = arith.constant 0 : index
    %10 = vector.load %arg3[%c0_5, %c0_6] : memref<32x32xf32, #tpu.memory_space<vmem>>, vector<32x32xf32>
    %11 = vector.shape_cast %7 : vector<256x32xf32> to vector<32x8x32xf32>
    %12 = arith.truncf %11 : vector<32x8x32xf32> to vector<32x8x32xbf16>
    %13 = vector.shape_cast %8 : vector<256x32xf32> to vector<32x8x32xf32>
    %14 = tpu.concatenate %13, %13, %13, %13 in 1 : vector<32x8x32xf32>, vector<32x8x32xf32>, vector<32x8x32xf32>, vector<32x8x32xf32> -> vector<32x32x32xf32>
    %15 = vector.shape_cast %10 : vector<32x32xf32> to vector<1x32x32xf32>
    %16 = vector.broadcast %15 : vector<1x32x32xf32> to vector<32x32x32xf32>
    %17 = arith.mulf %14, %16 : vector<32x32x32xf32>
    %18 = arith.truncf %17 : vector<32x32x32xf32> to vector<32x32x32xbf16>
    %19 = vector.shape_cast %9 : vector<256x32xf32> to vector<32x8x32xf32>
    %20 = tpu.concatenate %19, %19, %19, %19 in 1 : vector<32x8x32xf32>, vector<32x8x32xf32>, vector<32x8x32xf32>, vector<32x8x32xf32> -> vector<32x32x32xf32>
    %21 = vector.shape_cast %10 : vector<32x32xf32> to vector<1x32x32xf32>
    %22 = vector.broadcast %21 : vector<1x32x32xf32> to vector<32x32x32xf32>
    %23 = arith.mulf %20, %22 : vector<32x32x32xf32>
    %24 = arith.truncf %23 : vector<32x32x32xf32> to vector<32x32x32xbf16>
    "tpu.trace_start"() <{level = 10 : i32, message = "bqc,bzc->bqz"}> : () -> ()
    %cst_7 = arith.constant dense<0.000000e+00> : vector<32x8x32xf32>
    %25 = tpu.matmul %12, %18, %cst_7 {dimension_numbers = #tpu.dot_dimension_numbers<[2], [2], [1], [1], [0, 0, 0, 1, 1, 1], [0], [0]>} : vector<32x8x32xbf16>, vector<32x32x32xbf16>, vector<32x8x32xf32> -> vector<32x8x32xf32>
    "tpu.trace_stop"() : () -> ()
    %c0_8 = arith.constant 0 : index
    %c0_9 = arith.constant 0 : index
    %c0_10 = arith.constant 0 : index
    %26 = vector.load %arg2[%c0_8, %c0_9, %c0_10] : memref<32x8x32xf32, #tpu.memory_space<vmem>>, vector<32x8x32xf32>
    %27 = arith.addf %25, %26 : vector<32x8x32xf32>
    %cst_11 = arith.constant dense<0xFF800000> : vector<32x8xf32>
    %28 = vector.multi_reduction <maximumf>, %27, %cst_11 [2] : vector<32x8x32xf32> to vector<32x8xf32>
    %29 = vector.shape_cast %28 : vector<32x8xf32> to vector<32x8x1xf32>
    %30 = vector.broadcast %29 : vector<32x8x1xf32> to vector<32x8x32xf32>
    %31 = arith.subf %27, %30 : vector<32x8x32xf32>
    %32 = math.exp %31 : vector<32x8x32xf32>
    %33 = arith.truncf %32 : vector<32x8x32xf32> to vector<32x8x32xbf16>
    "tpu.trace_start"() <{level = 10 : i32, message = "bqz,bzc->bqc"}> : () -> ()
    %cst_12 = arith.constant dense<0.000000e+00> : vector<32x8x32xf32>
    %34 = tpu.matmul %33, %24, %cst_12 {dimension_numbers = #tpu.dot_dimension_numbers<[2], [1], [1], [2], [0, 0, 0, 1, 1, 2], [0], [0]>} : vector<32x8x32xbf16>, vector<32x32x32xbf16>, vector<32x8x32xf32> -> vector<32x8x32xf32>
    "tpu.trace_stop"() : () -> ()
    %35 = vector.shape_cast %34 : vector<32x8x32xf32> to vector<256x32xf32>
    %36 = vector.shape_cast %32 : vector<32x8x32xf32> to vector<256x32xf32>
    %cst_13 = arith.constant dense<0.000000e+00> : vector<256x32xf32>
    %37 = tpu.matmul %36, %10, %cst_13 {dimension_numbers = #tpu.dot_dimension_numbers<[1], [0], [0], [1], [0, 0, 1, 1], [], []>} : vector<256x32xf32>, vector<32x32xf32>, vector<256x32xf32> -> vector<256x32xf32>
    %38 = tpu.reciprocal %37 {approx = true} : vector<256x32xf32> -> vector<256x32xf32>
    %39 = arith.mulf %35, %38 : vector<256x32xf32>
    %40 = arith.truncf %39 : vector<256x32xf32> to vector<256x32xbf16>
    %c0_14 = arith.constant 0 : index
    %c0_15 = arith.constant 0 : index
    %41 = vector.load %arg6[%c0_14, %c0_15] : memref<32x32xbf16, #tpu.memory_space<vmem>>, vector<32x32xbf16>
    %cst_16 = arith.constant dense<0.000000e+00> : vector<256x32xf32>
    %42 = tpu.matmul %40, %41, %cst_16 {dimension_numbers = #tpu.dot_dimension_numbers<[1], [0], [0], [1], [0, 0, 1, 1], [], []>} : vector<256x32xbf16>, vector<32x32xbf16>, vector<256x32xf32> -> vector<256x32xf32>
    %c0_17 = arith.constant 0 : index
    %c0_18 = arith.constant 0 : index
    %43 = vector.load %arg7[%c0_17, %c0_18] : memref<1x32xf32, #tpu.memory_space<vmem>>, vector<1x32xf32>
    %44 = vector.broadcast %43 : vector<1x32xf32> to vector<256x32xf32>
    %45 = arith.addf %42, %44 : vector<256x32xf32>
    %c0_19 = arith.constant 0 : index
    %c0_20 = arith.constant 0 : index
    %46 = vector.load %arg8[%c0_19, %c0_20] : memref<256x32xf32, #tpu.memory_space<vmem>>, vector<256x32xf32>
    tpu.vector_store %arg8[%c0_19, %c0_20], %45 {strides = array<i32>} : memref<256x32xf32, #tpu.memory_space<vmem>>, vector<256x32xf32>,
    return
  }
  func.func @transform_0(%arg0: i32) -> (i32, i32) {
    %c0_i32 = arith.constant 0 : i32
    %c0_i32_0 = arith.constant 0 : i32
    return %arg0, %c0_i32 : i32, i32
  }
  func.func @transform_1(%arg0: i32) -> (i32, i32, i32) {
    %c0_i32 = arith.constant 0 : i32
    %c0_i32_0 = arith.constant 0 : i32
    %c0_i32_1 = arith.constant 0 : i32
    return %arg0, %c0_i32, %c0_i32_0 : i32, i32, i32
  }
  func.func @transform_2(%arg0: i32) -> (i32, i32) {
    %c0_i32 = arith.constant 0 : i32
    %c0_i32_0 = arith.constant 0 : i32
    %c0_i32_1 = arith.constant 0 : i32
    return %c0_i32, %c0_i32_0 : i32, i32
  }
  func.func @transform_3(%arg0: i32) -> (i32, i32) {
    %c0_i32 = arith.constant 0 : i32
    %c0_i32_0 = arith.constant 0 : i32
    %c0_i32_1 = arith.constant 0 : i32
    return %c0_i32, %c0_i32_0 : i32, i32
  }
  func.func @transform_4(%arg0: i32) -> (i32, i32) {
    %c0_i32 = arith.constant 0 : i32
    %c0_i32_0 = arith.constant 0 : i32
    %c0_i32_1 = arith.constant 0 : i32
    return %c0_i32, %c0_i32_0 : i32, i32
  }
  func.func @transform_5(%arg0: i32) -> (i32, i32) {
    %c0_i32 = arith.constant 0 : i32
    %c0_i32_0 = arith.constant 0 : i32
    %c0_i32_1 = arith.constant 0 : i32
    return %c0_i32, %c0_i32_0 : i32, i32
  }
  func.func @transform_6(%arg0: i32) -> (i32, i32) {
    %c0_i32 = arith.constant 0 : i32
    %c0_i32_0 = arith.constant 0 : i32
    %c0_i32_1 = arith.constant 0 : i32
    return %c0_i32, %c0_i32_0 : i32, i32
  }
  func.func @transform_7(%arg0: i32) -> (i32, i32) {
    %c0_i32 = arith.constant 0 : i32
    %c0_i32_0 = arith.constant 0 : i32
    return %arg0, %c0_i32 : i32, i32
  }
}

</mosaic_0001>

<llo_original>
// kernel: causal_self_attention.1
$region0: #{causal_self_attention.1}
  #allocation0 [shape = 'u32[]', space=smem, size = 0x4, offset = 0x4, fixed_abs, tag = 'smem constant byte address 0x4 - core index']
  #allocation1 [shape = 'u32[144,128]{1,0:T(1,128)}', space=vmem, size = 0x12000, scoped, tag = 'internal scratch']
  %s0 = inlined_call_operand.vmem [shape: f32[256,32], index: 0, kind: input, shape index: {}]
  %s1 = inlined_call_operand.vmem [shape: f32[32,8,32], index: 1, kind: input, shape index: {}]
  %s2 = inlined_call_operand.vmem [shape: f32[32,32], index: 2, kind: input, shape index: {}]
  %s3 = inlined_call_operand.vmem [shape: bf16[32,96], index: 3, kind: input, shape index: {}]
  %s4 = inlined_call_operand.vmem [shape: f32[1,96], index: 4, kind: input, shape index: {}]
  %s5 = inlined_call_operand.vmem [shape: bf16[32,32], index: 5, kind: input, shape index: {}]
  %s6 = inlined_call_operand.vmem [shape: f32[1,32], index: 6, kind: input, shape index: {}]
  %s7 = inlined_call_operand.hbm [shape: f32[256,32], index: 7, kind: output, shape index: {}]
  %s8 = sld [smem:[#allocation0]]
  $region38: #{causal_self_attention.1} parent=0
    _
  %s10 = ssub.s32 1, %s8
  %s11 = scalar_select 0, %s10, %s8
  $region1: #{causal_self_attention.1} parent=0
    #allocation2 [shape = 'u8[131072]{0}', space=vmem, size = 0x20000, scoped, tag = 'output window, operand 0, single buffered']
    #allocation3 [shape = 's32[1]{0}', space=sflag, size = 0x4, scoped, tag = 'scoped memory for causal_self_attention.1']
    %12 = vsyncpa [#allocation3], 0
    // Predicated region
    $region2: #{causal_self_attention.1} parent=1 // pred_check
      _
    $region3: #{causal_self_attention.1} parent=1 // pred_check_branch
      %14 = sbr.rel (0) target = $region5
    $region4: #{causal_self_attention.1} parent=1 // pred_region
      _
    $region5: #{causal_self_attention.1} parent=1 // pred_fallthru
      _
    // Predicated region
    $region6: #{causal_self_attention.1} parent=1 // pred_check
      _
    $region7: #{causal_self_attention.1} parent=1 // pred_check_branch
      %16 = sbr.rel (0) target = $region9
    $region8: #{causal_self_attention.1} parent=1 // pred_region
      _
    $region9: #{causal_self_attention.1} parent=1 // pred_fallthru
      _
    // Predicated region
    $region10: #{causal_self_attention.1} parent=1 // pred_check
      _
    $region11: #{causal_self_attention.1} parent=1 // pred_check_branch
      %18 = sbr.rel (0) target = $region13
    $region12: #{causal_self_attention.1} parent=1 // pred_region
      _
    $region13: #{causal_self_attention.1} parent=1 // pred_fallthru
      _
    // Predicated region
    $region14: #{causal_self_attention.1} parent=1 // pred_check
      _
    $region15: #{causal_self_attention.1} parent=1 // pred_check_branch
      %20 = sbr.rel (0) target = $region17
    $region16: #{causal_self_attention.1} parent=1 // pred_region
      _
    $region17: #{causal_self_attention.1} parent=1 // pred_fallthru
      _
    // Predicated region
    $region18: #{causal_self_attention.1} parent=1 // pred_check
      _
    $region19: #{causal_self_attention.1} parent=1 // pred_check_branch
      %22 = sbr.rel (0) target = $region21
    $region20: #{causal_self_attention.1} parent=1 // pred_region
      _
    $region21: #{causal_self_attention.1} parent=1 // pred_fallthru
      _
    // Predicated region
    $region22: #{causal_self_attention.1} parent=1 // pred_check
      _
    $region23: #{causal_self_attention.1} parent=1 // pred_check_branch
      %24 = sbr.rel (0) target = $region25
    $region24: #{causal_self_attention.1} parent=1 // pred_region
      _
    $region25: #{causal_self_attention.1} parent=1 // pred_fallthru
      _
    // Predicated region
    $region26: #{causal_self_attention.1} parent=1 // pred_check
      _
    $region27: #{causal_self_attention.1} parent=1 // pred_check_branch
      %26 = sbr.rel (0) target = $region29
    $region28: #{causal_self_attention.1} parent=1 // pred_region
      _
    $region29: #{causal_self_attention.1} parent=1 // pred_fallthru
      _
    %v28 = vld [vmem:[%s0] sm:$0xff]
    %v29 = vld [vmem:[%s0 + $0x8] sm:$0xff]
    %v30 = vld [vmem:[%s0 + $0x10] sm:$0xff]
    %v31 = vld [vmem:[%s0 + $0x18] sm:$0xff]
    %v32 = vld [vmem:[%s0 + $0x20] sm:$0xff]
    %v33 = vld [vmem:[%s0 + $0x28] sm:$0xff]
    %v34 = vld [vmem:[%s0 + $0x30] sm:$0xff]
    %v35 = vld [vmem:[%s0 + $0x38] sm:$0xff]
    %v36 = vld [vmem:[%s0 + $0x40] sm:$0xff]
    %v37 = vld [vmem:[%s0 + $0x48] sm:$0xff]
    %v38 = vld [vmem:[%s0 + $0x50] sm:$0xff]
    %v39 = vld [vmem:[%s0 + $0x58] sm:$0xff]
    %v40 = vld [vmem:[%s0 + $0x60] sm:$0xff]
    %v41 = vld [vmem:[%s0 + $0x68] sm:$0xff]
    %v42 = vld [vmem:[%s0 + $0x70] sm:$0xff]
    %v43 = vld [vmem:[%s0 + $0x78] sm:$0xff]
    %v44 = vld [vmem:[%s0 + $0x80] sm:$0xff]
    %v45 = vld [vmem:[%s0 + $0x88] sm:$0xff]
    %v46 = vld [vmem:[%s0 + $0x90] sm:$0xff]
    %v47 = vld [vmem:[%s0 + $0x98] sm:$0xff]
    %v48 = vld [vmem:[%s0 + $0xa0] sm:$0xff]
    %v49 = vld [vmem:[%s0 + $0xa8] sm:$0xff]
    %v50 = vld [vmem:[%s0 + $0xb0] sm:$0xff]
    %v51 = vld [vmem:[%s0 + $0xb8] sm:$0xff]
    %v52 = vld [vmem:[%s0 + $0xc0] sm:$0xff]
    %v53 = vld [vmem:[%s0 + $0xc8] sm:$0xff]
    %v54 = vld [vmem:[%s0 + $0xd0] sm:$0xff]
    %v55 = vld [vmem:[%s0 + $0xd8] sm:$0xff]
    %v56 = vld [vmem:[%s0 + $0xe0] sm:$0xff]
    %v57 = vld [vmem:[%s0 + $0xe8] sm:$0xff]
    %v58 = vld [vmem:[%s0 + $0xf0] sm:$0xff]
    %v59 = vld [vmem:[%s0 + $0xf8] sm:$0xff]
    %v60 = vpack.c.bf16 %v29, %v28
    %v61 = vpack.c.bf16 %v31, %v30
    %v62 = vpack.c.bf16 %v33, %v32
    %v63 = vpack.c.bf16 %v35, %v34
    %v64 = vpack.c.bf16 %v37, %v36
    %v65 = vpack.c.bf16 %v39, %v38
    %v66 = vpack.c.bf16 %v41, %v40
    %v67 = vpack.c.bf16 %v43, %v42
    %v68 = vpack.c.bf16 %v45, %v44
    %v69 = vpack.c.bf16 %v47, %v46
    %v70 = vpack.c.bf16 %v49, %v48
    %v71 = vpack.c.bf16 %v51, %v50
    %v72 = vpack.c.bf16 %v53, %v52
    %v73 = vpack.c.bf16 %v55, %v54
    %v74 = vpack.c.bf16 %v57, %v56
    %v75 = vpack.c.bf16 %v59, %v58
    %v76 = vld [vmem:[%s3] sm:$0xf]
    %v77 = vld [vmem:[%s3 + $0x4] sm:$0xf]
    %v78 = vld [vmem:[%s3 + $0x8] sm:$0xf]
    %v79 = vld [vmem:[%s3 + $0xc] sm:$0xf]
    %v80 = vld [vmem:[%s4] sm:$0x1]
    %v82 = vlaneseq
    %v83 = vshrl.u32 %v82, 7
    %v84 = vsub.s32 0, %v83
    %v85 = vrot.slane %v80, %v84
    %v91 = vunpack.c.l.b16 %v76
    %v92 = vunpack.c.l.b16 %v77
    %v93 = vunpack.c.l.b16 %v78
    %v94 = vunpack.c.l.b16 %v79
    %v95 = vpack.c.b16 %v92, %v91
    %v96 = vpack.c.b16 %v94, %v93
    %vm99 = vcmask 261120
    %v101 = vsel %vm99, %v60, 0
    %v104 = vsel %vm99, %v61, 0
    %v107 = vsel %vm99, %v62, 0
    %v110 = vsel %vm99, %v63, 0
    %v113 = vsel %vm99, %v64, 0
    %v116 = vsel %vm99, %v65, 0
    %v119 = vsel %vm99, %v66, 0
    %v122 = vsel %vm99, %v67, 0
    %v125 = vsel %vm99, %v68, 0
    %v128 = vsel %vm99, %v69, 0
    %v131 = vsel %vm99, %v70, 0
    %v134 = vsel %vm99, %v71, 0
    %v137 = vsel %vm99, %v72, 0
    %v140 = vsel %vm99, %v73, 0
    %v143 = vsel %vm99, %v74, 0
    %v146 = vsel %vm99, %v75, 0
    %148 = vmatprep.subr.bf16.mxu0 0
    %149 = vmatpush1.bf16.msra.mxu0 0
    %150 = vmatprep.subr.bf16.mxu0 0
    %151 = vmatpush1.bf16.msra.mxu0 0
    %152 = vmatprep.subr.bf16.mxu0 0
    %153 = vmatpush1.bf16.msra.mxu0 0
    %154 = vmatprep.subr.bf16.mxu0 0
    %155 = vmatpush1.bf16.msra.mxu0 0
    %156 = vmatprep.subr.bf16.mxu0 0
    %157 = vmatpush1.bf16.msra.mxu0 0
    %158 = vmatprep.subr.bf16.mxu0 0
    %159 = vmatpush1.bf16.msra.mxu0 0
    %160 = vmatprep.subr.bf16.mxu0 0
    %161 = vmatpush1.bf16.msra.mxu0 %v96
    %162 = vmatprep.subr.bf16.mxu0 0
    %163 = vmatpush1.bf16.msra.mxu0 %v95
    %164 = vmatprep.subr.bf16.mxu0 0
    %165 = vmatpush2.bf16.msra.mxu0 0
    %166 = vmatprep.subr.bf16.mxu0 0
    %167 = vmatpush2.bf16.msra.mxu0 0
    %168 = vmatprep.subr.bf16.mxu0 0
    %169 = vmatpush2.bf16.msra.mxu0 0
    %170 = vmatprep.subr.bf16.mxu0 0
    %171 = vmatpush2.bf16.msra.mxu0 0
    %172 = vmatprep.subr.bf16.mxu0 0
    %173 = vmatpush2.bf16.msra.mxu0 0
    %174 = vmatprep.subr.bf16.mxu0 0
    %175 = vmatpush2.bf16.msra.mxu0 0
    %176 = vmatprep.subr.bf16.mxu0 0
    %177 = vmatpush2.bf16.msra.mxu0 0
    %178 = vmatprep.subr.bf16.mxu0 0
    %179 = vmatpush2.bf16.msra.mxu0 0
    %180 = vmatprep.mubr.bf16.mxu0 0
    %181 = vmatmul.mubr.bf16.gmra.mxu0 %v101
    %v182 = vpop.f32.mrf.mxu0
    %v183 = vadd.f32 %v85, %v182
    %v184 = vpop.f32.mrf.mxu0
    %v185 = vpop.f32.mrf.mxu0
    %v186 = vadd.f32 %v85, %v185
    %v187 = vpop.f32.mrf.mxu0
    %188 = vmatprep.mubr.bf16.mxu0 0
    %189 = vmatmul.mubr.bf16.gmra.mxu0 %v104
    %v190 = vpop.f32.mrf.mxu0
    %v191 = vadd.f32 %v85, %v190
    %v192 = vpop.f32.mrf.mxu0
    %v193 = vpop.f32.mrf.mxu0
    %v194 = vadd.f32 %v85, %v193
    %v195 = vpop.f32.mrf.mxu0
    %196 = vmatprep.mubr.bf16.mxu0 0
    %197 = vmatmul.mubr.bf16.gmra.mxu0 %v107
    %v198 = vpop.f32.mrf.mxu0
    %v199 = vadd.f32 %v85, %v198
    %v200 = vpop.f32.mrf.mxu0
    %v201 = vpop.f32.mrf.mxu0
    %v202 = vadd.f32 %v85, %v201
    %v203 = vpop.f32.mrf.mxu0
    %204 = vmatprep.mubr.bf16.mxu0 0
    %205 = vmatmul.mubr.bf16.gmra.mxu0 %v110
    %v206 = vpop.f32.mrf.mxu0
    %v207 = vadd.f32 %v85, %v206
    %v208 = vpop.f32.mrf.mxu0
    %v209 = vpop.f32.mrf.mxu0
    %v210 = vadd.f32 %v85, %v209
    %v211 = vpop.f32.mrf.mxu0
    %212 = vmatprep.mubr.bf16.mxu0 0
    %213 = vmatmul.mubr.bf16.gmra.mxu0 %v113
    %v214 = vpop.f32.mrf.mxu0
    %v215 = vadd.f32 %v85, %v214
    %v216 = vpop.f32.mrf.mxu0
    %v217 = vpop.f32.mrf.mxu0
    %v218 = vadd.f32 %v85, %v217
    %v219 = vpop.f32.mrf.mxu0
    %220 = vmatprep.mubr.bf16.mxu0 0
    %221 = vmatmul.mubr.bf16.gmra.mxu0 %v116
    %v222 = vpop.f32.mrf.mxu0
    %v223 = vadd.f32 %v85, %v222
    %v224 = vpop.f32.mrf.mxu0
    %v225 = vpop.f32.mrf.mxu0
    %v226 = vadd.f32 %v85, %v225
    %v227 = vpop.f32.mrf.mxu0
    %228 = vmatprep.mubr.bf16.mxu0 0
    %229 = vmatmul.mubr.bf16.gmra.mxu0 %v119
    %v230 = vpop.f32.mrf.mxu0
    %v231 = vadd.f32 %v85, %v230
    %v232 = vpop.f32.mrf.mxu0
    %v233 = vpop.f32.mrf.mxu0
    %v234 = vadd.f32 %v85, %v233
    %v235 = vpop.f32.mrf.mxu0
    %236 = vmatprep.mubr.bf16.mxu0 0
    %237 = vmatmul.mubr.bf16.gmra.mxu0 %v122
    %v238 = vpop.f32.mrf.mxu0
    %v239 = vadd.f32 %v85, %v238
    %v240 = vpop.f32.mrf.mxu0
    %v241 = vpop.f32.mrf.mxu0
    %v242 = vadd.f32 %v85, %v241
    %v243 = vpop.f32.mrf.mxu0
    %244 = vmatprep.mubr.bf16.mxu0 0
    %245 = vmatmul.mubr.bf16.gmra.mxu0 %v125
    %v246 = vpop.f32.mrf.mxu0
    %v247 = vadd.f32 %v85, %v246
    %v248 = vpop.f32.mrf.mxu0
    %v249 = vpop.f32.mrf.mxu0
    %v250 = vadd.f32 %v85, %v249
    %v251 = vpop.f32.mrf.mxu0
    %252 = vmatprep.mubr.bf16.mxu0 0
    %253 = vmatmul.mubr.bf16.gmra.mxu0 %v128
    %v254 = vpop.f32.mrf.mxu0
    %v255 = vadd.f32 %v85, %v254
    %v256 = vpop.f32.mrf.mxu0
    %v257 = vpop.f32.mrf.mxu0
    %v258 = vadd.f32 %v85, %v257
    %v259 = vpop.f32.mrf.mxu0
    %260 = vmatprep.mubr.bf16.mxu0 0
    %261 = vmatmul.mubr.bf16.gmra.mxu0 %v131
    %v262 = vpop.f32.mrf.mxu0
    %v263 = vadd.f32 %v85, %v262
    %v264 = vpop.f32.mrf.mxu0
    %v265 = vpop.f32.mrf.mxu0
    %v266 = vadd.f32 %v85, %v265
    %v267 = vpop.f32.mrf.mxu0
    %268 = vmatprep.mubr.bf16.mxu0 0
    %269 = vmatmul.mubr.bf16.gmra.mxu0 %v134
    %v270 = vpop.f32.mrf.mxu0
    %v271 = vadd.f32 %v85, %v270
    %v272 = vpop.f32.mrf.mxu0
    %v273 = vpop.f32.mrf.mxu0
    %v274 = vadd.f32 %v85, %v273
    %v275 = vpop.f32.mrf.mxu0
    %276 = vmatprep.mubr.bf16.mxu0 0
    %277 = vmatmul.mubr.bf16.gmra.mxu0 %v137
    %v278 = vpop.f32.mrf.mxu0
    %v279 = vadd.f32 %v85, %v278
    %v280 = vpop.f32.mrf.mxu0
    %v281 = vpop.f32.mrf.mxu0
    %v282 = vadd.f32 %v85, %v281
    %v283 = vpop.f32.mrf.mxu0
    %284 = vmatprep.mubr.bf16.mxu0 0
    %285 = vmatmul.mubr.bf16.gmra.mxu0 %v140
    %v286 = vpop.f32.mrf.mxu0
    %v287 = vadd.f32 %v85, %v286
    %v288 = vpop.f32.mrf.mxu0
    %v289 = vpop.f32.mrf.mxu0
    %v290 = vadd.f32 %v85, %v289
    %v291 = vpop.f32.mrf.mxu0
    %292 = vmatprep.mubr.bf16.mxu0 0
    %293 = vmatmul.mubr.bf16.gmra.mxu0 %v143
    %v294 = vpop.f32.mrf.mxu0
    %v295 = vadd.f32 %v85, %v294
    %v296 = vpop.f32.mrf.mxu0
    %v297 = vpop.f32.mrf.mxu0
    %v298 = vadd.f32 %v85, %v297
    %v299 = vpop.f32.mrf.mxu0
    %300 = vmatprep.mubr.bf16.mxu0 0
    %301 = vmatmul.mubr.bf16.gmra.mxu0 %v146
    %v302 = vpop.f32.mrf.mxu0
    %v303 = vadd.f32 %v85, %v302
    %v304 = vpop.f32.mrf.mxu0
    %v305 = vpop.f32.mrf.mxu0
    %v306 = vadd.f32 %v85, %v305
    %v307 = vpop.f32.mrf.mxu0
    %308 = vdwg.mxu0
    %v309 = vld [vmem:[%s2] sm:$0xff]
    %v310 = vld [vmem:[%s2 + $0x8] sm:$0xff]
    %v311 = vld [vmem:[%s2 + $0x10] sm:$0xff]
    %v312 = vld [vmem:[%s2 + $0x18] sm:$0xff]
    %v313 = vpack.c.bf16 %v183, %v183
    %v314 = vpack.c.bf16 %v186, %v186
    %v315 = vpack.c.bf16 %v191, %v191
    %v316 = vpack.c.bf16 %v194, %v194
    %v317 = vpack.c.bf16 %v199, %v199
    %v318 = vpack.c.bf16 %v202, %v202
    %v319 = vpack.c.bf16 %v207, %v207
    %v320 = vpack.c.bf16 %v210, %v210
    %v321 = vpack.c.bf16 %v215, %v215
    %v322 = vpack.c.bf16 %v218, %v218
    %v323 = vpack.c.bf16 %v223, %v223
    %v324 = vpack.c.bf16 %v226, %v226
    %v325 = vpack.c.bf16 %v231, %v231
    %v326 = vpack.c.bf16 %v234, %v234
    %v327 = vpack.c.bf16 %v239, %v239
    %v328 = vpack.c.bf16 %v242, %v242
    %v329 = vpack.c.bf16 %v247, %v247
    %v330 = vpack.c.bf16 %v250, %v250
    %v331 = vpack.c.bf16 %v255, %v255
    %v332 = vpack.c.bf16 %v258, %v258
    %v333 = vpack.c.bf16 %v263, %v263
    %v334 = vpack.c.bf16 %v266, %v266
    %v335 = vpack.c.bf16 %v271, %v271
    %v336 = vpack.c.bf16 %v274, %v274
    %v337 = vpack.c.bf16 %v279, %v279
    %v338 = vpack.c.bf16 %v282, %v282
    %v339 = vpack.c.bf16 %v287, %v287
    %v340 = vpack.c.bf16 %v290, %v290
    %v341 = vpack.c.bf16 %v295, %v295
    %v342 = vpack.c.bf16 %v298, %v298
    %v343 = vpack.c.bf16 %v303, %v303
    %v344 = vpack.c.bf16 %v306, %v306
    %349 = vrot.lane.b32.xlu0 %v309, 32
    %v350 = vpop.permute.xlu0 %349
    %351 = vrot.lane.b32.xlu0 %v310, 32
    %v352 = vpop.permute.xlu0 %351
    %353 = vrot.lane.b32.xlu0 %v311, 32
    %v354 = vpop.permute.xlu0 %353
    %355 = vrot.lane.b32.xlu0 %v312, 32
    %v356 = vpop.permute.xlu0 %355
    %v361 = vmul.f32 %v183, %v350
    %v362 = vmul.f32 %v183, %v352
    %v363 = vmul.f32 %v183, %v354
    %v364 = vmul.f32 %v183, %v356
    %v365 = vmul.f32 %v186, %v350
    %v366 = vmul.f32 %v186, %v352
    %v367 = vmul.f32 %v186, %v354
    %v368 = vmul.f32 %v186, %v356
    %v369 = vmul.f32 %v191, %v350
    %v370 = vmul.f32 %v191, %v352
    %v371 = vmul.f32 %v191, %v354
    %v372 = vmul.f32 %v191, %v356
    %v373 = vmul.f32 %v194, %v350
    %v374 = vmul.f32 %v194, %v352
    %v375 = vmul.f32 %v194, %v354
    %v376 = vmul.f32 %v194, %v356
    %v377 = vmul.f32 %v199, %v350
    %v378 = vmul.f32 %v199, %v352
    %v379 = vmul.f32 %v199, %v354
    %v380 = vmul.f32 %v199, %v356
    %v381 = vmul.f32 %v202, %v350
    %v382 = vmul.f32 %v202, %v352
    %v383 = vmul.f32 %v202, %v354
    %v384 = vmul.f32 %v202, %v356
    %v385 = vmul.f32 %v207, %v350
    %v386 = vmul.f32 %v207, %v352
    %v387 = vmul.f32 %v207, %v354
    %v388 = vmul.f32 %v207, %v356
    %v389 = vmul.f32 %v210, %v350
    %v390 = vmul.f32 %v210, %v352
    %v391 = vmul.f32 %v210, %v354
    %v392 = vmul.f32 %v210, %v356
    %v393 = vmul.f32 %v215, %v350
    %v394 = vmul.f32 %v215, %v352
    %v395 = vmul.f32 %v215, %v354
    %v396 = vmul.f32 %v215, %v356
    %v397 = vmul.f32 %v218, %v350
    %v398 = vmul.f32 %v218, %v352
    %v399 = vmul.f32 %v218, %v354
    %v400 = vmul.f32 %v218, %v356
    %v401 = vmul.f32 %v223, %v350
    %v402 = vmul.f32 %v223, %v352
    %v403 = vmul.f32 %v223, %v354
    %v404 = vmul.f32 %v223, %v356
    %v405 = vmul.f32 %v226, %v350
    %v406 = vmul.f32 %v226, %v352
    %v407 = vmul.f32 %v226, %v354
    %v408 = vmul.f32 %v226, %v356
    %v409 = vmul.f32 %v231, %v350
    %v410 = vmul.f32 %v231, %v352
    %v411 = vmul.f32 %v231, %v354
    %v412 = vmul.f32 %v231, %v356
    %v413 = vmul.f32 %v234, %v350
    %v414 = vmul.f32 %v234, %v352
    %v415 = vmul.f32 %v234, %v354
    %v416 = vmul.f32 %v234, %v356
    %v417 = vmul.f32 %v239, %v350
    %v418 = vmul.f32 %v239, %v352
    %v419 = vmul.f32 %v239, %v354
    %v420 = vmul.f32 %v239, %v356
    %v421 = vmul.f32 %v242, %v350
    %v422 = vmul.f32 %v242, %v352
    %v423 = vmul.f32 %v242, %v354
    %v424 = vmul.f32 %v242, %v356
    %v425 = vmul.f32 %v247, %v350
    %v426 = vmul.f32 %v247, %v352
    %v427 = vmul.f32 %v247, %v354
    %v428 = vmul.f32 %v247, %v356
    %v429 = vmul.f32 %v250, %v350
    %v430 = vmul.f32 %v250, %v352
    %v431 = vmul.f32 %v250, %v354
    %v432 = vmul.f32 %v250, %v356
    %v433 = vmul.f32 %v255, %v350
    %v434 = vmul.f32 %v255, %v352
    %v435 = vmul.f32 %v255, %v354
    %v436 = vmul.f32 %v255, %v356
    %v437 = vmul.f32 %v258, %v350
    %v438 = vmul.f32 %v258, %v352
    %v439 = vmul.f32 %v258, %v354
    %v440 = vmul.f32 %v258, %v356
    %v441 = vmul.f32 %v263, %v350
    %v442 = vmul.f32 %v263, %v352
    %v443 = vmul.f32 %v263, %v354
    %v444 = vmul.f32 %v263, %v356
    %v445 = vmul.f32 %v266, %v350
    %v446 = vmul.f32 %v266, %v352
    %v447 = vmul.f32 %v266, %v354
    %v448 = vmul.f32 %v266, %v356
    %v449 = vmul.f32 %v271, %v350
    %v450 = vmul.f32 %v271, %v352
    %v451 = vmul.f32 %v271, %v354
    %v452 = vmul.f32 %v271, %v356
    %v453 = vmul.f32 %v274, %v350
    %v454 = vmul.f32 %v274, %v352
    %v455 = vmul.f32 %v274, %v354
    %v456 = vmul.f32 %v274, %v356
    %v457 = vmul.f32 %v279, %v350
    %v458 = vmul.f32 %v279, %v352
    %v459 = vmul.f32 %v279, %v354
    %v460 = vmul.f32 %v279, %v356
    %v461 = vmul.f32 %v282, %v350
    %v462 = vmul.f32 %v282, %v352
    %v463 = vmul.f32 %v282, %v354
    %v464 = vmul.f32 %v282, %v356
    %v465 = vmul.f32 %v287, %v350
    %v466 = vmul.f32 %v287, %v352
    %v467 = vmul.f32 %v287, %v354
    %v468 = vmul.f32 %v287, %v356
    %v469 = vmul.f32 %v290, %v350
    %v470 = vmul.f32 %v290, %v352
    %v471 = vmul.f32 %v290, %v354
    %v472 = vmul.f32 %v290, %v356
    %v473 = vmul.f32 %v295, %v350
    %v474 = vmul.f32 %v295, %v352
    %v475 = vmul.f32 %v295, %v354
    %v476 = vmul.f32 %v295, %v356
    %v477 = vmul.f32 %v298, %v350
    %v478 = vmul.f32 %v298, %v352
    %v479 = vmul.f32 %v298, %v354
    %v480 = vmul.f32 %v298, %v356
    %v481 = vmul.f32 %v303, %v350
    %v482 = vmul.f32 %v303, %v352
    %v483 = vmul.f32 %v303, %v354
    %v484 = vmul.f32 %v303, %v356
    %v485 = vmul.f32 %v306, %v350
    %v486 = vmul.f32 %v306, %v352
    %v487 = vmul.f32 %v306, %v354
    %v488 = vmul.f32 %v306, %v356
    %v489 = vpack.c.bf16 %v362, %v361
    %v490 = vpack.c.bf16 %v364, %v363
    %v491 = vpack.c.bf16 %v366, %v365
    %v492 = vpack.c.bf16 %v368, %v367
    %v493 = vpack.c.bf16 %v370, %v369
    %v494 = vpack.c.bf16 %v372, %v371
    %v495 = vpack.c.bf16 %v374, %v373
    %v496 = vpack.c.bf16 %v376, %v375
    %v497 = vpack.c.bf16 %v378, %v377
    %v498 = vpack.c.bf16 %v380, %v379
    %v499 = vpack.c.bf16 %v382, %v381
    %v500 = vpack.c.bf16 %v384, %v383
    %v501 = vpack.c.bf16 %v386, %v385
    %v502 = vpack.c.bf16 %v388, %v387
    %v503 = vpack.c.bf16 %v390, %v389
    %v504 = vpack.c.bf16 %v392, %v391
    %v505 = vpack.c.bf16 %v394, %v393
    %v506 = vpack.c.bf16 %v396, %v395
    %v507 = vpack.c.bf16 %v398, %v397
    %v508 = vpack.c.bf16 %v400, %v399
    %v509 = vpack.c.bf16 %v402, %v401
    %v510 = vpack.c.bf16 %v404, %v403
    %v511 = vpack.c.bf16 %v406, %v405
    %v512 = vpack.c.bf16 %v408, %v407
    %v513 = vpack.c.bf16 %v410, %v409
    %v514 = vpack.c.bf16 %v412, %v411
    %v515 = vpack.c.bf16 %v414, %v413
    %v516 = vpack.c.bf16 %v416, %v415
    %v517 = vpack.c.bf16 %v418, %v417
    %v518 = vpack.c.bf16 %v420, %v419
    %v519 = vpack.c.bf16 %v422, %v421
    %v520 = vpack.c.bf16 %v424, %v423
    %v521 = vpack.c.bf16 %v426, %v425
    %v522 = vpack.c.bf16 %v428, %v427
    %v523 = vpack.c.bf16 %v430, %v429
    %v524 = vpack.c.bf16 %v432, %v431
    %v525 = vpack.c.bf16 %v434, %v433
    %v526 = vpack.c.bf16 %v436, %v435
    %v527 = vpack.c.bf16 %v438, %v437
    %v528 = vpack.c.bf16 %v440, %v439
    %v529 = vpack.c.bf16 %v442, %v441
    %v530 = vpack.c.bf16 %v444, %v443
    %v531 = vpack.c.bf16 %v446, %v445
    %v532 = vpack.c.bf16 %v448, %v447
    %v533 = vpack.c.bf16 %v450, %v449
    %v534 = vpack.c.bf16 %v452, %v451
    %v535 = vpack.c.bf16 %v454, %v453
    %v536 = vpack.c.bf16 %v456, %v455
    %v537 = vpack.c.bf16 %v458, %v457
    %v538 = vpack.c.bf16 %v460, %v459
    %v539 = vpack.c.bf16 %v462, %v461
    %v540 = vpack.c.bf16 %v464, %v463
    %v541 = vpack.c.bf16 %v466, %v465
    %v542 = vpack.c.bf16 %v468, %v467
    %v543 = vpack.c.bf16 %v470, %v469
    %v544 = vpack.c.bf16 %v472, %v471
    %v545 = vpack.c.bf16 %v474, %v473
    %v546 = vpack.c.bf16 %v476, %v475
    %v547 = vpack.c.bf16 %v478, %v477
    %v548 = vpack.c.bf16 %v480, %v479
    %v549 = vpack.c.bf16 %v482, %v481
    %v550 = vpack.c.bf16 %v484, %v483
    %v551 = vpack.c.bf16 %v486, %v485
    %v552 = vpack.c.bf16 %v488, %v487
    %553 = vrot.lane.b32.xlu0 %v309, 64
    %v554 = vpop.permute.xlu0 %553
    %555 = vrot.lane.b32.xlu0 %v310, 64
    %v556 = vpop.permute.xlu0 %555
    %557 = vrot.lane.b32.xlu0 %v311, 64
    %v558 = vpop.permute.xlu0 %557
    %559 = vrot.lane.b32.xlu0 %v312, 64
    %v560 = vpop.permute.xlu0 %559
    %v565 = vmul.f32 %v183, %v554
    %v566 = vmul.f32 %v183, %v556
    %v567 = vmul.f32 %v183, %v558
    %v568 = vmul.f32 %v183, %v560
    %v569 = vmul.f32 %v186, %v554
    %v570 = vmul.f32 %v186, %v556
    %v571 = vmul.f32 %v186, %v558
    %v572 = vmul.f32 %v186, %v560
    %v573 = vmul.f32 %v191, %v554
    %v574 = vmul.f32 %v191, %v556
    %v575 = vmul.f32 %v191, %v558
    %v576 = vmul.f32 %v191, %v560
    %v577 = vmul.f32 %v194, %v554
    %v578 = vmul.f32 %v194, %v556
    %v579 = vmul.f32 %v194, %v558
    %v580 = vmul.f32 %v194, %v560
    %v581 = vmul.f32 %v199, %v554
    %v582 = vmul.f32 %v199, %v556
    %v583 = vmul.f32 %v199, %v558
    %v584 = vmul.f32 %v199, %v560
    %v585 = vmul.f32 %v202, %v554
    %v586 = vmul.f32 %v202, %v556
    %v587 = vmul.f32 %v202, %v558
    %v588 = vmul.f32 %v202, %v560
    %v589 = vmul.f32 %v207, %v554
    %v590 = vmul.f32 %v207, %v556
    %v591 = vmul.f32 %v207, %v558
    %v592 = vmul.f32 %v207, %v560
    %v593 = vmul.f32 %v210, %v554
    %v594 = vmul.f32 %v210, %v556
    %v595 = vmul.f32 %v210, %v558
    %v596 = vmul.f32 %v210, %v560
    %v597 = vmul.f32 %v215, %v554
    %v598 = vmul.f32 %v215, %v556
    %v599 = vmul.f32 %v215, %v558
    %v600 = vmul.f32 %v215, %v560
    %v601 = vmul.f32 %v218, %v554
    %v602 = vmul.f32 %v218, %v556
    %v603 = vmul.f32 %v218, %v558
    %v604 = vmul.f32 %v218, %v560
    %v605 = vmul.f32 %v223, %v554
    %v606 = vmul.f32 %v223, %v556
    %v607 = vmul.f32 %v223, %v558
    %v608 = vmul.f32 %v223, %v560
    %v609 = vmul.f32 %v226, %v554
    %v610 = vmul.f32 %v226, %v556
    %v611 = vmul.f32 %v226, %v558
    %v612 = vmul.f32 %v226, %v560
    %v613 = vmul.f32 %v231, %v554
    %v614 = vmul.f32 %v231, %v556
    %v615 = vmul.f32 %v231, %v558
    %v616 = vmul.f32 %v231, %v560
    %v617 = vmul.f32 %v234, %v554
    %v618 = vmul.f32 %v234, %v556
    %v619 = vmul.f32 %v234, %v558
    %v620 = vmul.f32 %v234, %v560
    %v621 = vmul.f32 %v239, %v554
    %v622 = vmul.f32 %v239, %v556
    %v623 = vmul.f32 %v239, %v558
    %v624 = vmul.f32 %v239, %v560
    %v625 = vmul.f32 %v242, %v554
    %v626 = vmul.f32 %v242, %v556
    %v627 = vmul.f32 %v242, %v558
    %v628 = vmul.f32 %v242, %v560
    %v629 = vmul.f32 %v247, %v554
    %v630 = vmul.f32 %v247, %v556
    %v631 = vmul.f32 %v247, %v558
    %v632 = vmul.f32 %v247, %v560
    %v633 = vmul.f32 %v250, %v554
    %v634 = vmul.f32 %v250, %v556
    %v635 = vmul.f32 %v250, %v558
    %v636 = vmul.f32 %v250, %v560
    %v637 = vmul.f32 %v255, %v554
    %v638 = vmul.f32 %v255, %v556
    %v639 = vmul.f32 %v255, %v558
    %v640 = vmul.f32 %v255, %v560
    %v641 = vmul.f32 %v258, %v554
    %v642 = vmul.f32 %v258, %v556
    %v643 = vmul.f32 %v258, %v558
    %v644 = vmul.f32 %v258, %v560
    %v645 = vmul.f32 %v263, %v554
    %v646 = vmul.f32 %v263, %v556
    %v647 = vmul.f32 %v263, %v558
    %v648 = vmul.f32 %v263, %v560
    %v649 = vmul.f32 %v266, %v554
    %v650 = vmul.f32 %v266, %v556
    %v651 = vmul.f32 %v266, %v558
    %v652 = vmul.f32 %v266, %v560
    %v653 = vmul.f32 %v271, %v554
    %v654 = vmul.f32 %v271, %v556
    %v655 = vmul.f32 %v271, %v558
    %v656 = vmul.f32 %v271, %v560
    %v657 = vmul.f32 %v274, %v554
    %v658 = vmul.f32 %v274, %v556
    %v659 = vmul.f32 %v274, %v558
    %v660 = vmul.f32 %v274, %v560
    %v661 = vmul.f32 %v279, %v554
    %v662 = vmul.f32 %v279, %v556
    %v663 = vmul.f32 %v279, %v558
    %v664 = vmul.f32 %v279, %v560
    %v665 = vmul.f32 %v282, %v554
    %v666 = vmul.f32 %v282, %v556
    %v667 = vmul.f32 %v282, %v558
    %v668 = vmul.f32 %v282, %v560
    %v669 = vmul.f32 %v287, %v554
    %v670 = vmul.f32 %v287, %v556
    %v671 = vmul.f32 %v287, %v558
    %v672 = vmul.f32 %v287, %v560
    %v673 = vmul.f32 %v290, %v554
    %v674 = vmul.f32 %v290, %v556
    %v675 = vmul.f32 %v290, %v558
    %v676 = vmul.f32 %v290, %v560
    %v677 = vmul.f32 %v295, %v554
    %v678 = vmul.f32 %v295, %v556
    %v679 = vmul.f32 %v295, %v558
    %v680 = vmul.f32 %v295, %v560
    %v681 = vmul.f32 %v298, %v554
    %v682 = vmul.f32 %v298, %v556
    %v683 = vmul.f32 %v298, %v558
    %v684 = vmul.f32 %v298, %v560
    %v685 = vmul.f32 %v303, %v554
    %v686 = vmul.f32 %v303, %v556
    %v687 = vmul.f32 %v303, %v558
    %v688 = vmul.f32 %v303, %v560
    %v689 = vmul.f32 %v306, %v554
    %v690 = vmul.f32 %v306, %v556
    %v691 = vmul.f32 %v306, %v558
    %v692 = vmul.f32 %v306, %v560
    %v693 = vpack.c.bf16 %v566, %v565
    %v694 = vpack.c.bf16 %v568, %v567
    %v695 = vpack.c.bf16 %v570, %v569
    %v696 = vpack.c.bf16 %v572, %v571
    %v697 = vpack.c.bf16 %v574, %v573
    %v698 = vpack.c.bf16 %v576, %v575
    %v699 = vpack.c.bf16 %v578, %v577
    %v700 = vpack.c.bf16 %v580, %v579
    %v701 = vpack.c.bf16 %v582, %v581
    %v702 = vpack.c.bf16 %v584, %v583
    %v703 = vpack.c.bf16 %v586, %v585
    %v704 = vpack.c.bf16 %v588, %v587
    %v705 = vpack.c.bf16 %v590, %v589
    %v706 = vpack.c.bf16 %v592, %v591
    %v707 = vpack.c.bf16 %v594, %v593
    %v708 = vpack.c.bf16 %v596, %v595
    %v709 = vpack.c.bf16 %v598, %v597
    %v710 = vpack.c.bf16 %v600, %v599
    %v711 = vpack.c.bf16 %v602, %v601
    %v712 = vpack.c.bf16 %v604, %v603
    %v713 = vpack.c.bf16 %v606, %v605
    %v714 = vpack.c.bf16 %v608, %v607
    %v715 = vpack.c.bf16 %v610, %v609
    %v716 = vpack.c.bf16 %v612, %v611
    %v717 = vpack.c.bf16 %v614, %v613
    %v718 = vpack.c.bf16 %v616, %v615
    %v719 = vpack.c.bf16 %v618, %v617
    %v720 = vpack.c.bf16 %v620, %v619
    %v721 = vpack.c.bf16 %v622, %v621
    %v722 = vpack.c.bf16 %v624, %v623
    %v723 = vpack.c.bf16 %v626, %v625
    %v724 = vpack.c.bf16 %v628, %v627
    %v725 = vpack.c.bf16 %v630, %v629
    %v726 = vpack.c.bf16 %v632, %v631
    %v727 = vpack.c.bf16 %v634, %v633
    %v728 = vpack.c.bf16 %v636, %v635
    %v729 = vpack.c.bf16 %v638, %v637
    %v730 = vpack.c.bf16 %v640, %v639
    %v731 = vpack.c.bf16 %v642, %v641
    %v732 = vpack.c.bf16 %v644, %v643
    %v733 = vpack.c.bf16 %v646, %v645
    %v734 = vpack.c.bf16 %v648, %v647
    %v735 = vpack.c.bf16 %v650, %v649
    %v736 = vpack.c.bf16 %v652, %v651
    %v737 = vpack.c.bf16 %v654, %v653
    %v738 = vpack.c.bf16 %v656, %v655
    %v739 = vpack.c.bf16 %v658, %v657
    %v740 = vpack.c.bf16 %v660, %v659
    %v741 = vpack.c.bf16 %v662, %v661
    %v742 = vpack.c.bf16 %v664, %v663
    %v743 = vpack.c.bf16 %v666, %v665
    %v744 = vpack.c.bf16 %v668, %v667
    %v745 = vpack.c.bf16 %v670, %v669
    %v746 = vpack.c.bf16 %v672, %v671
    %v747 = vpack.c.bf16 %v674, %v673
    %v748 = vpack.c.bf16 %v676, %v675
    %v749 = vpack.c.bf16 %v678, %v677
    %v750 = vpack.c.bf16 %v680, %v679
    %v751 = vpack.c.bf16 %v682, %v681
    %v752 = vpack.c.bf16 %v684, %v683
    %v753 = vpack.c.bf16 %v686, %v685
    %v754 = vpack.c.bf16 %v688, %v687
    %v755 = vpack.c.bf16 %v690, %v689
    %v756 = vpack.c.bf16 %v692, %v691
    %v757 = vld [vmem:[%s1] sm:$0xff]
    %v758 = vld [vmem:[%s1 + $0x8] sm:$0xff]
    %v759 = vld [vmem:[%s1 + $0x10] sm:$0xff]
    %v760 = vld [vmem:[%s1 + $0x18] sm:$0xff]
    %v761 = vld [vmem:[%s1 + $0x20] sm:$0xff]
    %v762 = vld [vmem:[%s1 + $0x28] sm:$0xff]
    %v763 = vld [vmem:[%s1 + $0x30] sm:$0xff]
    %v764 = vld [vmem:[%s1 + $0x38] sm:$0xff]
    %v765 = vld [vmem:[%s1 + $0x40] sm:$0xff]
    %v766 = vld [vmem:[%s1 + $0x48] sm:$0xff]
    %v767 = vld [vmem:[%s1 + $0x50] sm:$0xff]
    %v768 = vld [vmem:[%s1 + $0x58] sm:$0xff]
    %v769 = vld [vmem:[%s1 + $0x60] sm:$0xff]
    %v770 = vld [vmem:[%s1 + $0x68] sm:$0xff]
    %v771 = vld [vmem:[%s1 + $0x70] sm:$0xff]
    %v772 = vld [vmem:[%s1 + $0x78] sm:$0xff]
    %v773 = vld [vmem:[%s1 + $0x80] sm:$0xff]
    %v774 = vld [vmem:[%s1 + $0x88] sm:$0xff]
    %v775 = vld [vmem:[%s1 + $0x90] sm:$0xff]
    %v776 = vld [vmem:[%s1 + $0x98] sm:$0xff]
    %v777 = vld [vmem:[%s1 + $0xa0] sm:$0xff]
    %v778 = vld [vmem:[%s1 + $0xa8] sm:$0xff]
    %v779 = vld [vmem:[%s1 + $0xb0] sm:$0xff]
    %v780 = vld [vmem:[%s1 + $0xb8] sm:$0xff]
    %v781 = vld [vmem:[%s1 + $0xc0] sm:$0xff]
    %v782 = vld [vmem:[%s1 + $0xc8] sm:$0xff]
    %v783 = vld [vmem:[%s1 + $0xd0] sm:$0xff]
    %v784 = vld [vmem:[%s1 + $0xd8] sm:$0xff]
    %v785 = vld [vmem:[%s1 + $0xe0] sm:$0xff]
    %v786 = vld [vmem:[%s1 + $0xe8] sm:$0xff]
    %v787 = vld [vmem:[%s1 + $0xf0] sm:$0xff]
    %v788 = vld [vmem:[%s1 + $0xf8] sm:$0xff]
    %791 = vrot.lane.b32.xlu0 %v489, 96
    %v792 = vpop.permute.xlu0 %791
    %793 = vrot.lane.b32.xlu0 %v490, 96
    %v794 = vpop.permute.xlu0 %793
    %v796 = vsel %vm99, %v313, 0
    %v799 = vsel %vm99, %v792, 0
    %v802 = vsel %vm99, %v794, 0
    %804 = vmatprep.subr.bf16.mxu0 0
    %805 = vmatpush1.bf16.xpose.msra.mxu0 0
    %806 = vmatprep.subr.bf16.mxu0 0
    %807 = vmatpush1.bf16.xpose.msra.mxu0 0
    %808 = vmatprep.subr.bf16.mxu0 0
    %809 = vmatpush1.bf16.xpose.msra.mxu0 0
    %810 = vmatprep.subr.bf16.mxu0 0
    %811 = vmatpush1.bf16.xpose.msra.mxu0 0
    %812 = vmatprep.subr.bf16.mxu0 0
    %813 = vmatpush1.bf16.xpose.msra.mxu0 0
    %814 = vmatprep.subr.bf16.mxu0 0
    %815 = vmatpush1.bf16.xpose.msra.mxu0 0
    %816 = vmatprep.subr.bf16.mxu0 0
    %817 = vmatpush1.bf16.xpose.msra.mxu0 %v802
    %818 = vmatprep.subr.bf16.mxu0 0
    %819 = vmatpush1.bf16.xpose.msra.mxu0 %v799
    %820 = vmatprep.subr.bf16.mxu0 0
    %821 = vmatpush2.bf16.xpose.msra.mxu0 0
    %822 = vmatprep.subr.bf16.mxu0 0
    %823 = vmatpush2.bf16.xpose.msra.mxu0 0
    %824 = vmatprep.subr.bf16.mxu0 0
    %825 = vmatpush2.bf16.xpose.msra.mxu0 0
    %826 = vmatprep.subr.bf16.mxu0 0
    %827 = vmatpush2.bf16.xpose.msra.mxu0 0
    %828 = vmatprep.subr.bf16.mxu0 0
    %829 = vmatpush2.bf16.xpose.msra.mxu0 0
    %830 = vmatprep.subr.bf16.mxu0 0
    %831 = vmatpush2.bf16.xpose.msra.mxu0 0
    %832 = vmatprep.subr.bf16.mxu0 0
    %833 = vmatpush2.bf16.xpose.msra.mxu0 0
    %834 = vmatprep.subr.bf16.mxu0 0
    %835 = vmatpush2.bf16.xpose.msra.mxu0 0
    %836 = vmatprep.mubr.bf16.mxu0 0
    %837 = vmatmul.mubr.bf16.gmra.mxu0 %v796
    %v838 = vpop.f32.mrf.mxu0
    %v839 = vadd.f32 %v757, %v838
    %v840 = vpop.f32.mrf.mxu0
    %v841 = vpop.f32.mrf.mxu0
    %v842 = vpop.f32.mrf.mxu0
    %843 = vdwg.mxu0
    %846 = vrot.lane.b32.xlu0 %v491, 96
    %v847 = vpop.permute.xlu0 %846
    %848 = vrot.lane.b32.xlu0 %v492, 96
    %v849 = vpop.permute.xlu0 %848
    %v851 = vsel %vm99, %v314, 0
    %v854 = vsel %vm99, %v847, 0
    %v857 = vsel %vm99, %v849, 0
    %859 = vmatprep.subr.bf16.mxu0 0
    %860 = vmatpush1.bf16.xpose.msra.mxu0 0
    %861 = vmatprep.subr.bf16.mxu0 0
    %862 = vmatpush1.bf16.xpose.msra.mxu0 0
    %863 = vmatprep.subr.bf16.mxu0 0
    %864 = vmatpush1.bf16.xpose.msra.mxu0 0
    %865 = vmatprep.subr.bf16.mxu0 0
    %866 = vmatpush1.bf16.xpose.msra.mxu0 0
    %867 = vmatprep.subr.bf16.mxu0 0
    %868 = vmatpush1.bf16.xpose.msra.mxu0 0
    %869 = vmatprep.subr.bf16.mxu0 0
    %870 = vmatpush1.bf16.xpose.msra.mxu0 0
    %871 = vmatprep.subr.bf16.mxu0 0
    %872 = vmatpush1.bf16.xpose.msra.mxu0 %v857
    %873 = vmatprep.subr.bf16.mxu0 0
    %874 = vmatpush1.bf16.xpose.msra.mxu0 %v854
    %875 = vmatprep.subr.bf16.mxu0 0
    %876 = vmatpush2.bf16.xpose.msra.mxu0 0
    %877 = vmatprep.subr.bf16.mxu0 0
    %878 = vmatpush2.bf16.xpose.msra.mxu0 0
    %879 = vmatprep.subr.bf16.mxu0 0
    %880 = vmatpush2.bf16.xpose.msra.mxu0 0
    %881 = vmatprep.subr.bf16.mxu0 0
    %882 = vmatpush2.bf16.xpose.msra.mxu0 0
    %883 = vmatprep.subr.bf16.mxu0 0
    %884 = vmatpush2.bf16.xpose.msra.mxu0 0
    %885 = vmatprep.subr.bf16.mxu0 0
    %886 = vmatpush2.bf16.xpose.msra.mxu0 0
    %887 = vmatprep.subr.bf16.mxu0 0
    %888 = vmatpush2.bf16.xpose.msra.mxu0 0
    %889 = vmatprep.subr.bf16.mxu0 0
    %890 = vmatpush2.bf16.xpose.msra.mxu0 0
    %891 = vmatprep.mubr.bf16.mxu0 0
    %892 = vmatmul.mubr.bf16.gmra.mxu0 %v851
    %v893 = vpop.f32.mrf.mxu0
    %v894 = vadd.f32 %v758, %v893
    %v895 = vpop.f32.mrf.mxu0
    %v896 = vpop.f32.mrf.mxu0
    %v897 = vpop.f32.mrf.mxu0
    %898 = vdwg.mxu0
    %901 = vrot.lane.b32.xlu0 %v493, 96
    %v902 = vpop.permute.xlu0 %901
    %903 = vrot.lane.b32.xlu0 %v494, 96
    %v904 = vpop.permute.xlu0 %903
    %v906 = vsel %vm99, %v315, 0
    %v909 = vsel %vm99, %v902, 0
    %v912 = vsel %vm99, %v904, 0
    %914 = vmatprep.subr.bf16.mxu0 0
    %915 = vmatpush1.bf16.xpose.msra.mxu0 0
    %916 = vmatprep.subr.bf16.mxu0 0
    %917 = vmatpush1.bf16.xpose.msra.mxu0 0
    %918 = vmatprep.subr.bf16.mxu0 0
    %919 = vmatpush1.bf16.xpose.msra.mxu0 0
    %920 = vmatprep.subr.bf16.mxu0 0
    %921 = vmatpush1.bf16.xpose.msra.mxu0 0
    %922 = vmatprep.subr.bf16.mxu0 0
    %923 = vmatpush1.bf16.xpose.msra.mxu0 0
    %924 = vmatprep.subr.bf16.mxu0 0
    %925 = vmatpush1.bf16.xpose.msra.mxu0 0
    %926 = vmatprep.subr.bf16.mxu0 0
    %927 = vmatpush1.bf16.xpose.msra.mxu0 %v912
    %928 = vmatprep.subr.bf16.mxu0 0
    %929 = vmatpush1.bf16.xpose.msra.mxu0 %v909
    %930 = vmatprep.subr.bf16.mxu0 0
    %931 = vmatpush2.bf16.xpose.msra.mxu0 0
    %932 = vmatprep.subr.bf16.mxu0 0
    %933 = vmatpush2.bf16.xpose.msra.mxu0 0
    %934 = vmatprep.subr.bf16.mxu0 0
    %935 = vmatpush2.bf16.xpose.msra.mxu0 0
    %936 = vmatprep.subr.bf16.mxu0 0
    %937 = vmatpush2.bf16.xpose.msra.mxu0 0
    %938 = vmatprep.subr.bf16.mxu0 0
    %939 = vmatpush2.bf16.xpose.msra.mxu0 0
    %940 = vmatprep.subr.bf16.mxu0 0
    %941 = vmatpush2.bf16.xpose.msra.mxu0 0
    %942 = vmatprep.subr.bf16.mxu0 0
    %943 = vmatpush2.bf16.xpose.msra.mxu0 0
    %944 = vmatprep.subr.bf16.mxu0 0
    %945 = vmatpush2.bf16.xpose.msra.mxu0 0
    %946 = vmatprep.mubr.bf16.mxu0 0
    %947 = vmatmul.mubr.bf16.gmra.mxu0 %v906
    %v948 = vpop.f32.mrf.mxu0
    %v949 = vadd.f32 %v759, %v948
    %v950 = vpop.f32.mrf.mxu0
    %v951 = vpop.f32.mrf.mxu0
    %v952 = vpop.f32.mrf.mxu0
    %953 = vdwg.mxu0
    %956 = vrot.lane.b32.xlu0 %v495, 96
    %v957 = vpop.permute.xlu0 %956
    %958 = vrot.lane.b32.xlu0 %v496, 96
    %v959 = vpop.permute.xlu0 %958
    %v961 = vsel %vm99, %v316, 0
    %v964 = vsel %vm99, %v957, 0
    %v967 = vsel %vm99, %v959, 0
    %969 = vmatprep.subr.bf16.mxu0 0
    %970 = vmatpush1.bf16.xpose.msra.mxu0 0
    %971 = vmatprep.subr.bf16.mxu0 0
    %972 = vmatpush1.bf16.xpose.msra.mxu0 0
    %973 = vmatprep.subr.bf16.mxu0 0
    %974 = vmatpush1.bf16.xpose.msra.mxu0 0
    %975 = vmatprep.subr.bf16.mxu0 0
    %976 = vmatpush1.bf16.xpose.msra.mxu0 0
    %977 = vmatprep.subr.bf16.mxu0 0
    %978 = vmatpush1.bf16.xpose.msra.mxu0 0
    %979 = vmatprep.subr.bf16.mxu0 0
    %980 = vmatpush1.bf16.xpose.msra.mxu0 0
    %981 = vmatprep.subr.bf16.mxu0 0
    %982 = vmatpush1.bf16.xpose.msra.mxu0 %v967
    %983 = vmatprep.subr.bf16.mxu0 0
    %984 = vmatpush1.bf16.xpose.msra.mxu0 %v964
    %985 = vmatprep.subr.bf16.mxu0 0
    %986 = vmatpush2.bf16.xpose.msra.mxu0 0
    %987 = vmatprep.subr.bf16.mxu0 0
    %988 = vmatpush2.bf16.xpose.msra.mxu0 0
    %989 = vmatprep.subr.bf16.mxu0 0
    %990 = vmatpush2.bf16.xpose.msra.mxu0 0
    %991 = vmatprep.subr.bf16.mxu0 0
    %992 = vmatpush2.bf16.xpose.msra.mxu0 0
    %993 = vmatprep.subr.bf16.mxu0 0
    %994 = vmatpush2.bf16.xpose.msra.mxu0 0
    %995 = vmatprep.subr.bf16.mxu0 0
    %996 = vmatpush2.bf16.xpose.msra.mxu0 0
    %997 = vmatprep.subr.bf16.mxu0 0
    %998 = vmatpush2.bf16.xpose.msra.mxu0 0
    %999 = vmatprep.subr.bf16.mxu0 0
    %1000 = vmatpush2.bf16.xpose.msra.mxu0 0
    %1001 = vmatprep.mubr.bf16.mxu0 0
    %1002 = vmatmul.mubr.bf16.gmra.mxu0 %v961
    %v1003 = vpop.f32.mrf.mxu0
    %v1004 = vadd.f32 %v760, %v1003
    %v1005 = vpop.f32.mrf.mxu0
    %v1006 = vpop.f32.mrf.mxu0
    %v1007 = vpop.f32.mrf.mxu0
    %1008 = vdwg.mxu0
    %1011 = vrot.lane.b32.xlu0 %v497, 96
    %v1012 = vpop.permute.xlu0 %1011
    %1013 = vrot.lane.b32.xlu0 %v498, 96
    %v1014 = vpop.permute.xlu0 %1013
    %v1016 = vsel %vm99, %v317, 0
    %v1019 = vsel %vm99, %v1012, 0
    %v1022 = vsel %vm99, %v1014, 0
    %1024 = vmatprep.subr.bf16.mxu0 0
    %1025 = vmatpush1.bf16.xpose.msra.mxu0 0
    %1026 = vmatprep.subr.bf16.mxu0 0
    %1027 = vmatpush1.bf16.xpose.msra.mxu0 0
    %1028 = vmatprep.subr.bf16.mxu0 0
    %1029 = vmatpush1.bf16.xpose.msra.mxu0 0
    %1030 = vmatprep.subr.bf16.mxu0 0
    %1031 = vmatpush1.bf16.xpose.msra.mxu0 0
    %1032 = vmatprep.subr.bf16.mxu0 0
    %1033 = vmatpush1.bf16.xpose.msra.mxu0 0
    %1034 = vmatprep.subr.bf16.mxu0 0
    %1035 = vmatpush1.bf16.xpose.msra.mxu0 0
    %1036 = vmatprep.subr.bf16.mxu0 0
    %1037 = vmatpush1.bf16.xpose.msra.mxu0 %v1022
    %1038 = vmatprep.subr.bf16.mxu0 0
    %1039 = vmatpush1.bf16.xpose.msra.mxu0 %v1019
    %1040 = vmatprep.subr.bf16.mxu0 0
    %1041 = vmatpush2.bf16.xpose.msra.mxu0 0
    %1042 = vmatprep.subr.bf16.mxu0 0
    %1043 = vmatpush2.bf16.xpose.msra.mxu0 0
    %1044 = vmatprep.subr.bf16.mxu0 0
    %1045 = vmatpush2.bf16.xpose.msra.mxu0 0
    %1046 = vmatprep.subr.bf16.mxu0 0
    %1047 = vmatpush2.bf16.xpose.msra.mxu0 0
    %1048 = vmatprep.subr.bf16.mxu0 0
    %1049 = vmatpush2.bf16.xpose.msra.mxu0 0
    %1050 = vmatprep.subr.bf16.mxu0 0
    %1051 = vmatpush2.bf16.xpose.msra.mxu0 0
    %1052 = vmatprep.subr.bf16.mxu0 0
    %1053 = vmatpush2.bf16.xpose.msra.mxu0 0
    %1054 = vmatprep.subr.bf16.mxu0 0
    %1055 = vmatpush2.bf16.xpose.msra.mxu0 0
    %1056 = vmatprep.mubr.bf16.mxu0 0
    %1057 = vmatmul.mubr.bf16.gmra.mxu0 %v1016
    %v1058 = vpop.f32.mrf.mxu0
    %v1059 = vadd.f32 %v761, %v1058
    %v1060 = vpop.f32.mrf.mxu0
    %v1061 = vpop.f32.mrf.mxu0
    %v1062 = vpop.f32.mrf.mxu0
    %1063 = vdwg.mxu0
    %1066 = vrot.lane.b32.xlu0 %v499, 96
    %v1067 = vpop.permute.xlu0 %1066
    %1068 = vrot.lane.b32.xlu0 %v500, 96
    %v1069 = vpop.permute.xlu0 %1068
    %v1071 = vsel %vm99, %v318, 0
    %v1074 = vsel %vm99, %v1067, 0
    %v1077 = vsel %vm99, %v1069, 0
    %1079 = vmatprep.subr.bf16.mxu0 0
    %1080 = vmatpush1.bf16.xpose.msra.mxu0 0
    %1081 = vmatprep.subr.bf16.mxu0 0
    %1082 = vmatpush1.bf16.xpose.msra.mxu0 0
    %1083 = vmatprep.subr.bf16.mxu0 0
    %1084 = vmatpush1.bf16.xpose.msra.mxu0 0
    %1085 = vmatprep.subr.bf16.mxu0 0
    %1086 = vmatpush1.bf16.xpose.msra.mxu0 0
    %1087 = vmatprep.subr.bf16.mxu0 0
    %1088 = vmatpush1.bf16.xpose.msra.mxu0 0
    %1089 = vmatprep.subr.bf16.mxu0 0
    %1090 = vmatpush1.bf16.xpose.msra.mxu0 0
    %1091 = vmatprep.subr.bf16.mxu0 0
    %1092 = vmatpush1.bf16.xpose.msra.mxu0 %v1077
    %1093 = vmatprep.subr.bf16.mxu0 0
    %1094 = vmatpush1.bf16.xpose.msra.mxu0 %v1074
    %1095 = vmatprep.subr.bf16.mxu0 0
    %1096 = vmatpush2.bf16.xpose.msra.mxu0 0
    %1097 = vmatprep.subr.bf16.mxu0 0
    %1098 = vmatpush2.bf16.xpose.msra.mxu0 0
    %1099 = vmatprep.subr.bf16.mxu0 0
    %1100 = vmatpush2.bf16.xpose.msra.mxu0 0
    %1101 = vmatprep.subr.bf16.mxu0 0
    %1102 = vmatpush2.bf16.xpose.msra.mxu0 0
    %1103 = vmatprep.subr.bf16.mxu0 0
    %1104 = vmatpush2.bf16.xpose.msra.mxu0 0
    %1105 = vmatprep.subr.bf16.mxu0 0
    %1106 = vmatpush2.bf16.xpose.msra.mxu0 0
    %1107 = vmatprep.subr.bf16.mxu0 0
    %1108 = vmatpush2.bf16.xpose.msra.mxu0 0
    %1109 = vmatprep.subr.bf16.mxu0 0
    %1110 = vmatpush2.bf16.xpose.msra.mxu0 0
    %1111 = vmatprep.mubr.bf16.mxu0 0
    %1112 = vmatmul.mubr.bf16.gmra.mxu0 %v1071
    %v1113 = vpop.f32.mrf.mxu0
    %v1114 = vadd.f32 %v762, %v1113
    %v1115 = vpop.f32.mrf.mxu0
    %v1116 = vpop.f32.mrf.mxu0
    %v1117 = vpop.f32.mrf.mxu0
    %1118 = vdwg.mxu0
    %1121 = vrot.lane.b32.xlu0 %v501, 96
    %v1122 = vpop.permute.xlu0 %1121
    %1123 = vrot.lane.b32.xlu0 %v502, 96
    %v1124 = vpop.permute.xlu0 %1123
    %v1126 = vsel %vm99, %v319, 0
    %v1129 = vsel %vm99, %v1122, 0
    %v1132 = vsel %vm99, %v1124, 0
    %1134 = vmatprep.subr.bf16.mxu0 0
    %1135 = vmatpush1.bf16.xpose.msra.mxu0 0
    %1136 = vmatprep.subr.bf16.mxu0 0
    %1137 = vmatpush1.bf16.xpose.msra.mxu0 0
    %1138 = vmatprep.subr.bf16.mxu0 0
    %1139 = vmatpush1.bf16.xpose.msra.mxu0 0
    %1140 = vmatprep.subr.bf16.mxu0 0
    %1141 = vmatpush1.bf16.xpose.msra.mxu0 0
    %1142 = vmatprep.subr.bf16.mxu0 0
    %1143 = vmatpush1.bf16.xpose.msra.mxu0 0
    %1144 = vmatprep.subr.bf16.mxu0 0
    %1145 = vmatpush1.bf16.xpose.msra.mxu0 0
    %1146 = vmatprep.subr.bf16.mxu0 0
    %1147 = vmatpush1.bf16.xpose.msra.mxu0 %v1132
    %1148 = vmatprep.subr.bf16.mxu0 0
    %1149 = vmatpush1.bf16.xpose.msra.mxu0 %v1129
    %1150 = vmatprep.subr.bf16.mxu0 0
    %1151 = vmatpush2.bf16.xpose.msra.mxu0 0
    %1152 = vmatprep.subr.bf16.mxu0 0
    %1153 = vmatpush2.bf16.xpose.msra.mxu0 0
    %1154 = vmatprep.subr.bf16.mxu0 0
    %1155 = vmatpush2.bf16.xpose.msra.mxu0 0
    %1156 = vmatprep.subr.bf16.mxu0 0
    %1157 = vmatpush2.bf16.xpose.msra.mxu0 0
    %1158 = vmatprep.subr.bf16.mxu0 0
    %1159 = vmatpush2.bf16.xpose.msra.mxu0 0
    %1160 = vmatprep.subr.bf16.mxu0 0
    %1161 = vmatpush2.bf16.xpose.msra.mxu0 0
    %1162 = vmatprep.subr.bf16.mxu0 0
    %1163 = vmatpush2.bf16.xpose.msra.mxu0 0
    %1164 = vmatprep.subr.bf16.mxu0 0
    %1165 = vmatpush2.bf16.xpose.msra.mxu0 0
    %1166 = vmatprep.mubr.bf16.mxu0 0
    %1167 = vmatmul.mubr.bf16.gmra.mxu0 %v1126
    %v1168 = vpop.f32.mrf.mxu0
    %v1169 = vadd.f32 %v763, %v1168
    %v1170 = vpop.f32.mrf.mxu0
    %v1171 = vpop.f32.mrf.mxu0
    %v1172 = vpop.f32.mrf.mxu0
    %1173 = vdwg.mxu0
    %1176 = vrot.lane.b32.xlu0 %v503, 96
    %v1177 = vpop.permute.xlu0 %1176
    %1178 = vrot.lane.b32.xlu0 %v504, 96
    %v1179 = vpop.permute.xlu0 %1178
    %v1181 = vsel %vm99, %v320, 0
    %v1184 = vsel %vm99, %v1177, 0
    %v1187 = vsel %vm99, %v1179, 0
    %1189 = vmatprep.subr.bf16.mxu0 0
    %1190 = vmatpush1.bf16.xpose.msra.mxu0 0
    %1191 = vmatprep.subr.bf16.mxu0 0
    %1192 = vmatpush1.bf16.xpose.msra.mxu0 0
    %1193 = vmatprep.subr.bf16.mxu0 0
    %1194 = vmatpush1.bf16.xpose.msra.mxu0 0
    %1195 = vmatprep.subr.bf16.mxu0 0
    %1196 = vmatpush1.bf16.xpose.msra.mxu0 0
    %1197 = vmatprep.subr.bf16.mxu0 0
    %1198 = vmatpush1.bf16.xpose.msra.mxu0 0
    %1199 = vmatprep.subr.bf16.mxu0 0
    %1200 = vmatpush1.bf16.xpose.msra.mxu0 0
    %1201 = vmatprep.subr.bf16.mxu0 0
    %1202 = vmatpush1.bf16.xpose.msra.mxu0 %v1187
    %1203 = vmatprep.subr.bf16.mxu0 0
    %1204 = vmatpush1.bf16.xpose.msra.mxu0 %v1184
    %1205 = vmatprep.subr.bf16.mxu0 0
    %1206 = vmatpush2.bf16.xpose.msra.mxu0 0
    %1207 = vmatprep.subr.bf16.mxu0 0
    %1208 = vmatpush2.bf16.xpose.msra.mxu0 0
    %1209 = vmatprep.subr.bf16.mxu0 0
    %1210 = vmatpush2.bf16.xpose.msra.mxu0 0
    %1211 = vmatprep.subr.bf16.mxu0 0
    %1212 = vmatpush2.bf16.xpose.msra.mxu0 0
    %1213 = vmatprep.subr.bf16.mxu0 0
    %1214 = vmatpush2.bf16.xpose.msra.mxu0 0
    %1215 = vmatprep.subr.bf16.mxu0 0
    %1216 = vmatpush2.bf16.xpose.msra.mxu0 0
    %1217 = vmatprep.subr.bf16.mxu0 0
    %1218 = vmatpush2.bf16.xpose.msra.mxu0 0
    %1219 = vmatprep.subr.bf16.mxu0 0
    %1220 = vmatpush2.bf16.xpose.msra.mxu0 0
    %1221 = vmatprep.mubr.bf16.mxu0 0
    %1222 = vmatmul.mubr.bf16.gmra.mxu0 %v1181
    %v1223 = vpop.f32.mrf.mxu0
    %v1224 = vadd.f32 %v764, %v1223
    %v1225 = vpop.f32.mrf.mxu0
    %v1226 = vpop.f32.mrf.mxu0
    %v1227 = vpop.f32.mrf.mxu0
    %1228 = vdwg.mxu0
    %1231 = vrot.lane.b32.xlu0 %v505, 96
    %v1232 = vpop.permute.xlu0 %1231
    %1233 = vrot.lane.b32.xlu0 %v506, 96
    %v1234 = vpop.permute.xlu0 %1233
    %v1236 = vsel %vm99, %v321, 0
    %v1239 = vsel %vm99, %v1232, 0
    %v1242 = vsel %vm99, %v1234, 0
    %1244 = vmatprep.subr.bf16.mxu0 0
    %1245 = vmatpush1.bf16.xpose.msra.mxu0 0
    %1246 = vmatprep.subr.bf16.mxu0 0
    %1247 = vmatpush1.bf16.xpose.msra.mxu0 0
    %1248 = vmatprep.subr.bf16.mxu0 0
    %1249 = vmatpush1.bf16.xpose.msra.mxu0 0
    %1250 = vmatprep.subr.bf16.mxu0 0
    %1251 = vmatpush1.bf16.xpose.msra.mxu0 0
    %1252 = vmatprep.subr.bf16.mxu0 0
    %1253 = vmatpush1.bf16.xpose.msra.mxu0 0
    %1254 = vmatprep.subr.bf16.mxu0 0
    %1255 = vmatpush1.bf16.xpose.msra.mxu0 0
    %1256 = vmatprep.subr.bf16.mxu0 0
    %1257 = vmatpush1.bf16.xpose.msra.mxu0 %v1242
    %1258 = vmatprep.subr.bf16.mxu0 0
    %1259 = vmatpush1.bf16.xpose.msra.mxu0 %v1239
    %1260 = vmatprep.subr.bf16.mxu0 0
    %1261 = vmatpush2.bf16.xpose.msra.mxu0 0
    %1262 = vmatprep.subr.bf16.mxu0 0
    %1263 = vmatpush2.bf16.xpose.msra.mxu0 0
    %1264 = vmatprep.subr.bf16.mxu0 0
    %1265 = vmatpush2.bf16.xpose.msra.mxu0 0
    %1266 = vmatprep.subr.bf16.mxu0 0
    %1267 = vmatpush2.bf16.xpose.msra.mxu0 0
    %1268 = vmatprep.subr.bf16.mxu0 0
    %1269 = vmatpush2.bf16.xpose.msra.mxu0 0
    %1270 = vmatprep.subr.bf16.mxu0 0
    %1271 = vmatpush2.bf16.xpose.msra.mxu0 0
    %1272 = vmatprep.subr.bf16.mxu0 0
    %1273 = vmatpush2.bf16.xpose.msra.mxu0 0
    %1274 = vmatprep.subr.bf16.mxu0 0
    %1275 = vmatpush2.bf16.xpose.msra.mxu0 0
    %1276 = vmatprep.mubr.bf16.mxu0 0
    %1277 = vmatmul.mubr.bf16.gmra.mxu0 %v1236
    %v1278 = vpop.f32.mrf.mxu0
    %v1279 = vadd.f32 %v765, %v1278
    %v1280 = vpop.f32.mrf.mxu0
    %v1281 = vpop.f32.mrf.mxu0
    %v1282 = vpop.f32.mrf.mxu0
    %1283 = vdwg.mxu0
    %1286 = vrot.lane.b32.xlu0 %v507, 96
    %v1287 = vpop.permute.xlu0 %1286
    %1288 = vrot.lane.b32.xlu0 %v508, 96
    %v1289 = vpop.permute.xlu0 %1288
    %v1291 = vsel %vm99, %v322, 0
    %v1294 = vsel %vm99, %v1287, 0
    %v1297 = vsel %vm99, %v1289, 0
    %1299 = vmatprep.subr.bf16.mxu0 0
    %1300 = vmatpush1.bf16.xpose.msra.mxu0 0
    %1301 = vmatprep.subr.bf16.mxu0 0
    %1302 = vmatpush1.bf16.xpose.msra.mxu0 0
    %1303 = vmatprep.subr.bf16.mxu0 0
    %1304 = vmatpush1.bf16.xpose.msra.mxu0 0
    %1305 = vmatprep.subr.bf16.mxu0 0
    %1306 = vmatpush1.bf16.xpose.msra.mxu0 0
    %1307 = vmatprep.subr.bf16.mxu0 0
    %1308 = vmatpush1.bf16.xpose.msra.mxu0 0
    %1309 = vmatprep.subr.bf16.mxu0 0
    %1310 = vmatpush1.bf16.xpose.msra.mxu0 0
    %1311 = vmatprep.subr.bf16.mxu0 0
    %1312 = vmatpush1.bf16.xpose.msra.mxu0 %v1297
    %1313 = vmatprep.subr.bf16.mxu0 0
    %1314 = vmatpush1.bf16.xpose.msra.mxu0 %v1294
    %1315 = vmatprep.subr.bf16.mxu0 0
    %1316 = vmatpush2.bf16.xpose.msra.mxu0 0
    %1317 = vmatprep.subr.bf16.mxu0 0
    %1318 = vmatpush2.bf16.xpose.msra.mxu0 0
    %1319 = vmatprep.subr.bf16.mxu0 0
    %1320 = vmatpush2.bf16.xpose.msra.mxu0 0
    %1321 = vmatprep.subr.bf16.mxu0 0
    %1322 = vmatpush2.bf16.xpose.msra.mxu0 0
    %1323 = vmatprep.subr.bf16.mxu0 0
    %1324 = vmatpush2.bf16.xpose.msra.mxu0 0
    %1325 = vmatprep.subr.bf16.mxu0 0
    %1326 = vmatpush2.bf16.xpose.msra.mxu0 0
    %1327 = vmatprep.subr.bf16.mxu0 0
    %1328 = vmatpush2.bf16.xpose.msra.mxu0 0
    %1329 = vmatprep.subr.bf16.mxu0 0
    %1330 = vmatpush2.bf16.xpose.msra.mxu0 0
    %1331 = vmatprep.mubr.bf16.mxu0 0
    %1332 = vmatmul.mubr.bf16.gmra.mxu0 %v1291
    %v1333 = vpop.f32.mrf.mxu0
    %v1334 = vadd.f32 %v766, %v1333
    %v1335 = vpop.f32.mrf.mxu0
    %v1336 = vpop.f32.mrf.mxu0
    %v1337 = vpop.f32.mrf.mxu0
    %1338 = vdwg.mxu0
    %1341 = vrot.lane.b32.xlu0 %v509, 96
    %v1342 = vpop.permute.xlu0 %1341
    %1343 = vrot.lane.b32.xlu0 %v510, 96
    %v1344 = vpop.permute.xlu0 %1343
    %v1346 = vsel %vm99, %v323, 0
    %v1349 = vsel %vm99, %v1342, 0
    %v1352 = vsel %vm99, %v1344, 0
    %1354 = vmatprep.subr.bf16.mxu0 0
    %1355 = vmatpush1.bf16.xpose.msra.mxu0 0
    %1356 = vmatprep.subr.bf16.mxu0 0
    %1357 = vmatpush1.bf16.xpose.msra.mxu0 0
    %1358 = vmatprep.subr.bf16.mxu0 0
    %1359 = vmatpush1.bf16.xpose.msra.mxu0 0
    %1360 = vmatprep.subr.bf16.mxu0 0
    %1361 = vmatpush1.bf16.xpose.msra.mxu0 0
    %1362 = vmatprep.subr.bf16.mxu0 0
    %1363 = vmatpush1.bf16.xpose.msra.mxu0 0
    %1364 = vmatprep.subr.bf16.mxu0 0
    %1365 = vmatpush1.bf16.xpose.msra.mxu0 0
    %1366 = vmatprep.subr.bf16.mxu0 0
    %1367 = vmatpush1.bf16.xpose.msra.mxu0 %v1352
    %1368 = vmatprep.subr.bf16.mxu0 0
    %1369 = vmatpush1.bf16.xpose.msra.mxu0 %v1349
    %1370 = vmatprep.subr.bf16.mxu0 0
    %1371 = vmatpush2.bf16.xpose.msra.mxu0 0
    %1372 = vmatprep.subr.bf16.mxu0 0
    %1373 = vmatpush2.bf16.xpose.msra.mxu0 0
    %1374 = vmatprep.subr.bf16.mxu0 0
    %1375 = vmatpush2.bf16.xpose.msra.mxu0 0
    %1376 = vmatprep.subr.bf16.mxu0 0
    %1377 = vmatpush2.bf16.xpose.msra.mxu0 0
    %1378 = vmatprep.subr.bf16.mxu0 0
    %1379 = vmatpush2.bf16.xpose.msra.mxu0 0
    %1380 = vmatprep.subr.bf16.mxu0 0
    %1381 = vmatpush2.bf16.xpose.msra.mxu0 0
    %1382 = vmatprep.subr.bf16.mxu0 0
    %1383 = vmatpush2.bf16.xpose.msra.mxu0 0
    %1384 = vmatprep.subr.bf16.mxu0 0
    %1385 = vmatpush2.bf16.xpose.msra.mxu0 0
    %1386 = vmatprep.mubr.bf16.mxu0 0
    %1387 = vmatmul.mubr.bf16.gmra.mxu0 %v1346
    %v1388 = vpop.f32.mrf.mxu0
    %v1389 = vadd.f32 %v767, %v1388
    %v1390 = vpop.f32.mrf.mxu0
    %v1391 = vpop.f32.mrf.mxu0
    %v1392 = vpop.f32.mrf.mxu0
    %1393 = vdwg.mxu0
    %1396 = vrot.lane.b32.xlu0 %v511, 96
    %v1397 = vpop.permute.xlu0 %1396
    %1398 = vrot.lane.b32.xlu0 %v512, 96
    %v1399 = vpop.permute.xlu0 %1398
    %v1401 = vsel %vm99, %v324, 0
    %v1404 = vsel %vm99, %v1397, 0
    %v1407 = vsel %vm99, %v1399, 0
    %1409 = vmatprep.subr.bf16.mxu0 0
    %1410 = vmatpush1.bf16.xpose.msra.mxu0 0
    %1411 = vmatprep.subr.bf16.mxu0 0
    %1412 = vmatpush1.bf16.xpose.msra.mxu0 0
    %1413 = vmatprep.subr.bf16.mxu0 0
    %1414 = vmatpush1.bf16.xpose.msra.mxu0 0
    %1415 = vmatprep.subr.bf16.mxu0 0
    %1416 = vmatpush1.bf16.xpose.msra.mxu0 0
    %1417 = vmatprep.subr.bf16.mxu0 0
    %1418 = vmatpush1.bf16.xpose.msra.mxu0 0
    %1419 = vmatprep.subr.bf16.mxu0 0
    %1420 = vmatpush1.bf16.xpose.msra.mxu0 0
    %1421 = vmatprep.subr.bf16.mxu0 0
    %1422 = vmatpush1.bf16.xpose.msra.mxu0 %v1407
    %1423 = vmatprep.subr.bf16.mxu0 0
    %1424 = vmatpush1.bf16.xpose.msra.mxu0 %v1404
    %1425 = vmatprep.subr.bf16.mxu0 0
    %1426 = vmatpush2.bf16.xpose.msra.mxu0 0
    %1427 = vmatprep.subr.bf16.mxu0 0
    %1428 = vmatpush2.bf16.xpose.msra.mxu0 0
    %1429 = vmatprep.subr.bf16.mxu0 0
    %1430 = vmatpush2.bf16.xpose.msra.mxu0 0
    %1431 = vmatprep.subr.bf16.mxu0 0
    %1432 = vmatpush2.bf16.xpose.msra.mxu0 0
    %1433 = vmatprep.subr.bf16.mxu0 0
    %1434 = vmatpush2.bf16.xpose.msra.mxu0 0
    %1435 = vmatprep.subr.bf16.mxu0 0
    %1436 = vmatpush2.bf16.xpose.msra.mxu0 0
    %1437 = vmatprep.subr.bf16.mxu0 0
    %1438 = vmatpush2.bf16.xpose.msra.mxu0 0
    %1439 = vmatprep.subr.bf16.mxu0 0
    %1440 = vmatpush2.bf16.xpose.msra.mxu0 0
    %1441 = vmatprep.mubr.bf16.mxu0 0
    %1442 = vmatmul.mubr.bf16.gmra.mxu0 %v1401
    %v1443 = vpop.f32.mrf.mxu0
    %v1444 = vadd.f32 %v768, %v1443
    %v1445 = vpop.f32.mrf.mxu0
    %v1446 = vpop.f32.mrf.mxu0
    %v1447 = vpop.f32.mrf.mxu0
    %1448 = vdwg.mxu0
    %1451 = vrot.lane.b32.xlu0 %v513, 96
    %v1452 = vpop.permute.xlu0 %1451
    %1453 = vrot.lane.b32.xlu0 %v514, 96
    %v1454 = vpop.permute.xlu0 %1453
    %v1456 = vsel %vm99, %v325, 0
    %v1459 = vsel %vm99, %v1452, 0
    %v1462 = vsel %vm99, %v1454, 0
    %1464 = vmatprep.subr.bf16.mxu0 0
    %1465 = vmatpush1.bf16.xpose.msra.mxu0 0
    %1466 = vmatprep.subr.bf16.mxu0 0
    %1467 = vmatpush1.bf16.xpose.msra.mxu0 0
    %1468 = vmatprep.subr.bf16.mxu0 0
    %1469 = vmatpush1.bf16.xpose.msra.mxu0 0
    %1470 = vmatprep.subr.bf16.mxu0 0
    %1471 = vmatpush1.bf16.xpose.msra.mxu0 0
    %1472 = vmatprep.subr.bf16.mxu0 0
    %1473 = vmatpush1.bf16.xpose.msra.mxu0 0
    %1474 = vmatprep.subr.bf16.mxu0 0
    %1475 = vmatpush1.bf16.xpose.msra.mxu0 0
    %1476 = vmatprep.subr.bf16.mxu0 0
    %1477 = vmatpush1.bf16.xpose.msra.mxu0 %v1462
    %1478 = vmatprep.subr.bf16.mxu0 0
    %1479 = vmatpush1.bf16.xpose.msra.mxu0 %v1459
    %1480 = vmatprep.subr.bf16.mxu0 0
    %1481 = vmatpush2.bf16.xpose.msra.mxu0 0
    %1482 = vmatprep.subr.bf16.mxu0 0
    %1483 = vmatpush2.bf16.xpose.msra.mxu0 0
    %1484 = vmatprep.subr.bf16.mxu0 0
    %1485 = vmatpush2.bf16.xpose.msra.mxu0 0
    %1486 = vmatprep.subr.bf16.mxu0 0
    %1487 = vmatpush2.bf16.xpose.msra.mxu0 0
    %1488 = vmatprep.subr.bf16.mxu0 0
    %1489 = vmatpush2.bf16.xpose.msra.mxu0 0
    %1490 = vmatprep.subr.bf16.mxu0 0
    %1491 = vmatpush2.bf16.xpose.msra.mxu0 0
    %1492 = vmatprep.subr.bf16.mxu0 0
    %1493 = vmatpush2.bf16.xpose.msra.mxu0 0
    %1494 = vmatprep.subr.bf16.mxu0 0
    %1495 = vmatpush2.bf16.xpose.msra.mxu0 0
    %1496 = vmatprep.mubr.bf16.mxu0 0
    %1497 = vmatmul.mubr.bf16.gmra.mxu0 %v1456
    %v1498 = vpop.f32.mrf.mxu0
    %v1499 = vadd.f32 %v769, %v1498
    %v1500 = vpop.f32.mrf.mxu0
    %v1501 = vpop.f32.mrf.mxu0
    %v1502 = vpop.f32.mrf.mxu0
    %1503 = vdwg.mxu0
    %1506 = vrot.lane.b32.xlu0 %v515, 96
    %v1507 = vpop.permute.xlu0 %1506
    %1508 = vrot.lane.b32.xlu0 %v516, 96
    %v1509 = vpop.permute.xlu0 %1508
    %v1511 = vsel %vm99, %v326, 0
    %v1514 = vsel %vm99, %v1507, 0
    %v1517 = vsel %vm99, %v1509, 0
    %1519 = vmatprep.subr.bf16.mxu0 0
    %1520 = vmatpush1.bf16.xpose.msra.mxu0 0
    %1521 = vmatprep.subr.bf16.mxu0 0
    %1522 = vmatpush1.bf16.xpose.msra.mxu0 0
    %1523 = vmatprep.subr.bf16.mxu0 0
    %1524 = vmatpush1.bf16.xpose.msra.mxu0 0
    %1525 = vmatprep.subr.bf16.mxu0 0
    %1526 = vmatpush1.bf16.xpose.msra.mxu0 0
    %1527 = vmatprep.subr.bf16.mxu0 0
    %1528 = vmatpush1.bf16.xpose.msra.mxu0 0
    %1529 = vmatprep.subr.bf16.mxu0 0
    %1530 = vmatpush1.bf16.xpose.msra.mxu0 0
    %1531 = vmatprep.subr.bf16.mxu0 0
    %1532 = vmatpush1.bf16.xpose.msra.mxu0 %v1517
    %1533 = vmatprep.subr.bf16.mxu0 0
    %1534 = vmatpush1.bf16.xpose.msra.mxu0 %v1514
    %1535 = vmatprep.subr.bf16.mxu0 0
    %1536 = vmatpush2.bf16.xpose.msra.mxu0 0
    %1537 = vmatprep.subr.bf16.mxu0 0
    %1538 = vmatpush2.bf16.xpose.msra.mxu0 0
    %1539 = vmatprep.subr.bf16.mxu0 0
    %1540 = vmatpush2.bf16.xpose.msra.mxu0 0
    %1541 = vmatprep.subr.bf16.mxu0 0
    %1542 = vmatpush2.bf16.xpose.msra.mxu0 0
    %1543 = vmatprep.subr.bf16.mxu0 0
    %1544 = vmatpush2.bf16.xpose.msra.mxu0 0
    %1545 = vmatprep.subr.bf16.mxu0 0
    %1546 = vmatpush2.bf16.xpose.msra.mxu0 0
    %1547 = vmatprep.subr.bf16.mxu0 0
    %1548 = vmatpush2.bf16.xpose.msra.mxu0 0
    %1549 = vmatprep.subr.bf16.mxu0 0
    %1550 = vmatpush2.bf16.xpose.msra.mxu0 0
    %1551 = vmatprep.mubr.bf16.mxu0 0
    %1552 = vmatmul.mubr.bf16.gmra.mxu0 %v1511
    %v1553 = vpop.f32.mrf.mxu0
    %v1554 = vadd.f32 %v770, %v1553
    %v1555 = vpop.f32.mrf.mxu0
    %v1556 = vpop.f32.mrf.mxu0
    %v1557 = vpop.f32.mrf.mxu0
    %1558 = vdwg.mxu0
    %1561 = vrot.lane.b32.xlu0 %v517, 96
    %v1562 = vpop.permute.xlu0 %1561
    %1563 = vrot.lane.b32.xlu0 %v518, 96
    %v1564 = vpop.permute.xlu0 %1563
    %v1566 = vsel %vm99, %v327, 0
    %v1569 = vsel %vm99, %v1562, 0
    %v1572 = vsel %vm99, %v1564, 0
    %1574 = vmatprep.subr.bf16.mxu0 0
    %1575 = vmatpush1.bf16.xpose.msra.mxu0 0
    %1576 = vmatprep.subr.bf16.mxu0 0
    %1577 = vmatpush1.bf16.xpose.msra.mxu0 0
    %1578 = vmatprep.subr.bf16.mxu0 0
    %1579 = vmatpush1.bf16.xpose.msra.mxu0 0
    %1580 = vmatprep.subr.bf16.mxu0 0
    %1581 = vmatpush1.bf16.xpose.msra.mxu0 0
    %1582 = vmatprep.subr.bf16.mxu0 0
    %1583 = vmatpush1.bf16.xpose.msra.mxu0 0
    %1584 = vmatprep.subr.bf16.mxu0 0
    %1585 = vmatpush1.bf16.xpose.msra.mxu0 0
    %1586 = vmatprep.subr.bf16.mxu0 0
    %1587 = vmatpush1.bf16.xpose.msra.mxu0 %v1572
    %1588 = vmatprep.subr.bf16.mxu0 0
    %1589 = vmatpush1.bf16.xpose.msra.mxu0 %v1569
    %1590 = vmatprep.subr.bf16.mxu0 0
    %1591 = vmatpush2.bf16.xpose.msra.mxu0 0
    %1592 = vmatprep.subr.bf16.mxu0 0
    %1593 = vmatpush2.bf16.xpose.msra.mxu0 0
    %1594 = vmatprep.subr.bf16.mxu0 0
    %1595 = vmatpush2.bf16.xpose.msra.mxu0 0
    %1596 = vmatprep.subr.bf16.mxu0 0
    %1597 = vmatpush2.bf16.xpose.msra.mxu0 0
    %1598 = vmatprep.subr.bf16.mxu0 0
    %1599 = vmatpush2.bf16.xpose.msra.mxu0 0
    %1600 = vmatprep.subr.bf16.mxu0 0
    %1601 = vmatpush2.bf16.xpose.msra.mxu0 0
    %1602 = vmatprep.subr.bf16.mxu0 0
    %1603 = vmatpush2.bf16.xpose.msra.mxu0 0
    %1604 = vmatprep.subr.bf16.mxu0 0
    %1605 = vmatpush2.bf16.xpose.msra.mxu0 0
    %1606 = vmatprep.mubr.bf16.mxu0 0
    %1607 = vmatmul.mubr.bf16.gmra.mxu0 %v1566
    %v1608 = vpop.f32.mrf.mxu0
    %v1609 = vadd.f32 %v771, %v1608
    %v1610 = vpop.f32.mrf.mxu0
    %v1611 = vpop.f32.mrf.mxu0
    %v1612 = vpop.f32.mrf.mxu0
    %1613 = vdwg.mxu0
    %1616 = vrot.lane.b32.xlu0 %v519, 96
    %v1617 = vpop.permute.xlu0 %1616
    %1618 = vrot.lane.b32.xlu0 %v520, 96
    %v1619 = vpop.permute.xlu0 %1618
    %v1621 = vsel %vm99, %v328, 0
    %v1624 = vsel %vm99, %v1617, 0
    %v1627 = vsel %vm99, %v1619, 0
    %1629 = vmatprep.subr.bf16.mxu0 0
    %1630 = vmatpush1.bf16.xpose.msra.mxu0 0
    %1631 = vmatprep.subr.bf16.mxu0 0
    %1632 = vmatpush1.bf16.xpose.msra.mxu0 0
    %1633 = vmatprep.subr.bf16.mxu0 0
    %1634 = vmatpush1.bf16.xpose.msra.mxu0 0
    %1635 = vmatprep.subr.bf16.mxu0 0
    %1636 = vmatpush1.bf16.xpose.msra.mxu0 0
    %1637 = vmatprep.subr.bf16.mxu0 0
    %1638 = vmatpush1.bf16.xpose.msra.mxu0 0
    %1639 = vmatprep.subr.bf16.mxu0 0
    %1640 = vmatpush1.bf16.xpose.msra.mxu0 0
    %1641 = vmatprep.subr.bf16.mxu0 0
    %1642 = vmatpush1.bf16.xpose.msra.mxu0 %v1627
    %1643 = vmatprep.subr.bf16.mxu0 0
    %1644 = vmatpush1.bf16.xpose.msra.mxu0 %v1624
    %1645 = vmatprep.subr.bf16.mxu0 0
    %1646 = vmatpush2.bf16.xpose.msra.mxu0 0
    %1647 = vmatprep.subr.bf16.mxu0 0
    %1648 = vmatpush2.bf16.xpose.msra.mxu0 0
    %1649 = vmatprep.subr.bf16.mxu0 0
    %1650 = vmatpush2.bf16.xpose.msra.mxu0 0
    %1651 = vmatprep.subr.bf16.mxu0 0
    %1652 = vmatpush2.bf16.xpose.msra.mxu0 0
    %1653 = vmatprep.subr.bf16.mxu0 0
    %1654 = vmatpush2.bf16.xpose.msra.mxu0 0
    %1655 = vmatprep.subr.bf16.mxu0 0
    %1656 = vmatpush2.bf16.xpose.msra.mxu0 0
    %1657 = vmatprep.subr.bf16.mxu0 0
    %1658 = vmatpush2.bf16.xpose.msra.mxu0 0
    %1659 = vmatprep.subr.bf16.mxu0 0
    %1660 = vmatpush2.bf16.xpose.msra.mxu0 0
    %1661 = vmatprep.mubr.bf16.mxu0 0
    %1662 = vmatmul.mubr.bf16.gmra.mxu0 %v1621
    %v1663 = vpop.f32.mrf.mxu0
    %v1664 = vadd.f32 %v772, %v1663
    %v1665 = vpop.f32.mrf.mxu0
    %v1666 = vpop.f32.mrf.mxu0
    %v1667 = vpop.f32.mrf.mxu0
    %1668 = vdwg.mxu0
    %1671 = vrot.lane.b32.xlu0 %v521, 96
    %v1672 = vpop.permute.xlu0 %1671
    %1673 = vrot.lane.b32.xlu0 %v522, 96
    %v1674 = vpop.permute.xlu0 %1673
    %v1676 = vsel %vm99, %v329, 0
    %v1679 = vsel %vm99, %v1672, 0
    %v1682 = vsel %vm99, %v1674, 0
    %1684 = vmatprep.subr.bf16.mxu0 0
    %1685 = vmatpush1.bf16.xpose.msra.mxu0 0
    %1686 = vmatprep.subr.bf16.mxu0 0
    %1687 = vmatpush1.bf16.xpose.msra.mxu0 0
    %1688 = vmatprep.subr.bf16.mxu0 0
    %1689 = vmatpush1.bf16.xpose.msra.mxu0 0
    %1690 = vmatprep.subr.bf16.mxu0 0
    %1691 = vmatpush1.bf16.xpose.msra.mxu0 0
    %1692 = vmatprep.subr.bf16.mxu0 0
    %1693 = vmatpush1.bf16.xpose.msra.mxu0 0
    %1694 = vmatprep.subr.bf16.mxu0 0
    %1695 = vmatpush1.bf16.xpose.msra.mxu0 0
    %1696 = vmatprep.subr.bf16.mxu0 0
    %1697 = vmatpush1.bf16.xpose.msra.mxu0 %v1682
    %1698 = vmatprep.subr.bf16.mxu0 0
    %1699 = vmatpush1.bf16.xpose.msra.mxu0 %v1679
    %1700 = vmatprep.subr.bf16.mxu0 0
    %1701 = vmatpush2.bf16.xpose.msra.mxu0 0
    %1702 = vmatprep.subr.bf16.mxu0 0
    %1703 = vmatpush2.bf16.xpose.msra.mxu0 0
    %1704 = vmatprep.subr.bf16.mxu0 0
    %1705 = vmatpush2.bf16.xpose.msra.mxu0 0
    %1706 = vmatprep.subr.bf16.mxu0 0
    %1707 = vmatpush2.bf16.xpose.msra.mxu0 0
    %1708 = vmatprep.subr.bf16.mxu0 0
    %1709 = vmatpush2.bf16.xpose.msra.mxu0 0
    %1710 = vmatprep.subr.bf16.mxu0 0
    %1711 = vmatpush2.bf16.xpose.msra.mxu0 0
    %1712 = vmatprep.subr.bf16.mxu0 0
    %1713 = vmatpush2.bf16.xpose.msra.mxu0 0
    %1714 = vmatprep.subr.bf16.mxu0 0
    %1715 = vmatpush2.bf16.xpose.msra.mxu0 0
    %1716 = vmatprep.mubr.bf16.mxu0 0
    %1717 = vmatmul.mubr.bf16.gmra.mxu0 %v1676
    %v1718 = vpop.f32.mrf.mxu0
    %v1719 = vadd.f32 %v773, %v1718
    %v1720 = vpop.f32.mrf.mxu0
    %v1721 = vpop.f32.mrf.mxu0
    %v1722 = vpop.f32.mrf.mxu0
    %1723 = vdwg.mxu0
    %1726 = vrot.lane.b32.xlu0 %v523, 96
    %v1727 = vpop.permute.xlu0 %1726
    %1728 = vrot.lane.b32.xlu0 %v524, 96
    %v1729 = vpop.permute.xlu0 %1728
    %v1731 = vsel %vm99, %v330, 0
    %v1734 = vsel %vm99, %v1727, 0
    %v1737 = vsel %vm99, %v1729, 0
    %1739 = vmatprep.subr.bf16.mxu0 0
    %1740 = vmatpush1.bf16.xpose.msra.mxu0 0
    %1741 = vmatprep.subr.bf16.mxu0 0
    %1742 = vmatpush1.bf16.xpose.msra.mxu0 0
    %1743 = vmatprep.subr.bf16.mxu0 0
    %1744 = vmatpush1.bf16.xpose.msra.mxu0 0
    %1745 = vmatprep.subr.bf16.mxu0 0
    %1746 = vmatpush1.bf16.xpose.msra.mxu0 0
    %1747 = vmatprep.subr.bf16.mxu0 0
    %1748 = vmatpush1.bf16.xpose.msra.mxu0 0
    %1749 = vmatprep.subr.bf16.mxu0 0
    %1750 = vmatpush1.bf16.xpose.msra.mxu0 0
    %1751 = vmatprep.subr.bf16.mxu0 0
    %1752 = vmatpush1.bf16.xpose.msra.mxu0 %v1737
    %1753 = vmatprep.subr.bf16.mxu0 0
    %1754 = vmatpush1.bf16.xpose.msra.mxu0 %v1734
    %1755 = vmatprep.subr.bf16.mxu0 0
    %1756 = vmatpush2.bf16.xpose.msra.mxu0 0
    %1757 = vmatprep.subr.bf16.mxu0 0
    %1758 = vmatpush2.bf16.xpose.msra.mxu0 0
    %1759 = vmatprep.subr.bf16.mxu0 0
    %1760 = vmatpush2.bf16.xpose.msra.mxu0 0
    %1761 = vmatprep.subr.bf16.mxu0 0
    %1762 = vmatpush2.bf16.xpose.msra.mxu0 0
    %1763 = vmatprep.subr.bf16.mxu0 0
    %1764 = vmatpush2.bf16.xpose.msra.mxu0 0
    %1765 = vmatprep.subr.bf16.mxu0 0
    %1766 = vmatpush2.bf16.xpose.msra.mxu0 0
    %1767 = vmatprep.subr.bf16.mxu0 0
    %1768 = vmatpush2.bf16.xpose.msra.mxu0 0
    %1769 = vmatprep.subr.bf16.mxu0 0
    %1770 = vmatpush2.bf16.xpose.msra.mxu0 0
    %1771 = vmatprep.mubr.bf16.mxu0 0
    %1772 = vmatmul.mubr.bf16.gmra.mxu0 %v1731
    %v1773 = vpop.f32.mrf.mxu0
    %v1774 = vadd.f32 %v774, %v1773
    %v1775 = vpop.f32.mrf.mxu0
    %v1776 = vpop.f32.mrf.mxu0
    %v1777 = vpop.f32.mrf.mxu0
    %1778 = vdwg.mxu0
    %1781 = vrot.lane.b32.xlu0 %v525, 96
    %v1782 = vpop.permute.xlu0 %1781
    %1783 = vrot.lane.b32.xlu0 %v526, 96
    %v1784 = vpop.permute.xlu0 %1783
    %v1786 = vsel %vm99, %v331, 0
    %v1789 = vsel %vm99, %v1782, 0
    %v1792 = vsel %vm99, %v1784, 0
    %1794 = vmatprep.subr.bf16.mxu0 0
    %1795 = vmatpush1.bf16.xpose.msra.mxu0 0
    %1796 = vmatprep.subr.bf16.mxu0 0
    %1797 = vmatpush1.bf16.xpose.msra.mxu0 0
    %1798 = vmatprep.subr.bf16.mxu0 0
    %1799 = vmatpush1.bf16.xpose.msra.mxu0 0
    %1800 = vmatprep.subr.bf16.mxu0 0
    %1801 = vmatpush1.bf16.xpose.msra.mxu0 0
    %1802 = vmatprep.subr.bf16.mxu0 0
    %1803 = vmatpush1.bf16.xpose.msra.mxu0 0
    %1804 = vmatprep.subr.bf16.mxu0 0
    %1805 = vmatpush1.bf16.xpose.msra.mxu0 0
    %1806 = vmatprep.subr.bf16.mxu0 0
    %1807 = vmatpush1.bf16.xpose.msra.mxu0 %v1792
    %1808 = vmatprep.subr.bf16.mxu0 0
    %1809 = vmatpush1.bf16.xpose.msra.mxu0 %v1789
    %1810 = vmatprep.subr.bf16.mxu0 0
    %1811 = vmatpush2.bf16.xpose.msra.mxu0 0
    %1812 = vmatprep.subr.bf16.mxu0 0
    %1813 = vmatpush2.bf16.xpose.msra.mxu0 0
    %1814 = vmatprep.subr.bf16.mxu0 0
    %1815 = vmatpush2.bf16.xpose.msra.mxu0 0
    %1816 = vmatprep.subr.bf16.mxu0 0
    %1817 = vmatpush2.bf16.xpose.msra.mxu0 0
    %1818 = vmatprep.subr.bf16.mxu0 0
    %1819 = vmatpush2.bf16.xpose.msra.mxu0 0
    %1820 = vmatprep.subr.bf16.mxu0 0
    %1821 = vmatpush2.bf16.xpose.msra.mxu0 0
    %1822 = vmatprep.subr.bf16.mxu0 0
    %1823 = vmatpush2.bf16.xpose.msra.mxu0 0
    %1824 = vmatprep.subr.bf16.mxu0 0
    %1825 = vmatpush2.bf16.xpose.msra.mxu0 0
    %1826 = vmatprep.mubr.bf16.mxu0 0
    %1827 = vmatmul.mubr.bf16.gmra.mxu0 %v1786
    %v1828 = vpop.f32.mrf.mxu0
    %v1829 = vadd.f32 %v775, %v1828
    %v1830 = vpop.f32.mrf.mxu0
    %v1831 = vpop.f32.mrf.mxu0
    %v1832 = vpop.f32.mrf.mxu0
    %1833 = vdwg.mxu0
    %1836 = vrot.lane.b32.xlu0 %v527, 96
    %v1837 = vpop.permute.xlu0 %1836
    %1838 = vrot.lane.b32.xlu0 %v528, 96
    %v1839 = vpop.permute.xlu0 %1838
    %v1841 = vsel %vm99, %v332, 0
    %v1844 = vsel %vm99, %v1837, 0
    %v1847 = vsel %vm99, %v1839, 0
    %1849 = vmatprep.subr.bf16.mxu0 0
    %1850 = vmatpush1.bf16.xpose.msra.mxu0 0
    %1851 = vmatprep.subr.bf16.mxu0 0
    %1852 = vmatpush1.bf16.xpose.msra.mxu0 0
    %1853 = vmatprep.subr.bf16.mxu0 0
    %1854 = vmatpush1.bf16.xpose.msra.mxu0 0
    %1855 = vmatprep.subr.bf16.mxu0 0
    %1856 = vmatpush1.bf16.xpose.msra.mxu0 0
    %1857 = vmatprep.subr.bf16.mxu0 0
    %1858 = vmatpush1.bf16.xpose.msra.mxu0 0
    %1859 = vmatprep.subr.bf16.mxu0 0
    %1860 = vmatpush1.bf16.xpose.msra.mxu0 0
    %1861 = vmatprep.subr.bf16.mxu0 0
    %1862 = vmatpush1.bf16.xpose.msra.mxu0 %v1847
    %1863 = vmatprep.subr.bf16.mxu0 0
    %1864 = vmatpush1.bf16.xpose.msra.mxu0 %v1844
    %1865 = vmatprep.subr.bf16.mxu0 0
    %1866 = vmatpush2.bf16.xpose.msra.mxu0 0
    %1867 = vmatprep.subr.bf16.mxu0 0
    %1868 = vmatpush2.bf16.xpose.msra.mxu0 0
    %1869 = vmatprep.subr.bf16.mxu0 0
    %1870 = vmatpush2.bf16.xpose.msra.mxu0 0
    %1871 = vmatprep.subr.bf16.mxu0 0
    %1872 = vmatpush2.bf16.xpose.msra.mxu0 0
    %1873 = vmatprep.subr.bf16.mxu0 0
    %1874 = vmatpush2.bf16.xpose.msra.mxu0 0
    %1875 = vmatprep.subr.bf16.mxu0 0
    %1876 = vmatpush2.bf16.xpose.msra.mxu0 0
    %1877 = vmatprep.subr.bf16.mxu0 0
    %1878 = vmatpush2.bf16.xpose.msra.mxu0 0
    %1879 = vmatprep.subr.bf16.mxu0 0
    %1880 = vmatpush2.bf16.xpose.msra.mxu0 0
    %1881 = vmatprep.mubr.bf16.mxu0 0
    %1882 = vmatmul.mubr.bf16.gmra.mxu0 %v1841
    %v1883 = vpop.f32.mrf.mxu0
    %v1884 = vadd.f32 %v776, %v1883
    %v1885 = vpop.f32.mrf.mxu0
    %v1886 = vpop.f32.mrf.mxu0
    %v1887 = vpop.f32.mrf.mxu0
    %1888 = vdwg.mxu0
    %1891 = vrot.lane.b32.xlu0 %v529, 96
    %v1892 = vpop.permute.xlu0 %1891
    %1893 = vrot.lane.b32.xlu0 %v530, 96
    %v1894 = vpop.permute.xlu0 %1893
    %v1896 = vsel %vm99, %v333, 0
    %v1899 = vsel %vm99, %v1892, 0
    %v1902 = vsel %vm99, %v1894, 0
    %1904 = vmatprep.subr.bf16.mxu0 0
    %1905 = vmatpush1.bf16.xpose.msra.mxu0 0
    %1906 = vmatprep.subr.bf16.mxu0 0
    %1907 = vmatpush1.bf16.xpose.msra.mxu0 0
    %1908 = vmatprep.subr.bf16.mxu0 0
    %1909 = vmatpush1.bf16.xpose.msra.mxu0 0
    %1910 = vmatprep.subr.bf16.mxu0 0
    %1911 = vmatpush1.bf16.xpose.msra.mxu0 0
    %1912 = vmatprep.subr.bf16.mxu0 0
    %1913 = vmatpush1.bf16.xpose.msra.mxu0 0
    %1914 = vmatprep.subr.bf16.mxu0 0
    %1915 = vmatpush1.bf16.xpose.msra.mxu0 0
    %1916 = vmatprep.subr.bf16.mxu0 0
    %1917 = vmatpush1.bf16.xpose.msra.mxu0 %v1902
    %1918 = vmatprep.subr.bf16.mxu0 0
    %1919 = vmatpush1.bf16.xpose.msra.mxu0 %v1899
    %1920 = vmatprep.subr.bf16.mxu0 0
    %1921 = vmatpush2.bf16.xpose.msra.mxu0 0
    %1922 = vmatprep.subr.bf16.mxu0 0
    %1923 = vmatpush2.bf16.xpose.msra.mxu0 0
    %1924 = vmatprep.subr.bf16.mxu0 0
    %1925 = vmatpush2.bf16.xpose.msra.mxu0 0
    %1926 = vmatprep.subr.bf16.mxu0 0
    %1927 = vmatpush2.bf16.xpose.msra.mxu0 0
    %1928 = vmatprep.subr.bf16.mxu0 0
    %1929 = vmatpush2.bf16.xpose.msra.mxu0 0
    %1930 = vmatprep.subr.bf16.mxu0 0
    %1931 = vmatpush2.bf16.xpose.msra.mxu0 0
    %1932 = vmatprep.subr.bf16.mxu0 0
    %1933 = vmatpush2.bf16.xpose.msra.mxu0 0
    %1934 = vmatprep.subr.bf16.mxu0 0
    %1935 = vmatpush2.bf16.xpose.msra.mxu0 0
    %1936 = vmatprep.mubr.bf16.mxu0 0
    %1937 = vmatmul.mubr.bf16.gmra.mxu0 %v1896
    %v1938 = vpop.f32.mrf.mxu0
    %v1939 = vadd.f32 %v777, %v1938
    %v1940 = vpop.f32.mrf.mxu0
    %v1941 = vpop.f32.mrf.mxu0
    %v1942 = vpop.f32.mrf.mxu0
    %1943 = vdwg.mxu0
    %1946 = vrot.lane.b32.xlu0 %v531, 96
    %v1947 = vpop.permute.xlu0 %1946
    %1948 = vrot.lane.b32.xlu0 %v532, 96
    %v1949 = vpop.permute.xlu0 %1948
    %v1951 = vsel %vm99, %v334, 0
    %v1954 = vsel %vm99, %v1947, 0
    %v1957 = vsel %vm99, %v1949, 0
    %1959 = vmatprep.subr.bf16.mxu0 0
    %1960 = vmatpush1.bf16.xpose.msra.mxu0 0
    %1961 = vmatprep.subr.bf16.mxu0 0
    %1962 = vmatpush1.bf16.xpose.msra.mxu0 0
    %1963 = vmatprep.subr.bf16.mxu0 0
    %1964 = vmatpush1.bf16.xpose.msra.mxu0 0
    %1965 = vmatprep.subr.bf16.mxu0 0
    %1966 = vmatpush1.bf16.xpose.msra.mxu0 0
    %1967 = vmatprep.subr.bf16.mxu0 0
    %1968 = vmatpush1.bf16.xpose.msra.mxu0 0
    %1969 = vmatprep.subr.bf16.mxu0 0
    %1970 = vmatpush1.bf16.xpose.msra.mxu0 0
    %1971 = vmatprep.subr.bf16.mxu0 0
    %1972 = vmatpush1.bf16.xpose.msra.mxu0 %v1957
    %1973 = vmatprep.subr.bf16.mxu0 0
    %1974 = vmatpush1.bf16.xpose.msra.mxu0 %v1954
    %1975 = vmatprep.subr.bf16.mxu0 0
    %1976 = vmatpush2.bf16.xpose.msra.mxu0 0
    %1977 = vmatprep.subr.bf16.mxu0 0
    %1978 = vmatpush2.bf16.xpose.msra.mxu0 0
    %1979 = vmatprep.subr.bf16.mxu0 0
    %1980 = vmatpush2.bf16.xpose.msra.mxu0 0
    %1981 = vmatprep.subr.bf16.mxu0 0
    %1982 = vmatpush2.bf16.xpose.msra.mxu0 0
    %1983 = vmatprep.subr.bf16.mxu0 0
    %1984 = vmatpush2.bf16.xpose.msra.mxu0 0
    %1985 = vmatprep.subr.bf16.mxu0 0
    %1986 = vmatpush2.bf16.xpose.msra.mxu0 0
    %1987 = vmatprep.subr.bf16.mxu0 0
    %1988 = vmatpush2.bf16.xpose.msra.mxu0 0
    %1989 = vmatprep.subr.bf16.mxu0 0
    %1990 = vmatpush2.bf16.xpose.msra.mxu0 0
    %1991 = vmatprep.mubr.bf16.mxu0 0
    %1992 = vmatmul.mubr.bf16.gmra.mxu0 %v1951
    %v1993 = vpop.f32.mrf.mxu0
    %v1994 = vadd.f32 %v778, %v1993
    %v1995 = vpop.f32.mrf.mxu0
    %v1996 = vpop.f32.mrf.mxu0
    %v1997 = vpop.f32.mrf.mxu0
    %1998 = vdwg.mxu0
    %2001 = vrot.lane.b32.xlu0 %v533, 96
    %v2002 = vpop.permute.xlu0 %2001
    %2003 = vrot.lane.b32.xlu0 %v534, 96
    %v2004 = vpop.permute.xlu0 %2003
    %v2006 = vsel %vm99, %v335, 0
    %v2009 = vsel %vm99, %v2002, 0
    %v2012 = vsel %vm99, %v2004, 0
    %2014 = vmatprep.subr.bf16.mxu0 0
    %2015 = vmatpush1.bf16.xpose.msra.mxu0 0
    %2016 = vmatprep.subr.bf16.mxu0 0
    %2017 = vmatpush1.bf16.xpose.msra.mxu0 0
    %2018 = vmatprep.subr.bf16.mxu0 0
    %2019 = vmatpush1.bf16.xpose.msra.mxu0 0
    %2020 = vmatprep.subr.bf16.mxu0 0
    %2021 = vmatpush1.bf16.xpose.msra.mxu0 0
    %2022 = vmatprep.subr.bf16.mxu0 0
    %2023 = vmatpush1.bf16.xpose.msra.mxu0 0
    %2024 = vmatprep.subr.bf16.mxu0 0
    %2025 = vmatpush1.bf16.xpose.msra.mxu0 0
    %2026 = vmatprep.subr.bf16.mxu0 0
    %2027 = vmatpush1.bf16.xpose.msra.mxu0 %v2012
    %2028 = vmatprep.subr.bf16.mxu0 0
    %2029 = vmatpush1.bf16.xpose.msra.mxu0 %v2009
    %2030 = vmatprep.subr.bf16.mxu0 0
    %2031 = vmatpush2.bf16.xpose.msra.mxu0 0
    %2032 = vmatprep.subr.bf16.mxu0 0
    %2033 = vmatpush2.bf16.xpose.msra.mxu0 0
    %2034 = vmatprep.subr.bf16.mxu0 0
    %2035 = vmatpush2.bf16.xpose.msra.mxu0 0
    %2036 = vmatprep.subr.bf16.mxu0 0
    %2037 = vmatpush2.bf16.xpose.msra.mxu0 0
    %2038 = vmatprep.subr.bf16.mxu0 0
    %2039 = vmatpush2.bf16.xpose.msra.mxu0 0
    %2040 = vmatprep.subr.bf16.mxu0 0
    %2041 = vmatpush2.bf16.xpose.msra.mxu0 0
    %2042 = vmatprep.subr.bf16.mxu0 0
    %2043 = vmatpush2.bf16.xpose.msra.mxu0 0
    %2044 = vmatprep.subr.bf16.mxu0 0
    %2045 = vmatpush2.bf16.xpose.msra.mxu0 0
    %2046 = vmatprep.mubr.bf16.mxu0 0
    %2047 = vmatmul.mubr.bf16.gmra.mxu0 %v2006
    %v2048 = vpop.f32.mrf.mxu0
    %v2049 = vadd.f32 %v779, %v2048
    %v2050 = vpop.f32.mrf.mxu0
    %v2051 = vpop.f32.mrf.mxu0
    %v2052 = vpop.f32.mrf.mxu0
    %2053 = vdwg.mxu0
    %2056 = vrot.lane.b32.xlu0 %v535, 96
    %v2057 = vpop.permute.xlu0 %2056
    %2058 = vrot.lane.b32.xlu0 %v536, 96
    %v2059 = vpop.permute.xlu0 %2058
    %v2061 = vsel %vm99, %v336, 0
    %v2064 = vsel %vm99, %v2057, 0
    %v2067 = vsel %vm99, %v2059, 0
    %2069 = vmatprep.subr.bf16.mxu0 0
    %2070 = vmatpush1.bf16.xpose.msra.mxu0 0
    %2071 = vmatprep.subr.bf16.mxu0 0
    %2072 = vmatpush1.bf16.xpose.msra.mxu0 0
    %2073 = vmatprep.subr.bf16.mxu0 0
    %2074 = vmatpush1.bf16.xpose.msra.mxu0 0
    %2075 = vmatprep.subr.bf16.mxu0 0
    %2076 = vmatpush1.bf16.xpose.msra.mxu0 0
    %2077 = vmatprep.subr.bf16.mxu0 0
    %2078 = vmatpush1.bf16.xpose.msra.mxu0 0
    %2079 = vmatprep.subr.bf16.mxu0 0
    %2080 = vmatpush1.bf16.xpose.msra.mxu0 0
    %2081 = vmatprep.subr.bf16.mxu0 0
    %2082 = vmatpush1.bf16.xpose.msra.mxu0 %v2067
    %2083 = vmatprep.subr.bf16.mxu0 0
    %2084 = vmatpush1.bf16.xpose.msra.mxu0 %v2064
    %2085 = vmatprep.subr.bf16.mxu0 0
    %2086 = vmatpush2.bf16.xpose.msra.mxu0 0
    %2087 = vmatprep.subr.bf16.mxu0 0
    %2088 = vmatpush2.bf16.xpose.msra.mxu0 0
    %2089 = vmatprep.subr.bf16.mxu0 0
    %2090 = vmatpush2.bf16.xpose.msra.mxu0 0
    %2091 = vmatprep.subr.bf16.mxu0 0
    %2092 = vmatpush2.bf16.xpose.msra.mxu0 0
    %2093 = vmatprep.subr.bf16.mxu0 0
    %2094 = vmatpush2.bf16.xpose.msra.mxu0 0
    %2095 = vmatprep.subr.bf16.mxu0 0
    %2096 = vmatpush2.bf16.xpose.msra.mxu0 0
    %2097 = vmatprep.subr.bf16.mxu0 0
    %2098 = vmatpush2.bf16.xpose.msra.mxu0 0
    %2099 = vmatprep.subr.bf16.mxu0 0
    %2100 = vmatpush2.bf16.xpose.msra.mxu0 0
    %2101 = vmatprep.mubr.bf16.mxu0 0
    %2102 = vmatmul.mubr.bf16.gmra.mxu0 %v2061
    %v2103 = vpop.f32.mrf.mxu0
    %v2104 = vadd.f32 %v780, %v2103
    %v2105 = vpop.f32.mrf.mxu0
    %v2106 = vpop.f32.mrf.mxu0
    %v2107 = vpop.f32.mrf.mxu0
    %2108 = vdwg.mxu0
    %2111 = vrot.lane.b32.xlu0 %v537, 96
    %v2112 = vpop.permute.xlu0 %2111
    %2113 = vrot.lane.b32.xlu0 %v538, 96
    %v2114 = vpop.permute.xlu0 %2113
    %v2116 = vsel %vm99, %v337, 0
    %v2119 = vsel %vm99, %v2112, 0
    %v2122 = vsel %vm99, %v2114, 0
    %2124 = vmatprep.subr.bf16.mxu0 0
    %2125 = vmatpush1.bf16.xpose.msra.mxu0 0
    %2126 = vmatprep.subr.bf16.mxu0 0
    %2127 = vmatpush1.bf16.xpose.msra.mxu0 0
    %2128 = vmatprep.subr.bf16.mxu0 0
    %2129 = vmatpush1.bf16.xpose.msra.mxu0 0
    %2130 = vmatprep.subr.bf16.mxu0 0
    %2131 = vmatpush1.bf16.xpose.msra.mxu0 0
    %2132 = vmatprep.subr.bf16.mxu0 0
    %2133 = vmatpush1.bf16.xpose.msra.mxu0 0
    %2134 = vmatprep.subr.bf16.mxu0 0
    %2135 = vmatpush1.bf16.xpose.msra.mxu0 0
    %2136 = vmatprep.subr.bf16.mxu0 0
    %2137 = vmatpush1.bf16.xpose.msra.mxu0 %v2122
    %2138 = vmatprep.subr.bf16.mxu0 0
    %2139 = vmatpush1.bf16.xpose.msra.mxu0 %v2119
    %2140 = vmatprep.subr.bf16.mxu0 0
    %2141 = vmatpush2.bf16.xpose.msra.mxu0 0
    %2142 = vmatprep.subr.bf16.mxu0 0
    %2143 = vmatpush2.bf16.xpose.msra.mxu0 0
    %2144 = vmatprep.subr.bf16.mxu0 0
    %2145 = vmatpush2.bf16.xpose.msra.mxu0 0
    %2146 = vmatprep.subr.bf16.mxu0 0
    %2147 = vmatpush2.bf16.xpose.msra.mxu0 0
    %2148 = vmatprep.subr.bf16.mxu0 0
    %2149 = vmatpush2.bf16.xpose.msra.mxu0 0
    %2150 = vmatprep.subr.bf16.mxu0 0
    %2151 = vmatpush2.bf16.xpose.msra.mxu0 0
    %2152 = vmatprep.subr.bf16.mxu0 0
    %2153 = vmatpush2.bf16.xpose.msra.mxu0 0
    %2154 = vmatprep.subr.bf16.mxu0 0
    %2155 = vmatpush2.bf16.xpose.msra.mxu0 0
    %2156 = vmatprep.mubr.bf16.mxu0 0
    %2157 = vmatmul.mubr.bf16.gmra.mxu0 %v2116
    %v2158 = vpop.f32.mrf.mxu0
    %v2159 = vadd.f32 %v781, %v2158
    %v2160 = vpop.f32.mrf.mxu0
    %v2161 = vpop.f32.mrf.mxu0
    %v2162 = vpop.f32.mrf.mxu0
    %2163 = vdwg.mxu0
    %2166 = vrot.lane.b32.xlu0 %v539, 96
    %v2167 = vpop.permute.xlu0 %2166
    %2168 = vrot.lane.b32.xlu0 %v540, 96
    %v2169 = vpop.permute.xlu0 %2168
    %v2171 = vsel %vm99, %v338, 0
    %v2174 = vsel %vm99, %v2167, 0
    %v2177 = vsel %vm99, %v2169, 0
    %2179 = vmatprep.subr.bf16.mxu0 0
    %2180 = vmatpush1.bf16.xpose.msra.mxu0 0
    %2181 = vmatprep.subr.bf16.mxu0 0
    %2182 = vmatpush1.bf16.xpose.msra.mxu0 0
    %2183 = vmatprep.subr.bf16.mxu0 0
    %2184 = vmatpush1.bf16.xpose.msra.mxu0 0
    %2185 = vmatprep.subr.bf16.mxu0 0
    %2186 = vmatpush1.bf16.xpose.msra.mxu0 0
    %2187 = vmatprep.subr.bf16.mxu0 0
    %2188 = vmatpush1.bf16.xpose.msra.mxu0 0
    %2189 = vmatprep.subr.bf16.mxu0 0
    %2190 = vmatpush1.bf16.xpose.msra.mxu0 0
    %2191 = vmatprep.subr.bf16.mxu0 0
    %2192 = vmatpush1.bf16.xpose.msra.mxu0 %v2177
    %2193 = vmatprep.subr.bf16.mxu0 0
    %2194 = vmatpush1.bf16.xpose.msra.mxu0 %v2174
    %2195 = vmatprep.subr.bf16.mxu0 0
    %2196 = vmatpush2.bf16.xpose.msra.mxu0 0
    %2197 = vmatprep.subr.bf16.mxu0 0
    %2198 = vmatpush2.bf16.xpose.msra.mxu0 0
    %2199 = vmatprep.subr.bf16.mxu0 0
    %2200 = vmatpush2.bf16.xpose.msra.mxu0 0
    %2201 = vmatprep.subr.bf16.mxu0 0
    %2202 = vmatpush2.bf16.xpose.msra.mxu0 0
    %2203 = vmatprep.subr.bf16.mxu0 0
    %2204 = vmatpush2.bf16.xpose.msra.mxu0 0
    %2205 = vmatprep.subr.bf16.mxu0 0
    %2206 = vmatpush2.bf16.xpose.msra.mxu0 0
    %2207 = vmatprep.subr.bf16.mxu0 0
    %2208 = vmatpush2.bf16.xpose.msra.mxu0 0
    %2209 = vmatprep.subr.bf16.mxu0 0
    %2210 = vmatpush2.bf16.xpose.msra.mxu0 0
    %2211 = vmatprep.mubr.bf16.mxu0 0
    %2212 = vmatmul.mubr.bf16.gmra.mxu0 %v2171
    %v2213 = vpop.f32.mrf.mxu0
    %v2214 = vadd.f32 %v782, %v2213
    %v2215 = vpop.f32.mrf.mxu0
    %v2216 = vpop.f32.mrf.mxu0
    %v2217 = vpop.f32.mrf.mxu0
    %2218 = vdwg.mxu0
    %2221 = vrot.lane.b32.xlu0 %v541, 96
    %v2222 = vpop.permute.xlu0 %2221
    %2223 = vrot.lane.b32.xlu0 %v542, 96
    %v2224 = vpop.permute.xlu0 %2223
    %v2226 = vsel %vm99, %v339, 0
    %v2229 = vsel %vm99, %v2222, 0
    %v2232 = vsel %vm99, %v2224, 0
    %2234 = vmatprep.subr.bf16.mxu0 0
    %2235 = vmatpush1.bf16.xpose.msra.mxu0 0
    %2236 = vmatprep.subr.bf16.mxu0 0
    %2237 = vmatpush1.bf16.xpose.msra.mxu0 0
    %2238 = vmatprep.subr.bf16.mxu0 0
    %2239 = vmatpush1.bf16.xpose.msra.mxu0 0
    %2240 = vmatprep.subr.bf16.mxu0 0
    %2241 = vmatpush1.bf16.xpose.msra.mxu0 0
    %2242 = vmatprep.subr.bf16.mxu0 0
    %2243 = vmatpush1.bf16.xpose.msra.mxu0 0
    %2244 = vmatprep.subr.bf16.mxu0 0
    %2245 = vmatpush1.bf16.xpose.msra.mxu0 0
    %2246 = vmatprep.subr.bf16.mxu0 0
    %2247 = vmatpush1.bf16.xpose.msra.mxu0 %v2232
    %2248 = vmatprep.subr.bf16.mxu0 0
    %2249 = vmatpush1.bf16.xpose.msra.mxu0 %v2229
    %2250 = vmatprep.subr.bf16.mxu0 0
    %2251 = vmatpush2.bf16.xpose.msra.mxu0 0
    %2252 = vmatprep.subr.bf16.mxu0 0
    %2253 = vmatpush2.bf16.xpose.msra.mxu0 0
    %2254 = vmatprep.subr.bf16.mxu0 0
    %2255 = vmatpush2.bf16.xpose.msra.mxu0 0
    %2256 = vmatprep.subr.bf16.mxu0 0
    %2257 = vmatpush2.bf16.xpose.msra.mxu0 0
    %2258 = vmatprep.subr.bf16.mxu0 0
    %2259 = vmatpush2.bf16.xpose.msra.mxu0 0
    %2260 = vmatprep.subr.bf16.mxu0 0
    %2261 = vmatpush2.bf16.xpose.msra.mxu0 0
    %2262 = vmatprep.subr.bf16.mxu0 0
    %2263 = vmatpush2.bf16.xpose.msra.mxu0 0
    %2264 = vmatprep.subr.bf16.mxu0 0
    %2265 = vmatpush2.bf16.xpose.msra.mxu0 0
    %2266 = vmatprep.mubr.bf16.mxu0 0
    %2267 = vmatmul.mubr.bf16.gmra.mxu0 %v2226
    %v2268 = vpop.f32.mrf.mxu0
    %v2269 = vadd.f32 %v783, %v2268
    %v2270 = vpop.f32.mrf.mxu0
    %v2271 = vpop.f32.mrf.mxu0
    %v2272 = vpop.f32.mrf.mxu0
    %2273 = vdwg.mxu0
    %2276 = vrot.lane.b32.xlu0 %v543, 96
    %v2277 = vpop.permute.xlu0 %2276
    %2278 = vrot.lane.b32.xlu0 %v544, 96
    %v2279 = vpop.permute.xlu0 %2278
    %v2281 = vsel %vm99, %v340, 0
    %v2284 = vsel %vm99, %v2277, 0
    %v2287 = vsel %vm99, %v2279, 0
    %2289 = vmatprep.subr.bf16.mxu0 0
    %2290 = vmatpush1.bf16.xpose.msra.mxu0 0
    %2291 = vmatprep.subr.bf16.mxu0 0
    %2292 = vmatpush1.bf16.xpose.msra.mxu0 0
    %2293 = vmatprep.subr.bf16.mxu0 0
    %2294 = vmatpush1.bf16.xpose.msra.mxu0 0
    %2295 = vmatprep.subr.bf16.mxu0 0
    %2296 = vmatpush1.bf16.xpose.msra.mxu0 0
    %2297 = vmatprep.subr.bf16.mxu0 0
    %2298 = vmatpush1.bf16.xpose.msra.mxu0 0
    %2299 = vmatprep.subr.bf16.mxu0 0
    %2300 = vmatpush1.bf16.xpose.msra.mxu0 0
    %2301 = vmatprep.subr.bf16.mxu0 0
    %2302 = vmatpush1.bf16.xpose.msra.mxu0 %v2287
    %2303 = vmatprep.subr.bf16.mxu0 0
    %2304 = vmatpush1.bf16.xpose.msra.mxu0 %v2284
    %2305 = vmatprep.subr.bf16.mxu0 0
    %2306 = vmatpush2.bf16.xpose.msra.mxu0 0
    %2307 = vmatprep.subr.bf16.mxu0 0
    %2308 = vmatpush2.bf16.xpose.msra.mxu0 0
    %2309 = vmatprep.subr.bf16.mxu0 0
    %2310 = vmatpush2.bf16.xpose.msra.mxu0 0
    %2311 = vmatprep.subr.bf16.mxu0 0
    %2312 = vmatpush2.bf16.xpose.msra.mxu0 0
    %2313 = vmatprep.subr.bf16.mxu0 0
    %2314 = vmatpush2.bf16.xpose.msra.mxu0 0
    %2315 = vmatprep.subr.bf16.mxu0 0
    %2316 = vmatpush2.bf16.xpose.msra.mxu0 0
    %2317 = vmatprep.subr.bf16.mxu0 0
    %2318 = vmatpush2.bf16.xpose.msra.mxu0 0
    %2319 = vmatprep.subr.bf16.mxu0 0
    %2320 = vmatpush2.bf16.xpose.msra.mxu0 0
    %2321 = vmatprep.mubr.bf16.mxu0 0
    %2322 = vmatmul.mubr.bf16.gmra.mxu0 %v2281
    %v2323 = vpop.f32.mrf.mxu0
    %v2324 = vadd.f32 %v784, %v2323
    %v2325 = vpop.f32.mrf.mxu0
    %v2326 = vpop.f32.mrf.mxu0
    %v2327 = vpop.f32.mrf.mxu0
    %2328 = vdwg.mxu0
    %2331 = vrot.lane.b32.xlu0 %v545, 96
    %v2332 = vpop.permute.xlu0 %2331
    %2333 = vrot.lane.b32.xlu0 %v546, 96
    %v2334 = vpop.permute.xlu0 %2333
    %v2336 = vsel %vm99, %v341, 0
    %v2339 = vsel %vm99, %v2332, 0
    %v2342 = vsel %vm99, %v2334, 0
    %2344 = vmatprep.subr.bf16.mxu0 0
    %2345 = vmatpush1.bf16.xpose.msra.mxu0 0
    %2346 = vmatprep.subr.bf16.mxu0 0
    %2347 = vmatpush1.bf16.xpose.msra.mxu0 0
    %2348 = vmatprep.subr.bf16.mxu0 0
    %2349 = vmatpush1.bf16.xpose.msra.mxu0 0
    %2350 = vmatprep.subr.bf16.mxu0 0
    %2351 = vmatpush1.bf16.xpose.msra.mxu0 0
    %2352 = vmatprep.subr.bf16.mxu0 0
    %2353 = vmatpush1.bf16.xpose.msra.mxu0 0
    %2354 = vmatprep.subr.bf16.mxu0 0
    %2355 = vmatpush1.bf16.xpose.msra.mxu0 0
    %2356 = vmatprep.subr.bf16.mxu0 0
    %2357 = vmatpush1.bf16.xpose.msra.mxu0 %v2342
    %2358 = vmatprep.subr.bf16.mxu0 0
    %2359 = vmatpush1.bf16.xpose.msra.mxu0 %v2339
    %2360 = vmatprep.subr.bf16.mxu0 0
    %2361 = vmatpush2.bf16.xpose.msra.mxu0 0
    %2362 = vmatprep.subr.bf16.mxu0 0
    %2363 = vmatpush2.bf16.xpose.msra.mxu0 0
    %2364 = vmatprep.subr.bf16.mxu0 0
    %2365 = vmatpush2.bf16.xpose.msra.mxu0 0
    %2366 = vmatprep.subr.bf16.mxu0 0
    %2367 = vmatpush2.bf16.xpose.msra.mxu0 0
    %2368 = vmatprep.subr.bf16.mxu0 0
    %2369 = vmatpush2.bf16.xpose.msra.mxu0 0
    %2370 = vmatprep.subr.bf16.mxu0 0
    %2371 = vmatpush2.bf16.xpose.msra.mxu0 0
    %2372 = vmatprep.subr.bf16.mxu0 0
    %2373 = vmatpush2.bf16.xpose.msra.mxu0 0
    %2374 = vmatprep.subr.bf16.mxu0 0
    %2375 = vmatpush2.bf16.xpose.msra.mxu0 0
    %2376 = vmatprep.mubr.bf16.mxu0 0
    %2377 = vmatmul.mubr.bf16.gmra.mxu0 %v2336
    %v2378 = vpop.f32.mrf.mxu0
    %v2379 = vadd.f32 %v785, %v2378
    %v2380 = vpop.f32.mrf.mxu0
    %v2381 = vpop.f32.mrf.mxu0
    %v2382 = vpop.f32.mrf.mxu0
    %2383 = vdwg.mxu0
    %2386 = vrot.lane.b32.xlu0 %v547, 96
    %v2387 = vpop.permute.xlu0 %2386
    %2388 = vrot.lane.b32.xlu0 %v548, 96
    %v2389 = vpop.permute.xlu0 %2388
    %v2391 = vsel %vm99, %v342, 0
    %v2394 = vsel %vm99, %v2387, 0
    %v2397 = vsel %vm99, %v2389, 0
    %2399 = vmatprep.subr.bf16.mxu0 0
    %2400 = vmatpush1.bf16.xpose.msra.mxu0 0
    %2401 = vmatprep.subr.bf16.mxu0 0
    %2402 = vmatpush1.bf16.xpose.msra.mxu0 0
    %2403 = vmatprep.subr.bf16.mxu0 0
    %2404 = vmatpush1.bf16.xpose.msra.mxu0 0
    %2405 = vmatprep.subr.bf16.mxu0 0
    %2406 = vmatpush1.bf16.xpose.msra.mxu0 0
    %2407 = vmatprep.subr.bf16.mxu0 0
    %2408 = vmatpush1.bf16.xpose.msra.mxu0 0
    %2409 = vmatprep.subr.bf16.mxu0 0
    %2410 = vmatpush1.bf16.xpose.msra.mxu0 0
    %2411 = vmatprep.subr.bf16.mxu0 0
    %2412 = vmatpush1.bf16.xpose.msra.mxu0 %v2397
    %2413 = vmatprep.subr.bf16.mxu0 0
    %2414 = vmatpush1.bf16.xpose.msra.mxu0 %v2394
    %2415 = vmatprep.subr.bf16.mxu0 0
    %2416 = vmatpush2.bf16.xpose.msra.mxu0 0
    %2417 = vmatprep.subr.bf16.mxu0 0
    %2418 = vmatpush2.bf16.xpose.msra.mxu0 0
    %2419 = vmatprep.subr.bf16.mxu0 0
    %2420 = vmatpush2.bf16.xpose.msra.mxu0 0
    %2421 = vmatprep.subr.bf16.mxu0 0
    %2422 = vmatpush2.bf16.xpose.msra.mxu0 0
    %2423 = vmatprep.subr.bf16.mxu0 0
    %2424 = vmatpush2.bf16.xpose.msra.mxu0 0
    %2425 = vmatprep.subr.bf16.mxu0 0
    %2426 = vmatpush2.bf16.xpose.msra.mxu0 0
    %2427 = vmatprep.subr.bf16.mxu0 0
    %2428 = vmatpush2.bf16.xpose.msra.mxu0 0
    %2429 = vmatprep.subr.bf16.mxu0 0
    %2430 = vmatpush2.bf16.xpose.msra.mxu0 0
    %2431 = vmatprep.mubr.bf16.mxu0 0
    %2432 = vmatmul.mubr.bf16.gmra.mxu0 %v2391
    %v2433 = vpop.f32.mrf.mxu0
    %v2434 = vadd.f32 %v786, %v2433
    %v2435 = vpop.f32.mrf.mxu0
    %v2436 = vpop.f32.mrf.mxu0
    %v2437 = vpop.f32.mrf.mxu0
    %2438 = vdwg.mxu0
    %2441 = vrot.lane.b32.xlu0 %v549, 96
    %v2442 = vpop.permute.xlu0 %2441
    %2443 = vrot.lane.b32.xlu0 %v550, 96
    %v2444 = vpop.permute.xlu0 %2443
    %v2446 = vsel %vm99, %v343, 0
    %v2449 = vsel %vm99, %v2442, 0
    %v2452 = vsel %vm99, %v2444, 0
    %2454 = vmatprep.subr.bf16.mxu0 0
    %2455 = vmatpush1.bf16.xpose.msra.mxu0 0
    %2456 = vmatprep.subr.bf16.mxu0 0
    %2457 = vmatpush1.bf16.xpose.msra.mxu0 0
    %2458 = vmatprep.subr.bf16.mxu0 0
    %2459 = vmatpush1.bf16.xpose.msra.mxu0 0
    %2460 = vmatprep.subr.bf16.mxu0 0
    %2461 = vmatpush1.bf16.xpose.msra.mxu0 0
    %2462 = vmatprep.subr.bf16.mxu0 0
    %2463 = vmatpush1.bf16.xpose.msra.mxu0 0
    %2464 = vmatprep.subr.bf16.mxu0 0
    %2465 = vmatpush1.bf16.xpose.msra.mxu0 0
    %2466 = vmatprep.subr.bf16.mxu0 0
    %2467 = vmatpush1.bf16.xpose.msra.mxu0 %v2452
    %2468 = vmatprep.subr.bf16.mxu0 0
    %2469 = vmatpush1.bf16.xpose.msra.mxu0 %v2449
    %2470 = vmatprep.subr.bf16.mxu0 0
    %2471 = vmatpush2.bf16.xpose.msra.mxu0 0
    %2472 = vmatprep.subr.bf16.mxu0 0
    %2473 = vmatpush2.bf16.xpose.msra.mxu0 0
    %2474 = vmatprep.subr.bf16.mxu0 0
    %2475 = vmatpush2.bf16.xpose.msra.mxu0 0
    %2476 = vmatprep.subr.bf16.mxu0 0
    %2477 = vmatpush2.bf16.xpose.msra.mxu0 0
    %2478 = vmatprep.subr.bf16.mxu0 0
    %2479 = vmatpush2.bf16.xpose.msra.mxu0 0
    %2480 = vmatprep.subr.bf16.mxu0 0
    %2481 = vmatpush2.bf16.xpose.msra.mxu0 0
    %2482 = vmatprep.subr.bf16.mxu0 0
    %2483 = vmatpush2.bf16.xpose.msra.mxu0 0
    %2484 = vmatprep.subr.bf16.mxu0 0
    %2485 = vmatpush2.bf16.xpose.msra.mxu0 0
    %2486 = vmatprep.mubr.bf16.mxu0 0
    %2487 = vmatmul.mubr.bf16.gmra.mxu0 %v2446
    %v2488 = vpop.f32.mrf.mxu0
    %v2489 = vadd.f32 %v787, %v2488
    %v2490 = vpop.f32.mrf.mxu0
    %v2491 = vpop.f32.mrf.mxu0
    %v2492 = vpop.f32.mrf.mxu0
    %2493 = vdwg.mxu0
    %2496 = vrot.lane.b32.xlu0 %v551, 96
    %v2497 = vpop.permute.xlu0 %2496
    %2498 = vrot.lane.b32.xlu0 %v552, 96
    %v2499 = vpop.permute.xlu0 %2498
    %v2501 = vsel %vm99, %v344, 0
    %v2504 = vsel %vm99, %v2497, 0
    %v2507 = vsel %vm99, %v2499, 0
    %2509 = vmatprep.subr.bf16.mxu0 0
    %2510 = vmatpush1.bf16.xpose.msra.mxu0 0
    %2511 = vmatprep.subr.bf16.mxu0 0
    %2512 = vmatpush1.bf16.xpose.msra.mxu0 0
    %2513 = vmatprep.subr.bf16.mxu0 0
    %2514 = vmatpush1.bf16.xpose.msra.mxu0 0
    %2515 = vmatprep.subr.bf16.mxu0 0
    %2516 = vmatpush1.bf16.xpose.msra.mxu0 0
    %2517 = vmatprep.subr.bf16.mxu0 0
    %2518 = vmatpush1.bf16.xpose.msra.mxu0 0
    %2519 = vmatprep.subr.bf16.mxu0 0
    %2520 = vmatpush1.bf16.xpose.msra.mxu0 0
    %2521 = vmatprep.subr.bf16.mxu0 0
    %2522 = vmatpush1.bf16.xpose.msra.mxu0 %v2507
    %2523 = vmatprep.subr.bf16.mxu0 0
    %2524 = vmatpush1.bf16.xpose.msra.mxu0 %v2504
    %2525 = vmatprep.subr.bf16.mxu0 0
    %2526 = vmatpush2.bf16.xpose.msra.mxu0 0
    %2527 = vmatprep.subr.bf16.mxu0 0
    %2528 = vmatpush2.bf16.xpose.msra.mxu0 0
    %2529 = vmatprep.subr.bf16.mxu0 0
    %2530 = vmatpush2.bf16.xpose.msra.mxu0 0
    %2531 = vmatprep.subr.bf16.mxu0 0
    %2532 = vmatpush2.bf16.xpose.msra.mxu0 0
    %2533 = vmatprep.subr.bf16.mxu0 0
    %2534 = vmatpush2.bf16.xpose.msra.mxu0 0
    %2535 = vmatprep.subr.bf16.mxu0 0
    %2536 = vmatpush2.bf16.xpose.msra.mxu0 0
    %2537 = vmatprep.subr.bf16.mxu0 0
    %2538 = vmatpush2.bf16.xpose.msra.mxu0 0
    %2539 = vmatprep.subr.bf16.mxu0 0
    %2540 = vmatpush2.bf16.xpose.msra.mxu0 0
    %2541 = vmatprep.mubr.bf16.mxu0 0
    %2542 = vmatmul.mubr.bf16.gmra.mxu0 %v2501
    %v2543 = vpop.f32.mrf.mxu0
    %v2544 = vadd.f32 %v788, %v2543
    %v2545 = vpop.f32.mrf.mxu0
    %v2546 = vpop.f32.mrf.mxu0
    %v2547 = vpop.f32.mrf.mxu0
    %2548 = vdwg.mxu0
    %v2549 = vsel %vm99, %v839, -inf
    %2550 = vmax.xlane.f32.xlu0 %v2549
    %v2551 = vpop.xlane.xlu0 %2550
    %v2552 = vsel %vm99, %v894, -inf
    %2553 = vmax.xlane.f32.xlu0 %v2552
    %v2554 = vpop.xlane.xlu0 %2553
    %v2555 = vsel %vm99, %v949, -inf
    %2556 = vmax.xlane.f32.xlu0 %v2555
    %v2557 = vpop.xlane.xlu0 %2556
    %v2558 = vsel %vm99, %v1004, -inf
    %2559 = vmax.xlane.f32.xlu0 %v2558
    %v2560 = vpop.xlane.xlu0 %2559
    %v2561 = vsel %vm99, %v1059, -inf
    %2562 = vmax.xlane.f32.xlu0 %v2561
    %v2563 = vpop.xlane.xlu0 %2562
    %v2564 = vsel %vm99, %v1114, -inf
    %2565 = vmax.xlane.f32.xlu0 %v2564
    %v2566 = vpop.xlane.xlu0 %2565
    %v2567 = vsel %vm99, %v1169, -inf
    %2568 = vmax.xlane.f32.xlu0 %v2567
    %v2569 = vpop.xlane.xlu0 %2568
    %v2570 = vsel %vm99, %v1224, -inf
    %2571 = vmax.xlane.f32.xlu0 %v2570
    %v2572 = vpop.xlane.xlu0 %2571
    %v2573 = vsel %vm99, %v1279, -inf
    %2574 = vmax.xlane.f32.xlu0 %v2573
    %v2575 = vpop.xlane.xlu0 %2574
    %v2576 = vsel %vm99, %v1334, -inf
    %2577 = vmax.xlane.f32.xlu0 %v2576
    %v2578 = vpop.xlane.xlu0 %2577
    %v2579 = vsel %vm99, %v1389, -inf
    %2580 = vmax.xlane.f32.xlu0 %v2579
    %v2581 = vpop.xlane.xlu0 %2580
    %v2582 = vsel %vm99, %v1444, -inf
    %2583 = vmax.xlane.f32.xlu0 %v2582
    %v2584 = vpop.xlane.xlu0 %2583
    %v2585 = vsel %vm99, %v1499, -inf
    %2586 = vmax.xlane.f32.xlu0 %v2585
    %v2587 = vpop.xlane.xlu0 %2586
    %v2588 = vsel %vm99, %v1554, -inf
    %2589 = vmax.xlane.f32.xlu0 %v2588
    %v2590 = vpop.xlane.xlu0 %2589
    %v2591 = vsel %vm99, %v1609, -inf
    %2592 = vmax.xlane.f32.xlu0 %v2591
    %v2593 = vpop.xlane.xlu0 %2592
    %v2594 = vsel %vm99, %v1664, -inf
    %2595 = vmax.xlane.f32.xlu0 %v2594
    %v2596 = vpop.xlane.xlu0 %2595
    %v2597 = vsel %vm99, %v1719, -inf
    %2598 = vmax.xlane.f32.xlu0 %v2597
    %v2599 = vpop.xlane.xlu0 %2598
    %v2600 = vsel %vm99, %v1774, -inf
    %2601 = vmax.xlane.f32.xlu0 %v2600
    %v2602 = vpop.xlane.xlu0 %2601
    %v2603 = vsel %vm99, %v1829, -inf
    %2604 = vmax.xlane.f32.xlu0 %v2603
    %v2605 = vpop.xlane.xlu0 %2604
    %v2606 = vsel %vm99, %v1884, -inf
    %2607 = vmax.xlane.f32.xlu0 %v2606
    %v2608 = vpop.xlane.xlu0 %2607
    %v2609 = vsel %vm99, %v1939, -inf
    %2610 = vmax.xlane.f32.xlu0 %v2609
    %v2611 = vpop.xlane.xlu0 %2610
    %v2612 = vsel %vm99, %v1994, -inf
    %2613 = vmax.xlane.f32.xlu0 %v2612
    %v2614 = vpop.xlane.xlu0 %2613
    %v2615 = vsel %vm99, %v2049, -inf
    %2616 = vmax.xlane.f32.xlu0 %v2615
    %v2617 = vpop.xlane.xlu0 %2616
    %v2618 = vsel %vm99, %v2104, -inf
    %2619 = vmax.xlane.f32.xlu0 %v2618
    %v2620 = vpop.xlane.xlu0 %2619
    %v2621 = vsel %vm99, %v2159, -inf
    %2622 = vmax.xlane.f32.xlu0 %v2621
    %v2623 = vpop.xlane.xlu0 %2622
    %v2624 = vsel %vm99, %v2214, -inf
    %2625 = vmax.xlane.f32.xlu0 %v2624
    %v2626 = vpop.xlane.xlu0 %2625
    %v2627 = vsel %vm99, %v2269, -inf
    %2628 = vmax.xlane.f32.xlu0 %v2627
    %v2629 = vpop.xlane.xlu0 %2628
    %v2630 = vsel %vm99, %v2324, -inf
    %2631 = vmax.xlane.f32.xlu0 %v2630
    %v2632 = vpop.xlane.xlu0 %2631
    %v2633 = vsel %vm99, %v2379, -inf
    %2634 = vmax.xlane.f32.xlu0 %v2633
    %v2635 = vpop.xlane.xlu0 %2634
    %v2636 = vsel %vm99, %v2434, -inf
    %2637 = vmax.xlane.f32.xlu0 %v2636
    %v2638 = vpop.xlane.xlu0 %2637
    %v2639 = vsel %vm99, %v2489, -inf
    %2640 = vmax.xlane.f32.xlu0 %v2639
    %v2641 = vpop.xlane.xlu0 %2640
    %v2642 = vsel %vm99, %v2544, -inf
    %2643 = vmax.xlane.f32.xlu0 %v2642
    %v2644 = vpop.xlane.xlu0 %2643
    %v2645 = vsub.f32 %v839, %v2551
    %v2646 = vsub.f32 %v894, %v2554
    %v2647 = vsub.f32 %v949, %v2557
    %v2648 = vsub.f32 %v1004, %v2560
    %v2649 = vsub.f32 %v1059, %v2563
    %v2650 = vsub.f32 %v1114, %v2566
    %v2651 = vsub.f32 %v1169, %v2569
    %v2652 = vsub.f32 %v1224, %v2572
    %v2653 = vsub.f32 %v1279, %v2575
    %v2654 = vsub.f32 %v1334, %v2578
    %v2655 = vsub.f32 %v1389, %v2581
    %v2656 = vsub.f32 %v1444, %v2584
    %v2657 = vsub.f32 %v1499, %v2587
    %v2658 = vsub.f32 %v1554, %v2590
    %v2659 = vsub.f32 %v1609, %v2593
    %v2660 = vsub.f32 %v1664, %v2596
    %v2661 = vsub.f32 %v1719, %v2599
    %v2662 = vsub.f32 %v1774, %v2602
    %v2663 = vsub.f32 %v1829, %v2605
    %v2664 = vsub.f32 %v1884, %v2608
    %v2665 = vsub.f32 %v1939, %v2611
    %v2666 = vsub.f32 %v1994, %v2614
    %v2667 = vsub.f32 %v2049, %v2617
    %v2668 = vsub.f32 %v2104, %v2620
    %v2669 = vsub.f32 %v2159, %v2623
    %v2670 = vsub.f32 %v2214, %v2626
    %v2671 = vsub.f32 %v2269, %v2629
    %v2672 = vsub.f32 %v2324, %v2632
    %v2673 = vsub.f32 %v2379, %v2635
    %v2674 = vsub.f32 %v2434, %v2638
    %v2675 = vsub.f32 %v2489, %v2641
    %v2676 = vsub.f32 %v2544, %v2644
    %v2677 = vmul.f32 %v2645, 1.442695
    %v2678 = vpow.pop %v2677
    %v2679 = vmul.f32 %v2646, 1.442695
    %v2680 = vpow.pop %v2679
    %v2681 = vmul.f32 %v2647, 1.442695
    %v2682 = vpow.pop %v2681
    %v2683 = vmul.f32 %v2648, 1.442695
    %v2684 = vpow.pop %v2683
    %v2685 = vmul.f32 %v2649, 1.442695
    %v2686 = vpow.pop %v2685
    %v2687 = vmul.f32 %v2650, 1.442695
    %v2688 = vpow.pop %v2687
    %v2689 = vmul.f32 %v2651, 1.442695
    %v2690 = vpow.pop %v2689
    %v2691 = vmul.f32 %v2652, 1.442695
    %v2692 = vpow.pop %v2691
    %v2693 = vmul.f32 %v2653, 1.442695
    %v2694 = vpow.pop %v2693
    %v2695 = vmul.f32 %v2654, 1.442695
    %v2696 = vpow.pop %v2695
    %v2697 = vmul.f32 %v2655, 1.442695
    %v2698 = vpow.pop %v2697
    %v2699 = vmul.f32 %v2656, 1.442695
    %v2700 = vpow.pop %v2699
    %v2701 = vmul.f32 %v2657, 1.442695
    %v2702 = vpow.pop %v2701
    %v2703 = vmul.f32 %v2658, 1.442695
    %v2704 = vpow.pop %v2703
    %v2705 = vmul.f32 %v2659, 1.442695
    %v2706 = vpow.pop %v2705
    %v2707 = vmul.f32 %v2660, 1.442695
    %v2708 = vpow.pop %v2707
    %v2709 = vmul.f32 %v2661, 1.442695
    %v2710 = vpow.pop %v2709
    %v2711 = vmul.f32 %v2662, 1.442695
    %v2712 = vpow.pop %v2711
    %v2713 = vmul.f32 %v2663, 1.442695
    %v2714 = vpow.pop %v2713
    %v2715 = vmul.f32 %v2664, 1.442695
    %v2716 = vpow.pop %v2715
    %v2717 = vmul.f32 %v2665, 1.442695
    %v2718 = vpow.pop %v2717
    %v2719 = vmul.f32 %v2666, 1.442695
    %v2720 = vpow.pop %v2719
    %v2721 = vmul.f32 %v2667, 1.442695
    %v2722 = vpow.pop %v2721
    %v2723 = vmul.f32 %v2668, 1.442695
    %v2724 = vpow.pop %v2723
    %v2725 = vmul.f32 %v2669, 1.442695
    %v2726 = vpow.pop %v2725
    %v2727 = vmul.f32 %v2670, 1.442695
    %v2728 = vpow.pop %v2727
    %v2729 = vmul.f32 %v2671, 1.442695
    %v2730 = vpow.pop %v2729
    %v2731 = vmul.f32 %v2672, 1.442695
    %v2732 = vpow.pop %v2731
    %v2733 = vmul.f32 %v2673, 1.442695
    %v2734 = vpow.pop %v2733
    %v2735 = vmul.f32 %v2674, 1.442695
    %v2736 = vpow.pop %v2735
    %v2737 = vmul.f32 %v2675, 1.442695
    %v2738 = vpow.pop %v2737
    %v2739 = vmul.f32 %v2676, 1.442695
    %v2740 = vpow.pop %v2739
    %v2741 = vpack.c.bf16 %v2678, %v2678
    %v2742 = vpack.c.bf16 %v2680, %v2680
    %v2743 = vpack.c.bf16 %v2682, %v2682
    %v2744 = vpack.c.bf16 %v2684, %v2684
    %v2745 = vpack.c.bf16 %v2686, %v2686
    %v2746 = vpack.c.bf16 %v2688, %v2688
    %v2747 = vpack.c.bf16 %v2690, %v2690
    %v2748 = vpack.c.bf16 %v2692, %v2692
    %v2749 = vpack.c.bf16 %v2694, %v2694
    %v2750 = vpack.c.bf16 %v2696, %v2696
    %v2751 = vpack.c.bf16 %v2698, %v2698
    %v2752 = vpack.c.bf16 %v2700, %v2700
    %v2753 = vpack.c.bf16 %v2702, %v2702
    %v2754 = vpack.c.bf16 %v2704, %v2704
    %v2755 = vpack.c.bf16 %v2706, %v2706
    %v2756 = vpack.c.bf16 %v2708, %v2708
    %v2757 = vpack.c.bf16 %v2710, %v2710
    %v2758 = vpack.c.bf16 %v2712, %v2712
    %v2759 = vpack.c.bf16 %v2714, %v2714
    %v2760 = vpack.c.bf16 %v2716, %v2716
    %v2761 = vpack.c.bf16 %v2718, %v2718
    %v2762 = vpack.c.bf16 %v2720, %v2720
    %v2763 = vpack.c.bf16 %v2722, %v2722
    %v2764 = vpack.c.bf16 %v2724, %v2724
    %v2765 = vpack.c.bf16 %v2726, %v2726
    %v2766 = vpack.c.bf16 %v2728, %v2728
    %v2767 = vpack.c.bf16 %v2730, %v2730
    %v2768 = vpack.c.bf16 %v2732, %v2732
    %v2769 = vpack.c.bf16 %v2734, %v2734
    %v2770 = vpack.c.bf16 %v2736, %v2736
    %v2771 = vpack.c.bf16 %v2738, %v2738
    %v2772 = vpack.c.bf16 %v2740, %v2740
    %2775 = vrot.lane.b32.xlu0 %v693, 64
    %v2776 = vpop.permute.xlu0 %2775
    %2777 = vrot.lane.b32.xlu0 %v694, 64
    %v2778 = vpop.permute.xlu0 %2777
    %v2782 = vsel %vm99, %v2741, 0
    %2784 = vmatprep.subr.bf16.mxu0 0
    %2785 = vmatpush1.bf16.msra.mxu0 0
    %2786 = vmatprep.subr.bf16.mxu0 0
    %2787 = vmatpush1.bf16.msra.mxu0 0
    %2788 = vmatprep.subr.bf16.mxu0 0
    %2789 = vmatpush1.bf16.msra.mxu0 0
    %2790 = vmatprep.subr.bf16.mxu0 0
    %2791 = vmatpush1.bf16.msra.mxu0 0
    %2792 = vmatprep.subr.bf16.mxu0 0
    %2793 = vmatpush1.bf16.msra.mxu0 0
    %2794 = vmatprep.subr.bf16.mxu0 0
    %2795 = vmatpush1.bf16.msra.mxu0 0
    %2796 = vmatprep.subr.bf16.mxu0 0
    %2797 = vmatpush1.bf16.msra.mxu0 %v2778
    %2798 = vmatprep.subr.bf16.mxu0 0
    %2799 = vmatpush1.bf16.msra.mxu0 %v2776
    %2800 = vmatprep.subr.bf16.mxu0 0
    %2801 = vmatpush2.bf16.msra.mxu0 0
    %2802 = vmatprep.subr.bf16.mxu0 0
    %2803 = vmatpush2.bf16.msra.mxu0 0
    %2804 = vmatprep.subr.bf16.mxu0 0
    %2805 = vmatpush2.bf16.msra.mxu0 0
    %2806 = vmatprep.subr.bf16.mxu0 0
    %2807 = vmatpush2.bf16.msra.mxu0 0
    %2808 = vmatprep.subr.bf16.mxu0 0
    %2809 = vmatpush2.bf16.msra.mxu0 0
    %2810 = vmatprep.subr.bf16.mxu0 0
    %2811 = vmatpush2.bf16.msra.mxu0 0
    %2812 = vmatprep.subr.bf16.mxu0 0
    %2813 = vmatpush2.bf16.msra.mxu0 0
    %2814 = vmatprep.subr.bf16.mxu0 0
    %2815 = vmatpush2.bf16.msra.mxu0 0
    %2816 = vmatprep.mubr.bf16.mxu0 0
    %2817 = vmatmul.mubr.bf16.gmra.mxu0 %v2782
    %v2818 = vpop.f32.mrf.mxu0
    %v2819 = vadd.f32 0.0, %v2818
    %v2820 = vpop.f32.mrf.mxu0
    %v2821 = vpop.f32.mrf.mxu0
    %v2822 = vpop.f32.mrf.mxu0
    %2823 = vdwg.mxu0
    %2826 = vrot.lane.b32.xlu0 %v695, 64
    %v2827 = vpop.permute.xlu0 %2826
    %2828 = vrot.lane.b32.xlu0 %v696, 64
    %v2829 = vpop.permute.xlu0 %2828
    %v2833 = vsel %vm99, %v2742, 0
    %2835 = vmatprep.subr.bf16.mxu0 0
    %2836 = vmatpush1.bf16.msra.mxu0 0
    %2837 = vmatprep.subr.bf16.mxu0 0
    %2838 = vmatpush1.bf16.msra.mxu0 0
    %2839 = vmatprep.subr.bf16.mxu0 0
    %2840 = vmatpush1.bf16.msra.mxu0 0
    %2841 = vmatprep.subr.bf16.mxu0 0
    %2842 = vmatpush1.bf16.msra.mxu0 0
    %2843 = vmatprep.subr.bf16.mxu0 0
    %2844 = vmatpush1.bf16.msra.mxu0 0
    %2845 = vmatprep.subr.bf16.mxu0 0
    %2846 = vmatpush1.bf16.msra.mxu0 0
    %2847 = vmatprep.subr.bf16.mxu0 0
    %2848 = vmatpush1.bf16.msra.mxu0 %v2829
    %2849 = vmatprep.subr.bf16.mxu0 0
    %2850 = vmatpush1.bf16.msra.mxu0 %v2827
    %2851 = vmatprep.subr.bf16.mxu0 0
    %2852 = vmatpush2.bf16.msra.mxu0 0
    %2853 = vmatprep.subr.bf16.mxu0 0
    %2854 = vmatpush2.bf16.msra.mxu0 0
    %2855 = vmatprep.subr.bf16.mxu0 0
    %2856 = vmatpush2.bf16.msra.mxu0 0
    %2857 = vmatprep.subr.bf16.mxu0 0
    %2858 = vmatpush2.bf16.msra.mxu0 0
    %2859 = vmatprep.subr.bf16.mxu0 0
    %2860 = vmatpush2.bf16.msra.mxu0 0
    %2861 = vmatprep.subr.bf16.mxu0 0
    %2862 = vmatpush2.bf16.msra.mxu0 0
    %2863 = vmatprep.subr.bf16.mxu0 0
    %2864 = vmatpush2.bf16.msra.mxu0 0
    %2865 = vmatprep.subr.bf16.mxu0 0
    %2866 = vmatpush2.bf16.msra.mxu0 0
    %2867 = vmatprep.mubr.bf16.mxu0 0
    %2868 = vmatmul.mubr.bf16.gmra.mxu0 %v2833
    %v2869 = vpop.f32.mrf.mxu0
    %v2870 = vadd.f32 0.0, %v2869
    %v2871 = vpop.f32.mrf.mxu0
    %v2872 = vpop.f32.mrf.mxu0
    %v2873 = vpop.f32.mrf.mxu0
    %2874 = vdwg.mxu0
    %2877 = vrot.lane.b32.xlu0 %v697, 64
    %v2878 = vpop.permute.xlu0 %2877
    %2879 = vrot.lane.b32.xlu0 %v698, 64
    %v2880 = vpop.permute.xlu0 %2879
    %v2884 = vsel %vm99, %v2743, 0
    %2886 = vmatprep.subr.bf16.mxu0 0
    %2887 = vmatpush1.bf16.msra.mxu0 0
    %2888 = vmatprep.subr.bf16.mxu0 0
    %2889 = vmatpush1.bf16.msra.mxu0 0
    %2890 = vmatprep.subr.bf16.mxu0 0
    %2891 = vmatpush1.bf16.msra.mxu0 0
    %2892 = vmatprep.subr.bf16.mxu0 0
    %2893 = vmatpush1.bf16.msra.mxu0 0
    %2894 = vmatprep.subr.bf16.mxu0 0
    %2895 = vmatpush1.bf16.msra.mxu0 0
    %2896 = vmatprep.subr.bf16.mxu0 0
    %2897 = vmatpush1.bf16.msra.mxu0 0
    %2898 = vmatprep.subr.bf16.mxu0 0
    %2899 = vmatpush1.bf16.msra.mxu0 %v2880
    %2900 = vmatprep.subr.bf16.mxu0 0
    %2901 = vmatpush1.bf16.msra.mxu0 %v2878
    %2902 = vmatprep.subr.bf16.mxu0 0
    %2903 = vmatpush2.bf16.msra.mxu0 0
    %2904 = vmatprep.subr.bf16.mxu0 0
    %2905 = vmatpush2.bf16.msra.mxu0 0
    %2906 = vmatprep.subr.bf16.mxu0 0
    %2907 = vmatpush2.bf16.msra.mxu0 0
    %2908 = vmatprep.subr.bf16.mxu0 0
    %2909 = vmatpush2.bf16.msra.mxu0 0
    %2910 = vmatprep.subr.bf16.mxu0 0
    %2911 = vmatpush2.bf16.msra.mxu0 0
    %2912 = vmatprep.subr.bf16.mxu0 0
    %2913 = vmatpush2.bf16.msra.mxu0 0
    %2914 = vmatprep.subr.bf16.mxu0 0
    %2915 = vmatpush2.bf16.msra.mxu0 0
    %2916 = vmatprep.subr.bf16.mxu0 0
    %2917 = vmatpush2.bf16.msra.mxu0 0
    %2918 = vmatprep.mubr.bf16.mxu0 0
    %2919 = vmatmul.mubr.bf16.gmra.mxu0 %v2884
    %v2920 = vpop.f32.mrf.mxu0
    %v2921 = vadd.f32 0.0, %v2920
    %v2922 = vpop.f32.mrf.mxu0
    %v2923 = vpop.f32.mrf.mxu0
    %v2924 = vpop.f32.mrf.mxu0
    %2925 = vdwg.mxu0
    %2928 = vrot.lane.b32.xlu0 %v699, 64
    %v2929 = vpop.permute.xlu0 %2928
    %2930 = vrot.lane.b32.xlu0 %v700, 64
    %v2931 = vpop.permute.xlu0 %2930
    %v2935 = vsel %vm99, %v2744, 0
    %2937 = vmatprep.subr.bf16.mxu0 0
    %2938 = vmatpush1.bf16.msra.mxu0 0
    %2939 = vmatprep.subr.bf16.mxu0 0
    %2940 = vmatpush1.bf16.msra.mxu0 0
    %2941 = vmatprep.subr.bf16.mxu0 0
    %2942 = vmatpush1.bf16.msra.mxu0 0
    %2943 = vmatprep.subr.bf16.mxu0 0
    %2944 = vmatpush1.bf16.msra.mxu0 0
    %2945 = vmatprep.subr.bf16.mxu0 0
    %2946 = vmatpush1.bf16.msra.mxu0 0
    %2947 = vmatprep.subr.bf16.mxu0 0
    %2948 = vmatpush1.bf16.msra.mxu0 0
    %2949 = vmatprep.subr.bf16.mxu0 0
    %2950 = vmatpush1.bf16.msra.mxu0 %v2931
    %2951 = vmatprep.subr.bf16.mxu0 0
    %2952 = vmatpush1.bf16.msra.mxu0 %v2929
    %2953 = vmatprep.subr.bf16.mxu0 0
    %2954 = vmatpush2.bf16.msra.mxu0 0
    %2955 = vmatprep.subr.bf16.mxu0 0
    %2956 = vmatpush2.bf16.msra.mxu0 0
    %2957 = vmatprep.subr.bf16.mxu0 0
    %2958 = vmatpush2.bf16.msra.mxu0 0
    %2959 = vmatprep.subr.bf16.mxu0 0
    %2960 = vmatpush2.bf16.msra.mxu0 0
    %2961 = vmatprep.subr.bf16.mxu0 0
    %2962 = vmatpush2.bf16.msra.mxu0 0
    %2963 = vmatprep.subr.bf16.mxu0 0
    %2964 = vmatpush2.bf16.msra.mxu0 0
    %2965 = vmatprep.subr.bf16.mxu0 0
    %2966 = vmatpush2.bf16.msra.mxu0 0
    %2967 = vmatprep.subr.bf16.mxu0 0
    %2968 = vmatpush2.bf16.msra.mxu0 0
    %2969 = vmatprep.mubr.bf16.mxu0 0
    %2970 = vmatmul.mubr.bf16.gmra.mxu0 %v2935
    %v2971 = vpop.f32.mrf.mxu0
    %v2972 = vadd.f32 0.0, %v2971
    %v2973 = vpop.f32.mrf.mxu0
    %v2974 = vpop.f32.mrf.mxu0
    %v2975 = vpop.f32.mrf.mxu0
    %2976 = vdwg.mxu0
    %2979 = vrot.lane.b32.xlu0 %v701, 64
    %v2980 = vpop.permute.xlu0 %2979
    %2981 = vrot.lane.b32.xlu0 %v702, 64
    %v2982 = vpop.permute.xlu0 %2981
    %v2986 = vsel %vm99, %v2745, 0
    %2988 = vmatprep.subr.bf16.mxu0 0
    %2989 = vmatpush1.bf16.msra.mxu0 0
    %2990 = vmatprep.subr.bf16.mxu0 0
    %2991 = vmatpush1.bf16.msra.mxu0 0
    %2992 = vmatprep.subr.bf16.mxu0 0
    %2993 = vmatpush1.bf16.msra.mxu0 0
    %2994 = vmatprep.subr.bf16.mxu0 0
    %2995 = vmatpush1.bf16.msra.mxu0 0
    %2996 = vmatprep.subr.bf16.mxu0 0
    %2997 = vmatpush1.bf16.msra.mxu0 0
    %2998 = vmatprep.subr.bf16.mxu0 0
    %2999 = vmatpush1.bf16.msra.mxu0 0
    %3000 = vmatprep.subr.bf16.mxu0 0
    %3001 = vmatpush1.bf16.msra.mxu0 %v2982
    %3002 = vmatprep.subr.bf16.mxu0 0
    %3003 = vmatpush1.bf16.msra.mxu0 %v2980
    %3004 = vmatprep.subr.bf16.mxu0 0
    %3005 = vmatpush2.bf16.msra.mxu0 0
    %3006 = vmatprep.subr.bf16.mxu0 0
    %3007 = vmatpush2.bf16.msra.mxu0 0
    %3008 = vmatprep.subr.bf16.mxu0 0
    %3009 = vmatpush2.bf16.msra.mxu0 0
    %3010 = vmatprep.subr.bf16.mxu0 0
    %3011 = vmatpush2.bf16.msra.mxu0 0
    %3012 = vmatprep.subr.bf16.mxu0 0
    %3013 = vmatpush2.bf16.msra.mxu0 0
    %3014 = vmatprep.subr.bf16.mxu0 0
    %3015 = vmatpush2.bf16.msra.mxu0 0
    %3016 = vmatprep.subr.bf16.mxu0 0
    %3017 = vmatpush2.bf16.msra.mxu0 0
    %3018 = vmatprep.subr.bf16.mxu0 0
    %3019 = vmatpush2.bf16.msra.mxu0 0
    %3020 = vmatprep.mubr.bf16.mxu0 0
    %3021 = vmatmul.mubr.bf16.gmra.mxu0 %v2986
    %v3022 = vpop.f32.mrf.mxu0
    %v3023 = vadd.f32 0.0, %v3022
    %v3024 = vpop.f32.mrf.mxu0
    %v3025 = vpop.f32.mrf.mxu0
    %v3026 = vpop.f32.mrf.mxu0
    %3027 = vdwg.mxu0
    %3030 = vrot.lane.b32.xlu0 %v703, 64
    %v3031 = vpop.permute.xlu0 %3030
    %3032 = vrot.lane.b32.xlu0 %v704, 64
    %v3033 = vpop.permute.xlu0 %3032
    %v3037 = vsel %vm99, %v2746, 0
    %3039 = vmatprep.subr.bf16.mxu0 0
    %3040 = vmatpush1.bf16.msra.mxu0 0
    %3041 = vmatprep.subr.bf16.mxu0 0
    %3042 = vmatpush1.bf16.msra.mxu0 0
    %3043 = vmatprep.subr.bf16.mxu0 0
    %3044 = vmatpush1.bf16.msra.mxu0 0
    %3045 = vmatprep.subr.bf16.mxu0 0
    %3046 = vmatpush1.bf16.msra.mxu0 0
    %3047 = vmatprep.subr.bf16.mxu0 0
    %3048 = vmatpush1.bf16.msra.mxu0 0
    %3049 = vmatprep.subr.bf16.mxu0 0
    %3050 = vmatpush1.bf16.msra.mxu0 0
    %3051 = vmatprep.subr.bf16.mxu0 0
    %3052 = vmatpush1.bf16.msra.mxu0 %v3033
    %3053 = vmatprep.subr.bf16.mxu0 0
    %3054 = vmatpush1.bf16.msra.mxu0 %v3031
    %3055 = vmatprep.subr.bf16.mxu0 0
    %3056 = vmatpush2.bf16.msra.mxu0 0
    %3057 = vmatprep.subr.bf16.mxu0 0
    %3058 = vmatpush2.bf16.msra.mxu0 0
    %3059 = vmatprep.subr.bf16.mxu0 0
    %3060 = vmatpush2.bf16.msra.mxu0 0
    %3061 = vmatprep.subr.bf16.mxu0 0
    %3062 = vmatpush2.bf16.msra.mxu0 0
    %3063 = vmatprep.subr.bf16.mxu0 0
    %3064 = vmatpush2.bf16.msra.mxu0 0
    %3065 = vmatprep.subr.bf16.mxu0 0
    %3066 = vmatpush2.bf16.msra.mxu0 0
    %3067 = vmatprep.subr.bf16.mxu0 0
    %3068 = vmatpush2.bf16.msra.mxu0 0
    %3069 = vmatprep.subr.bf16.mxu0 0
    %3070 = vmatpush2.bf16.msra.mxu0 0
    %3071 = vmatprep.mubr.bf16.mxu0 0
    %3072 = vmatmul.mubr.bf16.gmra.mxu0 %v3037
    %v3073 = vpop.f32.mrf.mxu0
    %v3074 = vadd.f32 0.0, %v3073
    %v3075 = vpop.f32.mrf.mxu0
    %v3076 = vpop.f32.mrf.mxu0
    %v3077 = vpop.f32.mrf.mxu0
    %3078 = vdwg.mxu0
    %3081 = vrot.lane.b32.xlu0 %v705, 64
    %v3082 = vpop.permute.xlu0 %3081
    %3083 = vrot.lane.b32.xlu0 %v706, 64
    %v3084 = vpop.permute.xlu0 %3083
    %v3088 = vsel %vm99, %v2747, 0
    %3090 = vmatprep.subr.bf16.mxu0 0
    %3091 = vmatpush1.bf16.msra.mxu0 0
    %3092 = vmatprep.subr.bf16.mxu0 0
    %3093 = vmatpush1.bf16.msra.mxu0 0
    %3094 = vmatprep.subr.bf16.mxu0 0
    %3095 = vmatpush1.bf16.msra.mxu0 0
    %3096 = vmatprep.subr.bf16.mxu0 0
    %3097 = vmatpush1.bf16.msra.mxu0 0
    %3098 = vmatprep.subr.bf16.mxu0 0
    %3099 = vmatpush1.bf16.msra.mxu0 0
    %3100 = vmatprep.subr.bf16.mxu0 0
    %3101 = vmatpush1.bf16.msra.mxu0 0
    %3102 = vmatprep.subr.bf16.mxu0 0
    %3103 = vmatpush1.bf16.msra.mxu0 %v3084
    %3104 = vmatprep.subr.bf16.mxu0 0
    %3105 = vmatpush1.bf16.msra.mxu0 %v3082
    %3106 = vmatprep.subr.bf16.mxu0 0
    %3107 = vmatpush2.bf16.msra.mxu0 0
    %3108 = vmatprep.subr.bf16.mxu0 0
    %3109 = vmatpush2.bf16.msra.mxu0 0
    %3110 = vmatprep.subr.bf16.mxu0 0
    %3111 = vmatpush2.bf16.msra.mxu0 0
    %3112 = vmatprep.subr.bf16.mxu0 0
    %3113 = vmatpush2.bf16.msra.mxu0 0
    %3114 = vmatprep.subr.bf16.mxu0 0
    %3115 = vmatpush2.bf16.msra.mxu0 0
    %3116 = vmatprep.subr.bf16.mxu0 0
    %3117 = vmatpush2.bf16.msra.mxu0 0
    %3118 = vmatprep.subr.bf16.mxu0 0
    %3119 = vmatpush2.bf16.msra.mxu0 0
    %3120 = vmatprep.subr.bf16.mxu0 0
    %3121 = vmatpush2.bf16.msra.mxu0 0
    %3122 = vmatprep.mubr.bf16.mxu0 0
    %3123 = vmatmul.mubr.bf16.gmra.mxu0 %v3088
    %v3124 = vpop.f32.mrf.mxu0
    %v3125 = vadd.f32 0.0, %v3124
    %v3126 = vpop.f32.mrf.mxu0
    %v3127 = vpop.f32.mrf.mxu0
    %v3128 = vpop.f32.mrf.mxu0
    %3129 = vdwg.mxu0
    %3132 = vrot.lane.b32.xlu0 %v707, 64
    %v3133 = vpop.permute.xlu0 %3132
    %3134 = vrot.lane.b32.xlu0 %v708, 64
    %v3135 = vpop.permute.xlu0 %3134
    %v3139 = vsel %vm99, %v2748, 0
    %3141 = vmatprep.subr.bf16.mxu0 0
    %3142 = vmatpush1.bf16.msra.mxu0 0
    %3143 = vmatprep.subr.bf16.mxu0 0
    %3144 = vmatpush1.bf16.msra.mxu0 0
    %3145 = vmatprep.subr.bf16.mxu0 0
    %3146 = vmatpush1.bf16.msra.mxu0 0
    %3147 = vmatprep.subr.bf16.mxu0 0
    %3148 = vmatpush1.bf16.msra.mxu0 0
    %3149 = vmatprep.subr.bf16.mxu0 0
    %3150 = vmatpush1.bf16.msra.mxu0 0
    %3151 = vmatprep.subr.bf16.mxu0 0
    %3152 = vmatpush1.bf16.msra.mxu0 0
    %3153 = vmatprep.subr.bf16.mxu0 0
    %3154 = vmatpush1.bf16.msra.mxu0 %v3135
    %3155 = vmatprep.subr.bf16.mxu0 0
    %3156 = vmatpush1.bf16.msra.mxu0 %v3133
    %3157 = vmatprep.subr.bf16.mxu0 0
    %3158 = vmatpush2.bf16.msra.mxu0 0
    %3159 = vmatprep.subr.bf16.mxu0 0
    %3160 = vmatpush2.bf16.msra.mxu0 0
    %3161 = vmatprep.subr.bf16.mxu0 0
    %3162 = vmatpush2.bf16.msra.mxu0 0
    %3163 = vmatprep.subr.bf16.mxu0 0
    %3164 = vmatpush2.bf16.msra.mxu0 0
    %3165 = vmatprep.subr.bf16.mxu0 0
    %3166 = vmatpush2.bf16.msra.mxu0 0
    %3167 = vmatprep.subr.bf16.mxu0 0
    %3168 = vmatpush2.bf16.msra.mxu0 0
    %3169 = vmatprep.subr.bf16.mxu0 0
    %3170 = vmatpush2.bf16.msra.mxu0 0
    %3171 = vmatprep.subr.bf16.mxu0 0
    %3172 = vmatpush2.bf16.msra.mxu0 0
    %3173 = vmatprep.mubr.bf16.mxu0 0
    %3174 = vmatmul.mubr.bf16.gmra.mxu0 %v3139
    %v3175 = vpop.f32.mrf.mxu0
    %v3176 = vadd.f32 0.0, %v3175
    %v3177 = vpop.f32.mrf.mxu0
    %v3178 = vpop.f32.mrf.mxu0
    %v3179 = vpop.f32.mrf.mxu0
    %3180 = vdwg.mxu0
    %3183 = vrot.lane.b32.xlu0 %v709, 64
    %v3184 = vpop.permute.xlu0 %3183
    %3185 = vrot.lane.b32.xlu0 %v710, 64
    %v3186 = vpop.permute.xlu0 %3185
    %v3190 = vsel %vm99, %v2749, 0
    %3192 = vmatprep.subr.bf16.mxu0 0
    %3193 = vmatpush1.bf16.msra.mxu0 0
    %3194 = vmatprep.subr.bf16.mxu0 0
    %3195 = vmatpush1.bf16.msra.mxu0 0
    %3196 = vmatprep.subr.bf16.mxu0 0
    %3197 = vmatpush1.bf16.msra.mxu0 0
    %3198 = vmatprep.subr.bf16.mxu0 0
    %3199 = vmatpush1.bf16.msra.mxu0 0
    %3200 = vmatprep.subr.bf16.mxu0 0
    %3201 = vmatpush1.bf16.msra.mxu0 0
    %3202 = vmatprep.subr.bf16.mxu0 0
    %3203 = vmatpush1.bf16.msra.mxu0 0
    %3204 = vmatprep.subr.bf16.mxu0 0
    %3205 = vmatpush1.bf16.msra.mxu0 %v3186
    %3206 = vmatprep.subr.bf16.mxu0 0
    %3207 = vmatpush1.bf16.msra.mxu0 %v3184
    %3208 = vmatprep.subr.bf16.mxu0 0
    %3209 = vmatpush2.bf16.msra.mxu0 0
    %3210 = vmatprep.subr.bf16.mxu0 0
    %3211 = vmatpush2.bf16.msra.mxu0 0
    %3212 = vmatprep.subr.bf16.mxu0 0
    %3213 = vmatpush2.bf16.msra.mxu0 0
    %3214 = vmatprep.subr.bf16.mxu0 0
    %3215 = vmatpush2.bf16.msra.mxu0 0
    %3216 = vmatprep.subr.bf16.mxu0 0
    %3217 = vmatpush2.bf16.msra.mxu0 0
    %3218 = vmatprep.subr.bf16.mxu0 0
    %3219 = vmatpush2.bf16.msra.mxu0 0
    %3220 = vmatprep.subr.bf16.mxu0 0
    %3221 = vmatpush2.bf16.msra.mxu0 0
    %3222 = vmatprep.subr.bf16.mxu0 0
    %3223 = vmatpush2.bf16.msra.mxu0 0
    %3224 = vmatprep.mubr.bf16.mxu0 0
    %3225 = vmatmul.mubr.bf16.gmra.mxu0 %v3190
    %v3226 = vpop.f32.mrf.mxu0
    %v3227 = vadd.f32 0.0, %v3226
    %v3228 = vpop.f32.mrf.mxu0
    %v3229 = vpop.f32.mrf.mxu0
    %v3230 = vpop.f32.mrf.mxu0
    %3231 = vdwg.mxu0
    %3234 = vrot.lane.b32.xlu0 %v711, 64
    %v3235 = vpop.permute.xlu0 %3234
    %3236 = vrot.lane.b32.xlu0 %v712, 64
    %v3237 = vpop.permute.xlu0 %3236
    %v3241 = vsel %vm99, %v2750, 0
    %3243 = vmatprep.subr.bf16.mxu0 0
    %3244 = vmatpush1.bf16.msra.mxu0 0
    %3245 = vmatprep.subr.bf16.mxu0 0
    %3246 = vmatpush1.bf16.msra.mxu0 0
    %3247 = vmatprep.subr.bf16.mxu0 0
    %3248 = vmatpush1.bf16.msra.mxu0 0
    %3249 = vmatprep.subr.bf16.mxu0 0
    %3250 = vmatpush1.bf16.msra.mxu0 0
    %3251 = vmatprep.subr.bf16.mxu0 0
    %3252 = vmatpush1.bf16.msra.mxu0 0
    %3253 = vmatprep.subr.bf16.mxu0 0
    %3254 = vmatpush1.bf16.msra.mxu0 0
    %3255 = vmatprep.subr.bf16.mxu0 0
    %3256 = vmatpush1.bf16.msra.mxu0 %v3237
    %3257 = vmatprep.subr.bf16.mxu0 0
    %3258 = vmatpush1.bf16.msra.mxu0 %v3235
    %3259 = vmatprep.subr.bf16.mxu0 0
    %3260 = vmatpush2.bf16.msra.mxu0 0
    %3261 = vmatprep.subr.bf16.mxu0 0
    %3262 = vmatpush2.bf16.msra.mxu0 0
    %3263 = vmatprep.subr.bf16.mxu0 0
    %3264 = vmatpush2.bf16.msra.mxu0 0
    %3265 = vmatprep.subr.bf16.mxu0 0
    %3266 = vmatpush2.bf16.msra.mxu0 0
    %3267 = vmatprep.subr.bf16.mxu0 0
    %3268 = vmatpush2.bf16.msra.mxu0 0
    %3269 = vmatprep.subr.bf16.mxu0 0
    %3270 = vmatpush2.bf16.msra.mxu0 0
    %3271 = vmatprep.subr.bf16.mxu0 0
    %3272 = vmatpush2.bf16.msra.mxu0 0
    %3273 = vmatprep.subr.bf16.mxu0 0
    %3274 = vmatpush2.bf16.msra.mxu0 0
    %3275 = vmatprep.mubr.bf16.mxu0 0
    %3276 = vmatmul.mubr.bf16.gmra.mxu0 %v3241
    %v3277 = vpop.f32.mrf.mxu0
    %v3278 = vadd.f32 0.0, %v3277
    %v3279 = vpop.f32.mrf.mxu0
    %v3280 = vpop.f32.mrf.mxu0
    %v3281 = vpop.f32.mrf.mxu0
    %3282 = vdwg.mxu0
    %3285 = vrot.lane.b32.xlu0 %v713, 64
    %v3286 = vpop.permute.xlu0 %3285
    %3287 = vrot.lane.b32.xlu0 %v714, 64
    %v3288 = vpop.permute.xlu0 %3287
    %v3292 = vsel %vm99, %v2751, 0
    %3294 = vmatprep.subr.bf16.mxu0 0
    %3295 = vmatpush1.bf16.msra.mxu0 0
    %3296 = vmatprep.subr.bf16.mxu0 0
    %3297 = vmatpush1.bf16.msra.mxu0 0
    %3298 = vmatprep.subr.bf16.mxu0 0
    %3299 = vmatpush1.bf16.msra.mxu0 0
    %3300 = vmatprep.subr.bf16.mxu0 0
    %3301 = vmatpush1.bf16.msra.mxu0 0
    %3302 = vmatprep.subr.bf16.mxu0 0
    %3303 = vmatpush1.bf16.msra.mxu0 0
    %3304 = vmatprep.subr.bf16.mxu0 0
    %3305 = vmatpush1.bf16.msra.mxu0 0
    %3306 = vmatprep.subr.bf16.mxu0 0
    %3307 = vmatpush1.bf16.msra.mxu0 %v3288
    %3308 = vmatprep.subr.bf16.mxu0 0
    %3309 = vmatpush1.bf16.msra.mxu0 %v3286
    %3310 = vmatprep.subr.bf16.mxu0 0
    %3311 = vmatpush2.bf16.msra.mxu0 0
    %3312 = vmatprep.subr.bf16.mxu0 0
    %3313 = vmatpush2.bf16.msra.mxu0 0
    %3314 = vmatprep.subr.bf16.mxu0 0
    %3315 = vmatpush2.bf16.msra.mxu0 0
    %3316 = vmatprep.subr.bf16.mxu0 0
    %3317 = vmatpush2.bf16.msra.mxu0 0
    %3318 = vmatprep.subr.bf16.mxu0 0
    %3319 = vmatpush2.bf16.msra.mxu0 0
    %3320 = vmatprep.subr.bf16.mxu0 0
    %3321 = vmatpush2.bf16.msra.mxu0 0
    %3322 = vmatprep.subr.bf16.mxu0 0
    %3323 = vmatpush2.bf16.msra.mxu0 0
    %3324 = vmatprep.subr.bf16.mxu0 0
    %3325 = vmatpush2.bf16.msra.mxu0 0
    %3326 = vmatprep.mubr.bf16.mxu0 0
    %3327 = vmatmul.mubr.bf16.gmra.mxu0 %v3292
    %v3328 = vpop.f32.mrf.mxu0
    %v3329 = vadd.f32 0.0, %v3328
    %v3330 = vpop.f32.mrf.mxu0
    %v3331 = vpop.f32.mrf.mxu0
    %v3332 = vpop.f32.mrf.mxu0
    %3333 = vdwg.mxu0
    %3336 = vrot.lane.b32.xlu0 %v715, 64
    %v3337 = vpop.permute.xlu0 %3336
    %3338 = vrot.lane.b32.xlu0 %v716, 64
    %v3339 = vpop.permute.xlu0 %3338
    %v3343 = vsel %vm99, %v2752, 0
    %3345 = vmatprep.subr.bf16.mxu0 0
    %3346 = vmatpush1.bf16.msra.mxu0 0
    %3347 = vmatprep.subr.bf16.mxu0 0
    %3348 = vmatpush1.bf16.msra.mxu0 0
    %3349 = vmatprep.subr.bf16.mxu0 0
    %3350 = vmatpush1.bf16.msra.mxu0 0
    %3351 = vmatprep.subr.bf16.mxu0 0
    %3352 = vmatpush1.bf16.msra.mxu0 0
    %3353 = vmatprep.subr.bf16.mxu0 0
    %3354 = vmatpush1.bf16.msra.mxu0 0
    %3355 = vmatprep.subr.bf16.mxu0 0
    %3356 = vmatpush1.bf16.msra.mxu0 0
    %3357 = vmatprep.subr.bf16.mxu0 0
    %3358 = vmatpush1.bf16.msra.mxu0 %v3339
    %3359 = vmatprep.subr.bf16.mxu0 0
    %3360 = vmatpush1.bf16.msra.mxu0 %v3337
    %3361 = vmatprep.subr.bf16.mxu0 0
    %3362 = vmatpush2.bf16.msra.mxu0 0
    %3363 = vmatprep.subr.bf16.mxu0 0
    %3364 = vmatpush2.bf16.msra.mxu0 0
    %3365 = vmatprep.subr.bf16.mxu0 0
    %3366 = vmatpush2.bf16.msra.mxu0 0
    %3367 = vmatprep.subr.bf16.mxu0 0
    %3368 = vmatpush2.bf16.msra.mxu0 0
    %3369 = vmatprep.subr.bf16.mxu0 0
    %3370 = vmatpush2.bf16.msra.mxu0 0
    %3371 = vmatprep.subr.bf16.mxu0 0
    %3372 = vmatpush2.bf16.msra.mxu0 0
    %3373 = vmatprep.subr.bf16.mxu0 0
    %3374 = vmatpush2.bf16.msra.mxu0 0
    %3375 = vmatprep.subr.bf16.mxu0 0
    %3376 = vmatpush2.bf16.msra.mxu0 0
    %3377 = vmatprep.mubr.bf16.mxu0 0
    %3378 = vmatmul.mubr.bf16.gmra.mxu0 %v3343
    %v3379 = vpop.f32.mrf.mxu0
    %v3380 = vadd.f32 0.0, %v3379
    %v3381 = vpop.f32.mrf.mxu0
    %v3382 = vpop.f32.mrf.mxu0
    %v3383 = vpop.f32.mrf.mxu0
    %3384 = vdwg.mxu0
    %3387 = vrot.lane.b32.xlu0 %v717, 64
    %v3388 = vpop.permute.xlu0 %3387
    %3389 = vrot.lane.b32.xlu0 %v718, 64
    %v3390 = vpop.permute.xlu0 %3389
    %v3394 = vsel %vm99, %v2753, 0
    %3396 = vmatprep.subr.bf16.mxu0 0
    %3397 = vmatpush1.bf16.msra.mxu0 0
    %3398 = vmatprep.subr.bf16.mxu0 0
    %3399 = vmatpush1.bf16.msra.mxu0 0
    %3400 = vmatprep.subr.bf16.mxu0 0
    %3401 = vmatpush1.bf16.msra.mxu0 0
    %3402 = vmatprep.subr.bf16.mxu0 0
    %3403 = vmatpush1.bf16.msra.mxu0 0
    %3404 = vmatprep.subr.bf16.mxu0 0
    %3405 = vmatpush1.bf16.msra.mxu0 0
    %3406 = vmatprep.subr.bf16.mxu0 0
    %3407 = vmatpush1.bf16.msra.mxu0 0
    %3408 = vmatprep.subr.bf16.mxu0 0
    %3409 = vmatpush1.bf16.msra.mxu0 %v3390
    %3410 = vmatprep.subr.bf16.mxu0 0
    %3411 = vmatpush1.bf16.msra.mxu0 %v3388
    %3412 = vmatprep.subr.bf16.mxu0 0
    %3413 = vmatpush2.bf16.msra.mxu0 0
    %3414 = vmatprep.subr.bf16.mxu0 0
    %3415 = vmatpush2.bf16.msra.mxu0 0
    %3416 = vmatprep.subr.bf16.mxu0 0
    %3417 = vmatpush2.bf16.msra.mxu0 0
    %3418 = vmatprep.subr.bf16.mxu0 0
    %3419 = vmatpush2.bf16.msra.mxu0 0
    %3420 = vmatprep.subr.bf16.mxu0 0
    %3421 = vmatpush2.bf16.msra.mxu0 0
    %3422 = vmatprep.subr.bf16.mxu0 0
    %3423 = vmatpush2.bf16.msra.mxu0 0
    %3424 = vmatprep.subr.bf16.mxu0 0
    %3425 = vmatpush2.bf16.msra.mxu0 0
    %3426 = vmatprep.subr.bf16.mxu0 0
    %3427 = vmatpush2.bf16.msra.mxu0 0
    %3428 = vmatprep.mubr.bf16.mxu0 0
    %3429 = vmatmul.mubr.bf16.gmra.mxu0 %v3394
    %v3430 = vpop.f32.mrf.mxu0
    %v3431 = vadd.f32 0.0, %v3430
    %v3432 = vpop.f32.mrf.mxu0
    %v3433 = vpop.f32.mrf.mxu0
    %v3434 = vpop.f32.mrf.mxu0
    %3435 = vdwg.mxu0
    %3438 = vrot.lane.b32.xlu0 %v719, 64
    %v3439 = vpop.permute.xlu0 %3438
    %3440 = vrot.lane.b32.xlu0 %v720, 64
    %v3441 = vpop.permute.xlu0 %3440
    %v3445 = vsel %vm99, %v2754, 0
    %3447 = vmatprep.subr.bf16.mxu0 0
    %3448 = vmatpush1.bf16.msra.mxu0 0
    %3449 = vmatprep.subr.bf16.mxu0 0
    %3450 = vmatpush1.bf16.msra.mxu0 0
    %3451 = vmatprep.subr.bf16.mxu0 0
    %3452 = vmatpush1.bf16.msra.mxu0 0
    %3453 = vmatprep.subr.bf16.mxu0 0
    %3454 = vmatpush1.bf16.msra.mxu0 0
    %3455 = vmatprep.subr.bf16.mxu0 0
    %3456 = vmatpush1.bf16.msra.mxu0 0
    %3457 = vmatprep.subr.bf16.mxu0 0
    %3458 = vmatpush1.bf16.msra.mxu0 0
    %3459 = vmatprep.subr.bf16.mxu0 0
    %3460 = vmatpush1.bf16.msra.mxu0 %v3441
    %3461 = vmatprep.subr.bf16.mxu0 0
    %3462 = vmatpush1.bf16.msra.mxu0 %v3439
    %3463 = vmatprep.subr.bf16.mxu0 0
    %3464 = vmatpush2.bf16.msra.mxu0 0
    %3465 = vmatprep.subr.bf16.mxu0 0
    %3466 = vmatpush2.bf16.msra.mxu0 0
    %3467 = vmatprep.subr.bf16.mxu0 0
    %3468 = vmatpush2.bf16.msra.mxu0 0
    %3469 = vmatprep.subr.bf16.mxu0 0
    %3470 = vmatpush2.bf16.msra.mxu0 0
    %3471 = vmatprep.subr.bf16.mxu0 0
    %3472 = vmatpush2.bf16.msra.mxu0 0
    %3473 = vmatprep.subr.bf16.mxu0 0
    %3474 = vmatpush2.bf16.msra.mxu0 0
    %3475 = vmatprep.subr.bf16.mxu0 0
    %3476 = vmatpush2.bf16.msra.mxu0 0
    %3477 = vmatprep.subr.bf16.mxu0 0
    %3478 = vmatpush2.bf16.msra.mxu0 0
    %3479 = vmatprep.mubr.bf16.mxu0 0
    %3480 = vmatmul.mubr.bf16.gmra.mxu0 %v3445
    %v3481 = vpop.f32.mrf.mxu0
    %v3482 = vadd.f32 0.0, %v3481
    %v3483 = vpop.f32.mrf.mxu0
    %v3484 = vpop.f32.mrf.mxu0
    %v3485 = vpop.f32.mrf.mxu0
    %3486 = vdwg.mxu0
    %3489 = vrot.lane.b32.xlu0 %v721, 64
    %v3490 = vpop.permute.xlu0 %3489
    %3491 = vrot.lane.b32.xlu0 %v722, 64
    %v3492 = vpop.permute.xlu0 %3491
    %v3496 = vsel %vm99, %v2755, 0
    %3498 = vmatprep.subr.bf16.mxu0 0
    %3499 = vmatpush1.bf16.msra.mxu0 0
    %3500 = vmatprep.subr.bf16.mxu0 0
    %3501 = vmatpush1.bf16.msra.mxu0 0
    %3502 = vmatprep.subr.bf16.mxu0 0
    %3503 = vmatpush1.bf16.msra.mxu0 0
    %3504 = vmatprep.subr.bf16.mxu0 0
    %3505 = vmatpush1.bf16.msra.mxu0 0
    %3506 = vmatprep.subr.bf16.mxu0 0
    %3507 = vmatpush1.bf16.msra.mxu0 0
    %3508 = vmatprep.subr.bf16.mxu0 0
    %3509 = vmatpush1.bf16.msra.mxu0 0
    %3510 = vmatprep.subr.bf16.mxu0 0
    %3511 = vmatpush1.bf16.msra.mxu0 %v3492
    %3512 = vmatprep.subr.bf16.mxu0 0
    %3513 = vmatpush1.bf16.msra.mxu0 %v3490
    %3514 = vmatprep.subr.bf16.mxu0 0
    %3515 = vmatpush2.bf16.msra.mxu0 0
    %3516 = vmatprep.subr.bf16.mxu0 0
    %3517 = vmatpush2.bf16.msra.mxu0 0
    %3518 = vmatprep.subr.bf16.mxu0 0
    %3519 = vmatpush2.bf16.msra.mxu0 0
    %3520 = vmatprep.subr.bf16.mxu0 0
    %3521 = vmatpush2.bf16.msra.mxu0 0
    %3522 = vmatprep.subr.bf16.mxu0 0
    %3523 = vmatpush2.bf16.msra.mxu0 0
    %3524 = vmatprep.subr.bf16.mxu0 0
    %3525 = vmatpush2.bf16.msra.mxu0 0
    %3526 = vmatprep.subr.bf16.mxu0 0
    %3527 = vmatpush2.bf16.msra.mxu0 0
    %3528 = vmatprep.subr.bf16.mxu0 0
    %3529 = vmatpush2.bf16.msra.mxu0 0
    %3530 = vmatprep.mubr.bf16.mxu0 0
    %3531 = vmatmul.mubr.bf16.gmra.mxu0 %v3496
    %v3532 = vpop.f32.mrf.mxu0
    %v3533 = vadd.f32 0.0, %v3532
    %v3534 = vpop.f32.mrf.mxu0
    %v3535 = vpop.f32.mrf.mxu0
    %v3536 = vpop.f32.mrf.mxu0
    %3537 = vdwg.mxu0
    %3540 = vrot.lane.b32.xlu0 %v723, 64
    %v3541 = vpop.permute.xlu0 %3540
    %3542 = vrot.lane.b32.xlu0 %v724, 64
    %v3543 = vpop.permute.xlu0 %3542
    %v3547 = vsel %vm99, %v2756, 0
    %3549 = vmatprep.subr.bf16.mxu0 0
    %3550 = vmatpush1.bf16.msra.mxu0 0
    %3551 = vmatprep.subr.bf16.mxu0 0
    %3552 = vmatpush1.bf16.msra.mxu0 0
    %3553 = vmatprep.subr.bf16.mxu0 0
    %3554 = vmatpush1.bf16.msra.mxu0 0
    %3555 = vmatprep.subr.bf16.mxu0 0
    %3556 = vmatpush1.bf16.msra.mxu0 0
    %3557 = vmatprep.subr.bf16.mxu0 0
    %3558 = vmatpush1.bf16.msra.mxu0 0
    %3559 = vmatprep.subr.bf16.mxu0 0
    %3560 = vmatpush1.bf16.msra.mxu0 0
    %3561 = vmatprep.subr.bf16.mxu0 0
    %3562 = vmatpush1.bf16.msra.mxu0 %v3543
    %3563 = vmatprep.subr.bf16.mxu0 0
    %3564 = vmatpush1.bf16.msra.mxu0 %v3541
    %3565 = vmatprep.subr.bf16.mxu0 0
    %3566 = vmatpush2.bf16.msra.mxu0 0
    %3567 = vmatprep.subr.bf16.mxu0 0
    %3568 = vmatpush2.bf16.msra.mxu0 0
    %3569 = vmatprep.subr.bf16.mxu0 0
    %3570 = vmatpush2.bf16.msra.mxu0 0
    %3571 = vmatprep.subr.bf16.mxu0 0
    %3572 = vmatpush2.bf16.msra.mxu0 0
    %3573 = vmatprep.subr.bf16.mxu0 0
    %3574 = vmatpush2.bf16.msra.mxu0 0
    %3575 = vmatprep.subr.bf16.mxu0 0
    %3576 = vmatpush2.bf16.msra.mxu0 0
    %3577 = vmatprep.subr.bf16.mxu0 0
    %3578 = vmatpush2.bf16.msra.mxu0 0
    %3579 = vmatprep.subr.bf16.mxu0 0
    %3580 = vmatpush2.bf16.msra.mxu0 0
    %3581 = vmatprep.mubr.bf16.mxu0 0
    %3582 = vmatmul.mubr.bf16.gmra.mxu0 %v3547
    %v3583 = vpop.f32.mrf.mxu0
    %v3584 = vadd.f32 0.0, %v3583
    %v3585 = vpop.f32.mrf.mxu0
    %v3586 = vpop.f32.mrf.mxu0
    %v3587 = vpop.f32.mrf.mxu0
    %3588 = vdwg.mxu0
    %3591 = vrot.lane.b32.xlu0 %v725, 64
    %v3592 = vpop.permute.xlu0 %3591
    %3593 = vrot.lane.b32.xlu0 %v726, 64
    %v3594 = vpop.permute.xlu0 %3593
    %v3598 = vsel %vm99, %v2757, 0
    %3600 = vmatprep.subr.bf16.mxu0 0
    %3601 = vmatpush1.bf16.msra.mxu0 0
    %3602 = vmatprep.subr.bf16.mxu0 0
    %3603 = vmatpush1.bf16.msra.mxu0 0
    %3604 = vmatprep.subr.bf16.mxu0 0
    %3605 = vmatpush1.bf16.msra.mxu0 0
    %3606 = vmatprep.subr.bf16.mxu0 0
    %3607 = vmatpush1.bf16.msra.mxu0 0
    %3608 = vmatprep.subr.bf16.mxu0 0
    %3609 = vmatpush1.bf16.msra.mxu0 0
    %3610 = vmatprep.subr.bf16.mxu0 0
    %3611 = vmatpush1.bf16.msra.mxu0 0
    %3612 = vmatprep.subr.bf16.mxu0 0
    %3613 = vmatpush1.bf16.msra.mxu0 %v3594
    %3614 = vmatprep.subr.bf16.mxu0 0
    %3615 = vmatpush1.bf16.msra.mxu0 %v3592
    %3616 = vmatprep.subr.bf16.mxu0 0
    %3617 = vmatpush2.bf16.msra.mxu0 0
    %3618 = vmatprep.subr.bf16.mxu0 0
    %3619 = vmatpush2.bf16.msra.mxu0 0
    %3620 = vmatprep.subr.bf16.mxu0 0
    %3621 = vmatpush2.bf16.msra.mxu0 0
    %3622 = vmatprep.subr.bf16.mxu0 0
    %3623 = vmatpush2.bf16.msra.mxu0 0
    %3624 = vmatprep.subr.bf16.mxu0 0
    %3625 = vmatpush2.bf16.msra.mxu0 0
    %3626 = vmatprep.subr.bf16.mxu0 0
    %3627 = vmatpush2.bf16.msra.mxu0 0
    %3628 = vmatprep.subr.bf16.mxu0 0
    %3629 = vmatpush2.bf16.msra.mxu0 0
    %3630 = vmatprep.subr.bf16.mxu0 0
    %3631 = vmatpush2.bf16.msra.mxu0 0
    %3632 = vmatprep.mubr.bf16.mxu0 0
    %3633 = vmatmul.mubr.bf16.gmra.mxu0 %v3598
    %v3634 = vpop.f32.mrf.mxu0
    %v3635 = vadd.f32 0.0, %v3634
    %v3636 = vpop.f32.mrf.mxu0
    %v3637 = vpop.f32.mrf.mxu0
    %v3638 = vpop.f32.mrf.mxu0
    %3639 = vdwg.mxu0
    %3642 = vrot.lane.b32.xlu0 %v727, 64
    %v3643 = vpop.permute.xlu0 %3642
    %3644 = vrot.lane.b32.xlu0 %v728, 64
    %v3645 = vpop.permute.xlu0 %3644
    %v3649 = vsel %vm99, %v2758, 0
    %3651 = vmatprep.subr.bf16.mxu0 0
    %3652 = vmatpush1.bf16.msra.mxu0 0
    %3653 = vmatprep.subr.bf16.mxu0 0
    %3654 = vmatpush1.bf16.msra.mxu0 0
    %3655 = vmatprep.subr.bf16.mxu0 0
    %3656 = vmatpush1.bf16.msra.mxu0 0
    %3657 = vmatprep.subr.bf16.mxu0 0
    %3658 = vmatpush1.bf16.msra.mxu0 0
    %3659 = vmatprep.subr.bf16.mxu0 0
    %3660 = vmatpush1.bf16.msra.mxu0 0
    %3661 = vmatprep.subr.bf16.mxu0 0
    %3662 = vmatpush1.bf16.msra.mxu0 0
    %3663 = vmatprep.subr.bf16.mxu0 0
    %3664 = vmatpush1.bf16.msra.mxu0 %v3645
    %3665 = vmatprep.subr.bf16.mxu0 0
    %3666 = vmatpush1.bf16.msra.mxu0 %v3643
    %3667 = vmatprep.subr.bf16.mxu0 0
    %3668 = vmatpush2.bf16.msra.mxu0 0
    %3669 = vmatprep.subr.bf16.mxu0 0
    %3670 = vmatpush2.bf16.msra.mxu0 0
    %3671 = vmatprep.subr.bf16.mxu0 0
    %3672 = vmatpush2.bf16.msra.mxu0 0
    %3673 = vmatprep.subr.bf16.mxu0 0
    %3674 = vmatpush2.bf16.msra.mxu0 0
    %3675 = vmatprep.subr.bf16.mxu0 0
    %3676 = vmatpush2.bf16.msra.mxu0 0
    %3677 = vmatprep.subr.bf16.mxu0 0
    %3678 = vmatpush2.bf16.msra.mxu0 0
    %3679 = vmatprep.subr.bf16.mxu0 0
    %3680 = vmatpush2.bf16.msra.mxu0 0
    %3681 = vmatprep.subr.bf16.mxu0 0
    %3682 = vmatpush2.bf16.msra.mxu0 0
    %3683 = vmatprep.mubr.bf16.mxu0 0
    %3684 = vmatmul.mubr.bf16.gmra.mxu0 %v3649
    %v3685 = vpop.f32.mrf.mxu0
    %v3686 = vadd.f32 0.0, %v3685
    %v3687 = vpop.f32.mrf.mxu0
    %v3688 = vpop.f32.mrf.mxu0
    %v3689 = vpop.f32.mrf.mxu0
    %3690 = vdwg.mxu0
    %3693 = vrot.lane.b32.xlu0 %v729, 64
    %v3694 = vpop.permute.xlu0 %3693
    %3695 = vrot.lane.b32.xlu0 %v730, 64
    %v3696 = vpop.permute.xlu0 %3695
    %v3700 = vsel %vm99, %v2759, 0
    %3702 = vmatprep.subr.bf16.mxu0 0
    %3703 = vmatpush1.bf16.msra.mxu0 0
    %3704 = vmatprep.subr.bf16.mxu0 0
    %3705 = vmatpush1.bf16.msra.mxu0 0
    %3706 = vmatprep.subr.bf16.mxu0 0
    %3707 = vmatpush1.bf16.msra.mxu0 0
    %3708 = vmatprep.subr.bf16.mxu0 0
    %3709 = vmatpush1.bf16.msra.mxu0 0
    %3710 = vmatprep.subr.bf16.mxu0 0
    %3711 = vmatpush1.bf16.msra.mxu0 0
    %3712 = vmatprep.subr.bf16.mxu0 0
    %3713 = vmatpush1.bf16.msra.mxu0 0
    %3714 = vmatprep.subr.bf16.mxu0 0
    %3715 = vmatpush1.bf16.msra.mxu0 %v3696
    %3716 = vmatprep.subr.bf16.mxu0 0
    %3717 = vmatpush1.bf16.msra.mxu0 %v3694
    %3718 = vmatprep.subr.bf16.mxu0 0
    %3719 = vmatpush2.bf16.msra.mxu0 0
    %3720 = vmatprep.subr.bf16.mxu0 0
    %3721 = vmatpush2.bf16.msra.mxu0 0
    %3722 = vmatprep.subr.bf16.mxu0 0
    %3723 = vmatpush2.bf16.msra.mxu0 0
    %3724 = vmatprep.subr.bf16.mxu0 0
    %3725 = vmatpush2.bf16.msra.mxu0 0
    %3726 = vmatprep.subr.bf16.mxu0 0
    %3727 = vmatpush2.bf16.msra.mxu0 0
    %3728 = vmatprep.subr.bf16.mxu0 0
    %3729 = vmatpush2.bf16.msra.mxu0 0
    %3730 = vmatprep.subr.bf16.mxu0 0
    %3731 = vmatpush2.bf16.msra.mxu0 0
    %3732 = vmatprep.subr.bf16.mxu0 0
    %3733 = vmatpush2.bf16.msra.mxu0 0
    %3734 = vmatprep.mubr.bf16.mxu0 0
    %3735 = vmatmul.mubr.bf16.gmra.mxu0 %v3700
    %v3736 = vpop.f32.mrf.mxu0
    %v3737 = vadd.f32 0.0, %v3736
    %v3738 = vpop.f32.mrf.mxu0
    %v3739 = vpop.f32.mrf.mxu0
    %v3740 = vpop.f32.mrf.mxu0
    %3741 = vdwg.mxu0
    %3744 = vrot.lane.b32.xlu0 %v731, 64
    %v3745 = vpop.permute.xlu0 %3744
    %3746 = vrot.lane.b32.xlu0 %v732, 64
    %v3747 = vpop.permute.xlu0 %3746
    %v3751 = vsel %vm99, %v2760, 0
    %3753 = vmatprep.subr.bf16.mxu0 0
    %3754 = vmatpush1.bf16.msra.mxu0 0
    %3755 = vmatprep.subr.bf16.mxu0 0
    %3756 = vmatpush1.bf16.msra.mxu0 0
    %3757 = vmatprep.subr.bf16.mxu0 0
    %3758 = vmatpush1.bf16.msra.mxu0 0
    %3759 = vmatprep.subr.bf16.mxu0 0
    %3760 = vmatpush1.bf16.msra.mxu0 0
    %3761 = vmatprep.subr.bf16.mxu0 0
    %3762 = vmatpush1.bf16.msra.mxu0 0
    %3763 = vmatprep.subr.bf16.mxu0 0
    %3764 = vmatpush1.bf16.msra.mxu0 0
    %3765 = vmatprep.subr.bf16.mxu0 0
    %3766 = vmatpush1.bf16.msra.mxu0 %v3747
    %3767 = vmatprep.subr.bf16.mxu0 0
    %3768 = vmatpush1.bf16.msra.mxu0 %v3745
    %3769 = vmatprep.subr.bf16.mxu0 0
    %3770 = vmatpush2.bf16.msra.mxu0 0
    %3771 = vmatprep.subr.bf16.mxu0 0
    %3772 = vmatpush2.bf16.msra.mxu0 0
    %3773 = vmatprep.subr.bf16.mxu0 0
    %3774 = vmatpush2.bf16.msra.mxu0 0
    %3775 = vmatprep.subr.bf16.mxu0 0
    %3776 = vmatpush2.bf16.msra.mxu0 0
    %3777 = vmatprep.subr.bf16.mxu0 0
    %3778 = vmatpush2.bf16.msra.mxu0 0
    %3779 = vmatprep.subr.bf16.mxu0 0
    %3780 = vmatpush2.bf16.msra.mxu0 0
    %3781 = vmatprep.subr.bf16.mxu0 0
    %3782 = vmatpush2.bf16.msra.mxu0 0
    %3783 = vmatprep.subr.bf16.mxu0 0
    %3784 = vmatpush2.bf16.msra.mxu0 0
    %3785 = vmatprep.mubr.bf16.mxu0 0
    %3786 = vmatmul.mubr.bf16.gmra.mxu0 %v3751
    %v3787 = vpop.f32.mrf.mxu0
    %v3788 = vadd.f32 0.0, %v3787
    %v3789 = vpop.f32.mrf.mxu0
    %v3790 = vpop.f32.mrf.mxu0
    %v3791 = vpop.f32.mrf.mxu0
    %3792 = vdwg.mxu0
    %3795 = vrot.lane.b32.xlu0 %v733, 64
    %v3796 = vpop.permute.xlu0 %3795
    %3797 = vrot.lane.b32.xlu0 %v734, 64
    %v3798 = vpop.permute.xlu0 %3797
    %v3802 = vsel %vm99, %v2761, 0
    %3804 = vmatprep.subr.bf16.mxu0 0
    %3805 = vmatpush1.bf16.msra.mxu0 0
    %3806 = vmatprep.subr.bf16.mxu0 0
    %3807 = vmatpush1.bf16.msra.mxu0 0
    %3808 = vmatprep.subr.bf16.mxu0 0
    %3809 = vmatpush1.bf16.msra.mxu0 0
    %3810 = vmatprep.subr.bf16.mxu0 0
    %3811 = vmatpush1.bf16.msra.mxu0 0
    %3812 = vmatprep.subr.bf16.mxu0 0
    %3813 = vmatpush1.bf16.msra.mxu0 0
    %3814 = vmatprep.subr.bf16.mxu0 0
    %3815 = vmatpush1.bf16.msra.mxu0 0
    %3816 = vmatprep.subr.bf16.mxu0 0
    %3817 = vmatpush1.bf16.msra.mxu0 %v3798
    %3818 = vmatprep.subr.bf16.mxu0 0
    %3819 = vmatpush1.bf16.msra.mxu0 %v3796
    %3820 = vmatprep.subr.bf16.mxu0 0
    %3821 = vmatpush2.bf16.msra.mxu0 0
    %3822 = vmatprep.subr.bf16.mxu0 0
    %3823 = vmatpush2.bf16.msra.mxu0 0
    %3824 = vmatprep.subr.bf16.mxu0 0
    %3825 = vmatpush2.bf16.msra.mxu0 0
    %3826 = vmatprep.subr.bf16.mxu0 0
    %3827 = vmatpush2.bf16.msra.mxu0 0
    %3828 = vmatprep.subr.bf16.mxu0 0
    %3829 = vmatpush2.bf16.msra.mxu0 0
    %3830 = vmatprep.subr.bf16.mxu0 0
    %3831 = vmatpush2.bf16.msra.mxu0 0
    %3832 = vmatprep.subr.bf16.mxu0 0
    %3833 = vmatpush2.bf16.msra.mxu0 0
    %3834 = vmatprep.subr.bf16.mxu0 0
    %3835 = vmatpush2.bf16.msra.mxu0 0
    %3836 = vmatprep.mubr.bf16.mxu0 0
    %3837 = vmatmul.mubr.bf16.gmra.mxu0 %v3802
    %v3838 = vpop.f32.mrf.mxu0
    %v3839 = vadd.f32 0.0, %v3838
    %v3840 = vpop.f32.mrf.mxu0
    %v3841 = vpop.f32.mrf.mxu0
    %v3842 = vpop.f32.mrf.mxu0
    %3843 = vdwg.mxu0
    %3846 = vrot.lane.b32.xlu0 %v735, 64
    %v3847 = vpop.permute.xlu0 %3846
    %3848 = vrot.lane.b32.xlu0 %v736, 64
    %v3849 = vpop.permute.xlu0 %3848
    %v3853 = vsel %vm99, %v2762, 0
    %3855 = vmatprep.subr.bf16.mxu0 0
    %3856 = vmatpush1.bf16.msra.mxu0 0
    %3857 = vmatprep.subr.bf16.mxu0 0
    %3858 = vmatpush1.bf16.msra.mxu0 0
    %3859 = vmatprep.subr.bf16.mxu0 0
    %3860 = vmatpush1.bf16.msra.mxu0 0
    %3861 = vmatprep.subr.bf16.mxu0 0
    %3862 = vmatpush1.bf16.msra.mxu0 0
    %3863 = vmatprep.subr.bf16.mxu0 0
    %3864 = vmatpush1.bf16.msra.mxu0 0
    %3865 = vmatprep.subr.bf16.mxu0 0
    %3866 = vmatpush1.bf16.msra.mxu0 0
    %3867 = vmatprep.subr.bf16.mxu0 0
    %3868 = vmatpush1.bf16.msra.mxu0 %v3849
    %3869 = vmatprep.subr.bf16.mxu0 0
    %3870 = vmatpush1.bf16.msra.mxu0 %v3847
    %3871 = vmatprep.subr.bf16.mxu0 0
    %3872 = vmatpush2.bf16.msra.mxu0 0
    %3873 = vmatprep.subr.bf16.mxu0 0
    %3874 = vmatpush2.bf16.msra.mxu0 0
    %3875 = vmatprep.subr.bf16.mxu0 0
    %3876 = vmatpush2.bf16.msra.mxu0 0
    %3877 = vmatprep.subr.bf16.mxu0 0
    %3878 = vmatpush2.bf16.msra.mxu0 0
    %3879 = vmatprep.subr.bf16.mxu0 0
    %3880 = vmatpush2.bf16.msra.mxu0 0
    %3881 = vmatprep.subr.bf16.mxu0 0
    %3882 = vmatpush2.bf16.msra.mxu0 0
    %3883 = vmatprep.subr.bf16.mxu0 0
    %3884 = vmatpush2.bf16.msra.mxu0 0
    %3885 = vmatprep.subr.bf16.mxu0 0
    %3886 = vmatpush2.bf16.msra.mxu0 0
    %3887 = vmatprep.mubr.bf16.mxu0 0
    %3888 = vmatmul.mubr.bf16.gmra.mxu0 %v3853
    %v3889 = vpop.f32.mrf.mxu0
    %v3890 = vadd.f32 0.0, %v3889
    %v3891 = vpop.f32.mrf.mxu0
    %v3892 = vpop.f32.mrf.mxu0
    %v3893 = vpop.f32.mrf.mxu0
    %3894 = vdwg.mxu0
    %3897 = vrot.lane.b32.xlu0 %v737, 64
    %v3898 = vpop.permute.xlu0 %3897
    %3899 = vrot.lane.b32.xlu0 %v738, 64
    %v3900 = vpop.permute.xlu0 %3899
    %v3904 = vsel %vm99, %v2763, 0
    %3906 = vmatprep.subr.bf16.mxu0 0
    %3907 = vmatpush1.bf16.msra.mxu0 0
    %3908 = vmatprep.subr.bf16.mxu0 0
    %3909 = vmatpush1.bf16.msra.mxu0 0
    %3910 = vmatprep.subr.bf16.mxu0 0
    %3911 = vmatpush1.bf16.msra.mxu0 0
    %3912 = vmatprep.subr.bf16.mxu0 0
    %3913 = vmatpush1.bf16.msra.mxu0 0
    %3914 = vmatprep.subr.bf16.mxu0 0
    %3915 = vmatpush1.bf16.msra.mxu0 0
    %3916 = vmatprep.subr.bf16.mxu0 0
    %3917 = vmatpush1.bf16.msra.mxu0 0
    %3918 = vmatprep.subr.bf16.mxu0 0
    %3919 = vmatpush1.bf16.msra.mxu0 %v3900
    %3920 = vmatprep.subr.bf16.mxu0 0
    %3921 = vmatpush1.bf16.msra.mxu0 %v3898
    %3922 = vmatprep.subr.bf16.mxu0 0
    %3923 = vmatpush2.bf16.msra.mxu0 0
    %3924 = vmatprep.subr.bf16.mxu0 0
    %3925 = vmatpush2.bf16.msra.mxu0 0
    %3926 = vmatprep.subr.bf16.mxu0 0
    %3927 = vmatpush2.bf16.msra.mxu0 0
    %3928 = vmatprep.subr.bf16.mxu0 0
    %3929 = vmatpush2.bf16.msra.mxu0 0
    %3930 = vmatprep.subr.bf16.mxu0 0
    %3931 = vmatpush2.bf16.msra.mxu0 0
    %3932 = vmatprep.subr.bf16.mxu0 0
    %3933 = vmatpush2.bf16.msra.mxu0 0
    %3934 = vmatprep.subr.bf16.mxu0 0
    %3935 = vmatpush2.bf16.msra.mxu0 0
    %3936 = vmatprep.subr.bf16.mxu0 0
    %3937 = vmatpush2.bf16.msra.mxu0 0
    %3938 = vmatprep.mubr.bf16.mxu0 0
    %3939 = vmatmul.mubr.bf16.gmra.mxu0 %v3904
    %v3940 = vpop.f32.mrf.mxu0
    %v3941 = vadd.f32 0.0, %v3940
    %v3942 = vpop.f32.mrf.mxu0
    %v3943 = vpop.f32.mrf.mxu0
    %v3944 = vpop.f32.mrf.mxu0
    %3945 = vdwg.mxu0
    %3948 = vrot.lane.b32.xlu0 %v739, 64
    %v3949 = vpop.permute.xlu0 %3948
    %3950 = vrot.lane.b32.xlu0 %v740, 64
    %v3951 = vpop.permute.xlu0 %3950
    %v3955 = vsel %vm99, %v2764, 0
    %3957 = vmatprep.subr.bf16.mxu0 0
    %3958 = vmatpush1.bf16.msra.mxu0 0
    %3959 = vmatprep.subr.bf16.mxu0 0
    %3960 = vmatpush1.bf16.msra.mxu0 0
    %3961 = vmatprep.subr.bf16.mxu0 0
    %3962 = vmatpush1.bf16.msra.mxu0 0
    %3963 = vmatprep.subr.bf16.mxu0 0
    %3964 = vmatpush1.bf16.msra.mxu0 0
    %3965 = vmatprep.subr.bf16.mxu0 0
    %3966 = vmatpush1.bf16.msra.mxu0 0
    %3967 = vmatprep.subr.bf16.mxu0 0
    %3968 = vmatpush1.bf16.msra.mxu0 0
    %3969 = vmatprep.subr.bf16.mxu0 0
    %3970 = vmatpush1.bf16.msra.mxu0 %v3951
    %3971 = vmatprep.subr.bf16.mxu0 0
    %3972 = vmatpush1.bf16.msra.mxu0 %v3949
    %3973 = vmatprep.subr.bf16.mxu0 0
    %3974 = vmatpush2.bf16.msra.mxu0 0
    %3975 = vmatprep.subr.bf16.mxu0 0
    %3976 = vmatpush2.bf16.msra.mxu0 0
    %3977 = vmatprep.subr.bf16.mxu0 0
    %3978 = vmatpush2.bf16.msra.mxu0 0
    %3979 = vmatprep.subr.bf16.mxu0 0
    %3980 = vmatpush2.bf16.msra.mxu0 0
    %3981 = vmatprep.subr.bf16.mxu0 0
    %3982 = vmatpush2.bf16.msra.mxu0 0
    %3983 = vmatprep.subr.bf16.mxu0 0
    %3984 = vmatpush2.bf16.msra.mxu0 0
    %3985 = vmatprep.subr.bf16.mxu0 0
    %3986 = vmatpush2.bf16.msra.mxu0 0
    %3987 = vmatprep.subr.bf16.mxu0 0
    %3988 = vmatpush2.bf16.msra.mxu0 0
    %3989 = vmatprep.mubr.bf16.mxu0 0
    %3990 = vmatmul.mubr.bf16.gmra.mxu0 %v3955
    %v3991 = vpop.f32.mrf.mxu0
    %v3992 = vadd.f32 0.0, %v3991
    %v3993 = vpop.f32.mrf.mxu0
    %v3994 = vpop.f32.mrf.mxu0
    %v3995 = vpop.f32.mrf.mxu0
    %3996 = vdwg.mxu0
    %3999 = vrot.lane.b32.xlu0 %v741, 64
    %v4000 = vpop.permute.xlu0 %3999
    %4001 = vrot.lane.b32.xlu0 %v742, 64
    %v4002 = vpop.permute.xlu0 %4001
    %v4006 = vsel %vm99, %v2765, 0
    %4008 = vmatprep.subr.bf16.mxu0 0
    %4009 = vmatpush1.bf16.msra.mxu0 0
    %4010 = vmatprep.subr.bf16.mxu0 0
    %4011 = vmatpush1.bf16.msra.mxu0 0
    %4012 = vmatprep.subr.bf16.mxu0 0
    %4013 = vmatpush1.bf16.msra.mxu0 0
    %4014 = vmatprep.subr.bf16.mxu0 0
    %4015 = vmatpush1.bf16.msra.mxu0 0
    %4016 = vmatprep.subr.bf16.mxu0 0
    %4017 = vmatpush1.bf16.msra.mxu0 0
    %4018 = vmatprep.subr.bf16.mxu0 0
    %4019 = vmatpush1.bf16.msra.mxu0 0
    %4020 = vmatprep.subr.bf16.mxu0 0
    %4021 = vmatpush1.bf16.msra.mxu0 %v4002
    %4022 = vmatprep.subr.bf16.mxu0 0
    %4023 = vmatpush1.bf16.msra.mxu0 %v4000
    %4024 = vmatprep.subr.bf16.mxu0 0
    %4025 = vmatpush2.bf16.msra.mxu0 0
    %4026 = vmatprep.subr.bf16.mxu0 0
    %4027 = vmatpush2.bf16.msra.mxu0 0
    %4028 = vmatprep.subr.bf16.mxu0 0
    %4029 = vmatpush2.bf16.msra.mxu0 0
    %4030 = vmatprep.subr.bf16.mxu0 0
    %4031 = vmatpush2.bf16.msra.mxu0 0
    %4032 = vmatprep.subr.bf16.mxu0 0
    %4033 = vmatpush2.bf16.msra.mxu0 0
    %4034 = vmatprep.subr.bf16.mxu0 0
    %4035 = vmatpush2.bf16.msra.mxu0 0
    %4036 = vmatprep.subr.bf16.mxu0 0
    %4037 = vmatpush2.bf16.msra.mxu0 0
    %4038 = vmatprep.subr.bf16.mxu0 0
    %4039 = vmatpush2.bf16.msra.mxu0 0
    %4040 = vmatprep.mubr.bf16.mxu0 0
    %4041 = vmatmul.mubr.bf16.gmra.mxu0 %v4006
    %v4042 = vpop.f32.mrf.mxu0
    %v4043 = vadd.f32 0.0, %v4042
    %v4044 = vpop.f32.mrf.mxu0
    %v4045 = vpop.f32.mrf.mxu0
    %v4046 = vpop.f32.mrf.mxu0
    %4047 = vdwg.mxu0
    %4050 = vrot.lane.b32.xlu0 %v743, 64
    %v4051 = vpop.permute.xlu0 %4050
    %4052 = vrot.lane.b32.xlu0 %v744, 64
    %v4053 = vpop.permute.xlu0 %4052
    %v4057 = vsel %vm99, %v2766, 0
    %4059 = vmatprep.subr.bf16.mxu0 0
    %4060 = vmatpush1.bf16.msra.mxu0 0
    %4061 = vmatprep.subr.bf16.mxu0 0
    %4062 = vmatpush1.bf16.msra.mxu0 0
    %4063 = vmatprep.subr.bf16.mxu0 0
    %4064 = vmatpush1.bf16.msra.mxu0 0
    %4065 = vmatprep.subr.bf16.mxu0 0
    %4066 = vmatpush1.bf16.msra.mxu0 0
    %4067 = vmatprep.subr.bf16.mxu0 0
    %4068 = vmatpush1.bf16.msra.mxu0 0
    %4069 = vmatprep.subr.bf16.mxu0 0
    %4070 = vmatpush1.bf16.msra.mxu0 0
    %4071 = vmatprep.subr.bf16.mxu0 0
    %4072 = vmatpush1.bf16.msra.mxu0 %v4053
    %4073 = vmatprep.subr.bf16.mxu0 0
    %4074 = vmatpush1.bf16.msra.mxu0 %v4051
    %4075 = vmatprep.subr.bf16.mxu0 0
    %4076 = vmatpush2.bf16.msra.mxu0 0
    %4077 = vmatprep.subr.bf16.mxu0 0
    %4078 = vmatpush2.bf16.msra.mxu0 0
    %4079 = vmatprep.subr.bf16.mxu0 0
    %4080 = vmatpush2.bf16.msra.mxu0 0
    %4081 = vmatprep.subr.bf16.mxu0 0
    %4082 = vmatpush2.bf16.msra.mxu0 0
    %4083 = vmatprep.subr.bf16.mxu0 0
    %4084 = vmatpush2.bf16.msra.mxu0 0
    %4085 = vmatprep.subr.bf16.mxu0 0
    %4086 = vmatpush2.bf16.msra.mxu0 0
    %4087 = vmatprep.subr.bf16.mxu0 0
    %4088 = vmatpush2.bf16.msra.mxu0 0
    %4089 = vmatprep.subr.bf16.mxu0 0
    %4090 = vmatpush2.bf16.msra.mxu0 0
    %4091 = vmatprep.mubr.bf16.mxu0 0
    %4092 = vmatmul.mubr.bf16.gmra.mxu0 %v4057
    %v4093 = vpop.f32.mrf.mxu0
    %v4094 = vadd.f32 0.0, %v4093
    %v4095 = vpop.f32.mrf.mxu0
    %v4096 = vpop.f32.mrf.mxu0
    %v4097 = vpop.f32.mrf.mxu0
    %4098 = vdwg.mxu0
    %4101 = vrot.lane.b32.xlu0 %v745, 64
    %v4102 = vpop.permute.xlu0 %4101
    %4103 = vrot.lane.b32.xlu0 %v746, 64
    %v4104 = vpop.permute.xlu0 %4103
    %v4108 = vsel %vm99, %v2767, 0
    %4110 = vmatprep.subr.bf16.mxu0 0
    %4111 = vmatpush1.bf16.msra.mxu0 0
    %4112 = vmatprep.subr.bf16.mxu0 0
    %4113 = vmatpush1.bf16.msra.mxu0 0
    %4114 = vmatprep.subr.bf16.mxu0 0
    %4115 = vmatpush1.bf16.msra.mxu0 0
    %4116 = vmatprep.subr.bf16.mxu0 0
    %4117 = vmatpush1.bf16.msra.mxu0 0
    %4118 = vmatprep.subr.bf16.mxu0 0
    %4119 = vmatpush1.bf16.msra.mxu0 0
    %4120 = vmatprep.subr.bf16.mxu0 0
    %4121 = vmatpush1.bf16.msra.mxu0 0
    %4122 = vmatprep.subr.bf16.mxu0 0
    %4123 = vmatpush1.bf16.msra.mxu0 %v4104
    %4124 = vmatprep.subr.bf16.mxu0 0
    %4125 = vmatpush1.bf16.msra.mxu0 %v4102
    %4126 = vmatprep.subr.bf16.mxu0 0
    %4127 = vmatpush2.bf16.msra.mxu0 0
    %4128 = vmatprep.subr.bf16.mxu0 0
    %4129 = vmatpush2.bf16.msra.mxu0 0
    %4130 = vmatprep.subr.bf16.mxu0 0
    %4131 = vmatpush2.bf16.msra.mxu0 0
    %4132 = vmatprep.subr.bf16.mxu0 0
    %4133 = vmatpush2.bf16.msra.mxu0 0
    %4134 = vmatprep.subr.bf16.mxu0 0
    %4135 = vmatpush2.bf16.msra.mxu0 0
    %4136 = vmatprep.subr.bf16.mxu0 0
    %4137 = vmatpush2.bf16.msra.mxu0 0
    %4138 = vmatprep.subr.bf16.mxu0 0
    %4139 = vmatpush2.bf16.msra.mxu0 0
    %4140 = vmatprep.subr.bf16.mxu0 0
    %4141 = vmatpush2.bf16.msra.mxu0 0
    %4142 = vmatprep.mubr.bf16.mxu0 0
    %4143 = vmatmul.mubr.bf16.gmra.mxu0 %v4108
    %v4144 = vpop.f32.mrf.mxu0
    %v4145 = vadd.f32 0.0, %v4144
    %v4146 = vpop.f32.mrf.mxu0
    %v4147 = vpop.f32.mrf.mxu0
    %v4148 = vpop.f32.mrf.mxu0
    %4149 = vdwg.mxu0
    %4152 = vrot.lane.b32.xlu0 %v747, 64
    %v4153 = vpop.permute.xlu0 %4152
    %4154 = vrot.lane.b32.xlu0 %v748, 64
    %v4155 = vpop.permute.xlu0 %4154
    %v4159 = vsel %vm99, %v2768, 0
    %4161 = vmatprep.subr.bf16.mxu0 0
    %4162 = vmatpush1.bf16.msra.mxu0 0
    %4163 = vmatprep.subr.bf16.mxu0 0
    %4164 = vmatpush1.bf16.msra.mxu0 0
    %4165 = vmatprep.subr.bf16.mxu0 0
    %4166 = vmatpush1.bf16.msra.mxu0 0
    %4167 = vmatprep.subr.bf16.mxu0 0
    %4168 = vmatpush1.bf16.msra.mxu0 0
    %4169 = vmatprep.subr.bf16.mxu0 0
    %4170 = vmatpush1.bf16.msra.mxu0 0
    %4171 = vmatprep.subr.bf16.mxu0 0
    %4172 = vmatpush1.bf16.msra.mxu0 0
    %4173 = vmatprep.subr.bf16.mxu0 0
    %4174 = vmatpush1.bf16.msra.mxu0 %v4155
    %4175 = vmatprep.subr.bf16.mxu0 0
    %4176 = vmatpush1.bf16.msra.mxu0 %v4153
    %4177 = vmatprep.subr.bf16.mxu0 0
    %4178 = vmatpush2.bf16.msra.mxu0 0
    %4179 = vmatprep.subr.bf16.mxu0 0
    %4180 = vmatpush2.bf16.msra.mxu0 0
    %4181 = vmatprep.subr.bf16.mxu0 0
    %4182 = vmatpush2.bf16.msra.mxu0 0
    %4183 = vmatprep.subr.bf16.mxu0 0
    %4184 = vmatpush2.bf16.msra.mxu0 0
    %4185 = vmatprep.subr.bf16.mxu0 0
    %4186 = vmatpush2.bf16.msra.mxu0 0
    %4187 = vmatprep.subr.bf16.mxu0 0
    %4188 = vmatpush2.bf16.msra.mxu0 0
    %4189 = vmatprep.subr.bf16.mxu0 0
    %4190 = vmatpush2.bf16.msra.mxu0 0
    %4191 = vmatprep.subr.bf16.mxu0 0
    %4192 = vmatpush2.bf16.msra.mxu0 0
    %4193 = vmatprep.mubr.bf16.mxu0 0
    %4194 = vmatmul.mubr.bf16.gmra.mxu0 %v4159
    %v4195 = vpop.f32.mrf.mxu0
    %v4196 = vadd.f32 0.0, %v4195
    %v4197 = vpop.f32.mrf.mxu0
    %v4198 = vpop.f32.mrf.mxu0
    %v4199 = vpop.f32.mrf.mxu0
    %4200 = vdwg.mxu0
    %4203 = vrot.lane.b32.xlu0 %v749, 64
    %v4204 = vpop.permute.xlu0 %4203
    %4205 = vrot.lane.b32.xlu0 %v750, 64
    %v4206 = vpop.permute.xlu0 %4205
    %v4210 = vsel %vm99, %v2769, 0
    %4212 = vmatprep.subr.bf16.mxu0 0
    %4213 = vmatpush1.bf16.msra.mxu0 0
    %4214 = vmatprep.subr.bf16.mxu0 0
    %4215 = vmatpush1.bf16.msra.mxu0 0
    %4216 = vmatprep.subr.bf16.mxu0 0
    %4217 = vmatpush1.bf16.msra.mxu0 0
    %4218 = vmatprep.subr.bf16.mxu0 0
    %4219 = vmatpush1.bf16.msra.mxu0 0
    %4220 = vmatprep.subr.bf16.mxu0 0
    %4221 = vmatpush1.bf16.msra.mxu0 0
    %4222 = vmatprep.subr.bf16.mxu0 0
    %4223 = vmatpush1.bf16.msra.mxu0 0
    %4224 = vmatprep.subr.bf16.mxu0 0
    %4225 = vmatpush1.bf16.msra.mxu0 %v4206
    %4226 = vmatprep.subr.bf16.mxu0 0
    %4227 = vmatpush1.bf16.msra.mxu0 %v4204
    %4228 = vmatprep.subr.bf16.mxu0 0
    %4229 = vmatpush2.bf16.msra.mxu0 0
    %4230 = vmatprep.subr.bf16.mxu0 0
    %4231 = vmatpush2.bf16.msra.mxu0 0
    %4232 = vmatprep.subr.bf16.mxu0 0
    %4233 = vmatpush2.bf16.msra.mxu0 0
    %4234 = vmatprep.subr.bf16.mxu0 0
    %4235 = vmatpush2.bf16.msra.mxu0 0
    %4236 = vmatprep.subr.bf16.mxu0 0
    %4237 = vmatpush2.bf16.msra.mxu0 0
    %4238 = vmatprep.subr.bf16.mxu0 0
    %4239 = vmatpush2.bf16.msra.mxu0 0
    %4240 = vmatprep.subr.bf16.mxu0 0
    %4241 = vmatpush2.bf16.msra.mxu0 0
    %4242 = vmatprep.subr.bf16.mxu0 0
    %4243 = vmatpush2.bf16.msra.mxu0 0
    %4244 = vmatprep.mubr.bf16.mxu0 0
    %4245 = vmatmul.mubr.bf16.gmra.mxu0 %v4210
    %v4246 = vpop.f32.mrf.mxu0
    %v4247 = vadd.f32 0.0, %v4246
    %v4248 = vpop.f32.mrf.mxu0
    %v4249 = vpop.f32.mrf.mxu0
    %v4250 = vpop.f32.mrf.mxu0
    %4251 = vdwg.mxu0
    %4254 = vrot.lane.b32.xlu0 %v751, 64
    %v4255 = vpop.permute.xlu0 %4254
    %4256 = vrot.lane.b32.xlu0 %v752, 64
    %v4257 = vpop.permute.xlu0 %4256
    %v4261 = vsel %vm99, %v2770, 0
    %4263 = vmatprep.subr.bf16.mxu0 0
    %4264 = vmatpush1.bf16.msra.mxu0 0
    %4265 = vmatprep.subr.bf16.mxu0 0
    %4266 = vmatpush1.bf16.msra.mxu0 0
    %4267 = vmatprep.subr.bf16.mxu0 0
    %4268 = vmatpush1.bf16.msra.mxu0 0
    %4269 = vmatprep.subr.bf16.mxu0 0
    %4270 = vmatpush1.bf16.msra.mxu0 0
    %4271 = vmatprep.subr.bf16.mxu0 0
    %4272 = vmatpush1.bf16.msra.mxu0 0
    %4273 = vmatprep.subr.bf16.mxu0 0
    %4274 = vmatpush1.bf16.msra.mxu0 0
    %4275 = vmatprep.subr.bf16.mxu0 0
    %4276 = vmatpush1.bf16.msra.mxu0 %v4257
    %4277 = vmatprep.subr.bf16.mxu0 0
    %4278 = vmatpush1.bf16.msra.mxu0 %v4255
    %4279 = vmatprep.subr.bf16.mxu0 0
    %4280 = vmatpush2.bf16.msra.mxu0 0
    %4281 = vmatprep.subr.bf16.mxu0 0
    %4282 = vmatpush2.bf16.msra.mxu0 0
    %4283 = vmatprep.subr.bf16.mxu0 0
    %4284 = vmatpush2.bf16.msra.mxu0 0
    %4285 = vmatprep.subr.bf16.mxu0 0
    %4286 = vmatpush2.bf16.msra.mxu0 0
    %4287 = vmatprep.subr.bf16.mxu0 0
    %4288 = vmatpush2.bf16.msra.mxu0 0
    %4289 = vmatprep.subr.bf16.mxu0 0
    %4290 = vmatpush2.bf16.msra.mxu0 0
    %4291 = vmatprep.subr.bf16.mxu0 0
    %4292 = vmatpush2.bf16.msra.mxu0 0
    %4293 = vmatprep.subr.bf16.mxu0 0
    %4294 = vmatpush2.bf16.msra.mxu0 0
    %4295 = vmatprep.mubr.bf16.mxu0 0
    %4296 = vmatmul.mubr.bf16.gmra.mxu0 %v4261
    %v4297 = vpop.f32.mrf.mxu0
    %v4298 = vadd.f32 0.0, %v4297
    %v4299 = vpop.f32.mrf.mxu0
    %v4300 = vpop.f32.mrf.mxu0
    %v4301 = vpop.f32.mrf.mxu0
    %4302 = vdwg.mxu0
    %4305 = vrot.lane.b32.xlu0 %v753, 64
    %v4306 = vpop.permute.xlu0 %4305
    %4307 = vrot.lane.b32.xlu0 %v754, 64
    %v4308 = vpop.permute.xlu0 %4307
    %v4312 = vsel %vm99, %v2771, 0
    %4314 = vmatprep.subr.bf16.mxu0 0
    %4315 = vmatpush1.bf16.msra.mxu0 0
    %4316 = vmatprep.subr.bf16.mxu0 0
    %4317 = vmatpush1.bf16.msra.mxu0 0
    %4318 = vmatprep.subr.bf16.mxu0 0
    %4319 = vmatpush1.bf16.msra.mxu0 0
    %4320 = vmatprep.subr.bf16.mxu0 0
    %4321 = vmatpush1.bf16.msra.mxu0 0
    %4322 = vmatprep.subr.bf16.mxu0 0
    %4323 = vmatpush1.bf16.msra.mxu0 0
    %4324 = vmatprep.subr.bf16.mxu0 0
    %4325 = vmatpush1.bf16.msra.mxu0 0
    %4326 = vmatprep.subr.bf16.mxu0 0
    %4327 = vmatpush1.bf16.msra.mxu0 %v4308
    %4328 = vmatprep.subr.bf16.mxu0 0
    %4329 = vmatpush1.bf16.msra.mxu0 %v4306
    %4330 = vmatprep.subr.bf16.mxu0 0
    %4331 = vmatpush2.bf16.msra.mxu0 0
    %4332 = vmatprep.subr.bf16.mxu0 0
    %4333 = vmatpush2.bf16.msra.mxu0 0
    %4334 = vmatprep.subr.bf16.mxu0 0
    %4335 = vmatpush2.bf16.msra.mxu0 0
    %4336 = vmatprep.subr.bf16.mxu0 0
    %4337 = vmatpush2.bf16.msra.mxu0 0
    %4338 = vmatprep.subr.bf16.mxu0 0
    %4339 = vmatpush2.bf16.msra.mxu0 0
    %4340 = vmatprep.subr.bf16.mxu0 0
    %4341 = vmatpush2.bf16.msra.mxu0 0
    %4342 = vmatprep.subr.bf16.mxu0 0
    %4343 = vmatpush2.bf16.msra.mxu0 0
    %4344 = vmatprep.subr.bf16.mxu0 0
    %4345 = vmatpush2.bf16.msra.mxu0 0
    %4346 = vmatprep.mubr.bf16.mxu0 0
    %4347 = vmatmul.mubr.bf16.gmra.mxu0 %v4312
    %v4348 = vpop.f32.mrf.mxu0
    %v4349 = vadd.f32 0.0, %v4348
    %v4350 = vpop.f32.mrf.mxu0
    %v4351 = vpop.f32.mrf.mxu0
    %v4352 = vpop.f32.mrf.mxu0
    %4353 = vdwg.mxu0
    %4356 = vrot.lane.b32.xlu0 %v755, 64
    %v4357 = vpop.permute.xlu0 %4356
    %4358 = vrot.lane.b32.xlu0 %v756, 64
    %v4359 = vpop.permute.xlu0 %4358
    %v4363 = vsel %vm99, %v2772, 0
    %4365 = vmatprep.subr.bf16.mxu0 0
    %4366 = vmatpush1.bf16.msra.mxu0 0
    %4367 = vmatprep.subr.bf16.mxu0 0
    %4368 = vmatpush1.bf16.msra.mxu0 0
    %4369 = vmatprep.subr.bf16.mxu0 0
    %4370 = vmatpush1.bf16.msra.mxu0 0
    %4371 = vmatprep.subr.bf16.mxu0 0
    %4372 = vmatpush1.bf16.msra.mxu0 0
    %4373 = vmatprep.subr.bf16.mxu0 0
    %4374 = vmatpush1.bf16.msra.mxu0 0
    %4375 = vmatprep.subr.bf16.mxu0 0
    %4376 = vmatpush1.bf16.msra.mxu0 0
    %4377 = vmatprep.subr.bf16.mxu0 0
    %4378 = vmatpush1.bf16.msra.mxu0 %v4359
    %4379 = vmatprep.subr.bf16.mxu0 0
    %4380 = vmatpush1.bf16.msra.mxu0 %v4357
    %4381 = vmatprep.subr.bf16.mxu0 0
    %4382 = vmatpush2.bf16.msra.mxu0 0
    %4383 = vmatprep.subr.bf16.mxu0 0
    %4384 = vmatpush2.bf16.msra.mxu0 0
    %4385 = vmatprep.subr.bf16.mxu0 0
    %4386 = vmatpush2.bf16.msra.mxu0 0
    %4387 = vmatprep.subr.bf16.mxu0 0
    %4388 = vmatpush2.bf16.msra.mxu0 0
    %4389 = vmatprep.subr.bf16.mxu0 0
    %4390 = vmatpush2.bf16.msra.mxu0 0
    %4391 = vmatprep.subr.bf16.mxu0 0
    %4392 = vmatpush2.bf16.msra.mxu0 0
    %4393 = vmatprep.subr.bf16.mxu0 0
    %4394 = vmatpush2.bf16.msra.mxu0 0
    %4395 = vmatprep.subr.bf16.mxu0 0
    %4396 = vmatpush2.bf16.msra.mxu0 0
    %4397 = vmatprep.mubr.bf16.mxu0 0
    %4398 = vmatmul.mubr.bf16.gmra.mxu0 %v4363
    %v4399 = vpop.f32.mrf.mxu0
    %v4400 = vadd.f32 0.0, %v4399
    %v4401 = vpop.f32.mrf.mxu0
    %v4402 = vpop.f32.mrf.mxu0
    %v4403 = vpop.f32.mrf.mxu0
    %4404 = vdwg.mxu0
    %v4406 = vsel %vm99, %v2678, 0
    %v4409 = vsel %vm99, %v2680, 0
    %v4412 = vsel %vm99, %v2682, 0
    %v4415 = vsel %vm99, %v2684, 0
    %v4418 = vsel %vm99, %v2686, 0
    %v4421 = vsel %vm99, %v2688, 0
    %v4424 = vsel %vm99, %v2690, 0
    %v4427 = vsel %vm99, %v2692, 0
    %v4430 = vsel %vm99, %v2694, 0
    %v4433 = vsel %vm99, %v2696, 0
    %v4436 = vsel %vm99, %v2698, 0
    %v4439 = vsel %vm99, %v2700, 0
    %v4442 = vsel %vm99, %v2702, 0
    %v4445 = vsel %vm99, %v2704, 0
    %v4448 = vsel %vm99, %v2706, 0
    %v4451 = vsel %vm99, %v2708, 0
    %v4454 = vsel %vm99, %v2710, 0
    %v4457 = vsel %vm99, %v2712, 0
    %v4460 = vsel %vm99, %v2714, 0
    %v4463 = vsel %vm99, %v2716, 0
    %v4466 = vsel %vm99, %v2718, 0
    %v4469 = vsel %vm99, %v2720, 0
    %v4472 = vsel %vm99, %v2722, 0
    %v4475 = vsel %vm99, %v2724, 0
    %v4478 = vsel %vm99, %v2726, 0
    %v4481 = vsel %vm99, %v2728, 0
    %v4484 = vsel %vm99, %v2730, 0
    %v4487 = vsel %vm99, %v2732, 0
    %v4490 = vsel %vm99, %v2734, 0
    %v4493 = vsel %vm99, %v2736, 0
    %v4496 = vsel %vm99, %v2738, 0
    %v4499 = vsel %vm99, %v2740, 0
    %4501 = vmatprep.subr.mxu0 0.0
    %4502 = vmatpush1.msra.mxu0 0.0
    %4503 = vmatprep.subr.mxu0 0.0
    %4504 = vmatpush1.msra.mxu0 0.0
    %4505 = vmatprep.subr.mxu0 0.0
    %4506 = vmatpush1.msra.mxu0 0.0
    %4507 = vmatprep.subr.mxu0 0.0
    %4508 = vmatpush1.msra.mxu0 0.0
    %4509 = vmatprep.subr.mxu0 0.0
    %4510 = vmatpush1.msra.mxu0 0.0
    %4511 = vmatprep.subr.mxu0 0.0
    %4512 = vmatpush1.msra.mxu0 0.0
    %4513 = vmatprep.subr.mxu0 0.0
    %4514 = vmatpush1.msra.mxu0 0.0
    %4515 = vmatprep.subr.mxu0 0.0
    %4516 = vmatpush1.msra.mxu0 0.0
    %4517 = vmatprep.subr.mxu0 0.0
    %4518 = vmatpush1.msra.mxu0 0.0
    %4519 = vmatprep.subr.mxu0 0.0
    %4520 = vmatpush1.msra.mxu0 0.0
    %4521 = vmatprep.subr.mxu0 0.0
    %4522 = vmatpush1.msra.mxu0 0.0
    %4523 = vmatprep.subr.mxu0 0.0
    %4524 = vmatpush1.msra.mxu0 0.0
    %4525 = vmatprep.subr.mxu0 0.0
    %4526 = vmatpush1.msra.mxu0 %v312
    %4527 = vmatprep.subr.mxu0 0.0
    %4528 = vmatpush1.msra.mxu0 %v311
    %4529 = vmatprep.subr.mxu0 0.0
    %4530 = vmatpush1.msra.mxu0 %v310
    %4531 = vmatprep.subr.mxu0 0.0
    %4532 = vmatpush1.msra.mxu0 %v309
    %4533 = vmatprep.subr.mxu0 0.0
    %4534 = vmatpush2.msra.mxu0 0.0
    %4535 = vmatprep.subr.mxu0 0.0
    %4536 = vmatpush2.msra.mxu0 0.0
    %4537 = vmatprep.subr.mxu0 0.0
    %4538 = vmatpush2.msra.mxu0 0.0
    %4539 = vmatprep.subr.mxu0 0.0
    %4540 = vmatpush2.msra.mxu0 0.0
    %4541 = vmatprep.subr.mxu0 0.0
    %4542 = vmatpush2.msra.mxu0 0.0
    %4543 = vmatprep.subr.mxu0 0.0
    %4544 = vmatpush2.msra.mxu0 0.0
    %4545 = vmatprep.subr.mxu0 0.0
    %4546 = vmatpush2.msra.mxu0 0.0
    %4547 = vmatprep.subr.mxu0 0.0
    %4548 = vmatpush2.msra.mxu0 0.0
    %4549 = vmatprep.subr.mxu0 0.0
    %4550 = vmatpush2.msra.mxu0 0.0
    %4551 = vmatprep.subr.mxu0 0.0
    %4552 = vmatpush2.msra.mxu0 0.0
    %4553 = vmatprep.subr.mxu0 0.0
    %4554 = vmatpush2.msra.mxu0 0.0
    %4555 = vmatprep.subr.mxu0 0.0
    %4556 = vmatpush2.msra.mxu0 0.0
    %4557 = vmatprep.subr.mxu0 0.0
    %4558 = vmatpush2.msra.mxu0 0.0
    %4559 = vmatprep.subr.mxu0 0.0
    %4560 = vmatpush2.msra.mxu0 0.0
    %4561 = vmatprep.subr.mxu0 0.0
    %4562 = vmatpush2.msra.mxu0 0.0
    %4563 = vmatprep.subr.mxu0 0.0
    %4564 = vmatpush2.msra.mxu0 0.0
    %4565 = vmatprep.mubr.f32.mxu0 0.0
    %4566 = vmatmul.mubr.f32.gmra.mxu0 %v4406
    %v4567 = vpop.f32.mrf.mxu0
    %v4568 = vadd.f32 0.0, %v4567
    %v4569 = vpop.f32.mrf.mxu0
    %4570 = vmatprep.mubr.f32.mxu0 0.0
    %4571 = vmatmul.mubr.f32.gmra.mxu0 %v4409
    %v4572 = vpop.f32.mrf.mxu0
    %v4573 = vadd.f32 0.0, %v4572
    %v4574 = vpop.f32.mrf.mxu0
    %4575 = vmatprep.mubr.f32.mxu0 0.0
    %4576 = vmatmul.mubr.f32.gmra.mxu0 %v4412
    %v4577 = vpop.f32.mrf.mxu0
    %v4578 = vadd.f32 0.0, %v4577
    %v4579 = vpop.f32.mrf.mxu0
    %4580 = vmatprep.mubr.f32.mxu0 0.0
    %4581 = vmatmul.mubr.f32.gmra.mxu0 %v4415
    %v4582 = vpop.f32.mrf.mxu0
    %v4583 = vadd.f32 0.0, %v4582
    %v4584 = vpop.f32.mrf.mxu0
    %4585 = vmatprep.mubr.f32.mxu0 0.0
    %4586 = vmatmul.mubr.f32.gmra.mxu0 %v4418
    %v4587 = vpop.f32.mrf.mxu0
    %v4588 = vadd.f32 0.0, %v4587
    %v4589 = vpop.f32.mrf.mxu0
    %4590 = vmatprep.mubr.f32.mxu0 0.0
    %4591 = vmatmul.mubr.f32.gmra.mxu0 %v4421
    %v4592 = vpop.f32.mrf.mxu0
    %v4593 = vadd.f32 0.0, %v4592
    %v4594 = vpop.f32.mrf.mxu0
    %4595 = vmatprep.mubr.f32.mxu0 0.0
    %4596 = vmatmul.mubr.f32.gmra.mxu0 %v4424
    %v4597 = vpop.f32.mrf.mxu0
    %v4598 = vadd.f32 0.0, %v4597
    %v4599 = vpop.f32.mrf.mxu0
    %4600 = vmatprep.mubr.f32.mxu0 0.0
    %4601 = vmatmul.mubr.f32.gmra.mxu0 %v4427
    %v4602 = vpop.f32.mrf.mxu0
    %v4603 = vadd.f32 0.0, %v4602
    %v4604 = vpop.f32.mrf.mxu0
    %4605 = vmatprep.mubr.f32.mxu0 0.0
    %4606 = vmatmul.mubr.f32.gmra.mxu0 %v4430
    %v4607 = vpop.f32.mrf.mxu0
    %v4608 = vadd.f32 0.0, %v4607
    %v4609 = vpop.f32.mrf.mxu0
    %4610 = vmatprep.mubr.f32.mxu0 0.0
    %4611 = vmatmul.mubr.f32.gmra.mxu0 %v4433
    %v4612 = vpop.f32.mrf.mxu0
    %v4613 = vadd.f32 0.0, %v4612
    %v4614 = vpop.f32.mrf.mxu0
    %4615 = vmatprep.mubr.f32.mxu0 0.0
    %4616 = vmatmul.mubr.f32.gmra.mxu0 %v4436
    %v4617 = vpop.f32.mrf.mxu0
    %v4618 = vadd.f32 0.0, %v4617
    %v4619 = vpop.f32.mrf.mxu0
    %4620 = vmatprep.mubr.f32.mxu0 0.0
    %4621 = vmatmul.mubr.f32.gmra.mxu0 %v4439
    %v4622 = vpop.f32.mrf.mxu0
    %v4623 = vadd.f32 0.0, %v4622
    %v4624 = vpop.f32.mrf.mxu0
    %4625 = vmatprep.mubr.f32.mxu0 0.0
    %4626 = vmatmul.mubr.f32.gmra.mxu0 %v4442
    %v4627 = vpop.f32.mrf.mxu0
    %v4628 = vadd.f32 0.0, %v4627
    %v4629 = vpop.f32.mrf.mxu0
    %4630 = vmatprep.mubr.f32.mxu0 0.0
    %4631 = vmatmul.mubr.f32.gmra.mxu0 %v4445
    %v4632 = vpop.f32.mrf.mxu0
    %v4633 = vadd.f32 0.0, %v4632
    %v4634 = vpop.f32.mrf.mxu0
    %4635 = vmatprep.mubr.f32.mxu0 0.0
    %4636 = vmatmul.mubr.f32.gmra.mxu0 %v4448
    %v4637 = vpop.f32.mrf.mxu0
    %v4638 = vadd.f32 0.0, %v4637
    %v4639 = vpop.f32.mrf.mxu0
    %4640 = vmatprep.mubr.f32.mxu0 0.0
    %4641 = vmatmul.mubr.f32.gmra.mxu0 %v4451
    %v4642 = vpop.f32.mrf.mxu0
    %v4643 = vadd.f32 0.0, %v4642
    %v4644 = vpop.f32.mrf.mxu0
    %4645 = vmatprep.mubr.f32.mxu0 0.0
    %4646 = vmatmul.mubr.f32.gmra.mxu0 %v4454
    %v4647 = vpop.f32.mrf.mxu0
    %v4648 = vadd.f32 0.0, %v4647
    %v4649 = vpop.f32.mrf.mxu0
    %4650 = vmatprep.mubr.f32.mxu0 0.0
    %4651 = vmatmul.mubr.f32.gmra.mxu0 %v4457
    %v4652 = vpop.f32.mrf.mxu0
    %v4653 = vadd.f32 0.0, %v4652
    %v4654 = vpop.f32.mrf.mxu0
    %4655 = vmatprep.mubr.f32.mxu0 0.0
    %4656 = vmatmul.mubr.f32.gmra.mxu0 %v4460
    %v4657 = vpop.f32.mrf.mxu0
    %v4658 = vadd.f32 0.0, %v4657
    %v4659 = vpop.f32.mrf.mxu0
    %4660 = vmatprep.mubr.f32.mxu0 0.0
    %4661 = vmatmul.mubr.f32.gmra.mxu0 %v4463
    %v4662 = vpop.f32.mrf.mxu0
    %v4663 = vadd.f32 0.0, %v4662
    %v4664 = vpop.f32.mrf.mxu0
    %4665 = vmatprep.mubr.f32.mxu0 0.0
    %4666 = vmatmul.mubr.f32.gmra.mxu0 %v4466
    %v4667 = vpop.f32.mrf.mxu0
    %v4668 = vadd.f32 0.0, %v4667
    %v4669 = vpop.f32.mrf.mxu0
    %4670 = vmatprep.mubr.f32.mxu0 0.0
    %4671 = vmatmul.mubr.f32.gmra.mxu0 %v4469
    %v4672 = vpop.f32.mrf.mxu0
    %v4673 = vadd.f32 0.0, %v4672
    %v4674 = vpop.f32.mrf.mxu0
    %4675 = vmatprep.mubr.f32.mxu0 0.0
    %4676 = vmatmul.mubr.f32.gmra.mxu0 %v4472
    %v4677 = vpop.f32.mrf.mxu0
    %v4678 = vadd.f32 0.0, %v4677
    %v4679 = vpop.f32.mrf.mxu0
    %4680 = vmatprep.mubr.f32.mxu0 0.0
    %4681 = vmatmul.mubr.f32.gmra.mxu0 %v4475
    %v4682 = vpop.f32.mrf.mxu0
    %v4683 = vadd.f32 0.0, %v4682
    %v4684 = vpop.f32.mrf.mxu0
    %4685 = vmatprep.mubr.f32.mxu0 0.0
    %4686 = vmatmul.mubr.f32.gmra.mxu0 %v4478
    %v4687 = vpop.f32.mrf.mxu0
    %v4688 = vadd.f32 0.0, %v4687
    %v4689 = vpop.f32.mrf.mxu0
    %4690 = vmatprep.mubr.f32.mxu0 0.0
    %4691 = vmatmul.mubr.f32.gmra.mxu0 %v4481
    %v4692 = vpop.f32.mrf.mxu0
    %v4693 = vadd.f32 0.0, %v4692
    %v4694 = vpop.f32.mrf.mxu0
    %4695 = vmatprep.mubr.f32.mxu0 0.0
    %4696 = vmatmul.mubr.f32.gmra.mxu0 %v4484
    %v4697 = vpop.f32.mrf.mxu0
    %v4698 = vadd.f32 0.0, %v4697
    %v4699 = vpop.f32.mrf.mxu0
    %4700 = vmatprep.mubr.f32.mxu0 0.0
    %4701 = vmatmul.mubr.f32.gmra.mxu0 %v4487
    %v4702 = vpop.f32.mrf.mxu0
    %v4703 = vadd.f32 0.0, %v4702
    %v4704 = vpop.f32.mrf.mxu0
    %4705 = vmatprep.mubr.f32.mxu0 0.0
    %4706 = vmatmul.mubr.f32.gmra.mxu0 %v4490
    %v4707 = vpop.f32.mrf.mxu0
    %v4708 = vadd.f32 0.0, %v4707
    %v4709 = vpop.f32.mrf.mxu0
    %4710 = vmatprep.mubr.f32.mxu0 0.0
    %4711 = vmatmul.mubr.f32.gmra.mxu0 %v4493
    %v4712 = vpop.f32.mrf.mxu0
    %v4713 = vadd.f32 0.0, %v4712
    %v4714 = vpop.f32.mrf.mxu0
    %4715 = vmatprep.mubr.f32.mxu0 0.0
    %4716 = vmatmul.mubr.f32.gmra.mxu0 %v4496
    %v4717 = vpop.f32.mrf.mxu0
    %v4718 = vadd.f32 0.0, %v4717
    %v4719 = vpop.f32.mrf.mxu0
    %4720 = vmatprep.mubr.f32.mxu0 0.0
    %4721 = vmatmul.mubr.f32.gmra.mxu0 %v4499
    %v4722 = vpop.f32.mrf.mxu0
    %v4723 = vadd.f32 0.0, %v4722
    %v4724 = vpop.f32.mrf.mxu0
    %4725 = vdwg.mxu0
    %v4726 = vrcp.pop %v4568
    %v4727 = vrcp.pop %v4573
    %v4728 = vrcp.pop %v4578
    %v4729 = vrcp.pop %v4583
    %v4730 = vrcp.pop %v4588
    %v4731 = vrcp.pop %v4593
    %v4732 = vrcp.pop %v4598
    %v4733 = vrcp.pop %v4603
    %v4734 = vrcp.pop %v4608
    %v4735 = vrcp.pop %v4613
    %v4736 = vrcp.pop %v4618
    %v4737 = vrcp.pop %v4623
    %v4738 = vrcp.pop %v4628
    %v4739 = vrcp.pop %v4633
    %v4740 = vrcp.pop %v4638
    %v4741 = vrcp.pop %v4643
    %v4742 = vrcp.pop %v4648
    %v4743 = vrcp.pop %v4653
    %v4744 = vrcp.pop %v4658
    %v4745 = vrcp.pop %v4663
    %v4746 = vrcp.pop %v4668
    %v4747 = vrcp.pop %v4673
    %v4748 = vrcp.pop %v4678
    %v4749 = vrcp.pop %v4683
    %v4750 = vrcp.pop %v4688
    %v4751 = vrcp.pop %v4693
    %v4752 = vrcp.pop %v4698
    %v4753 = vrcp.pop %v4703
    %v4754 = vrcp.pop %v4708
    %v4755 = vrcp.pop %v4713
    %v4756 = vrcp.pop %v4718
    %v4757 = vrcp.pop %v4723
    %v4758 = vmul.f32 %v2819, %v4726
    %v4759 = vmul.f32 %v2870, %v4727
    %v4760 = vmul.f32 %v2921, %v4728
    %v4761 = vmul.f32 %v2972, %v4729
    %v4762 = vmul.f32 %v3023, %v4730
    %v4763 = vmul.f32 %v3074, %v4731
    %v4764 = vmul.f32 %v3125, %v4732
    %v4765 = vmul.f32 %v3176, %v4733
    %v4766 = vmul.f32 %v3227, %v4734
    %v4767 = vmul.f32 %v3278, %v4735
    %v4768 = vmul.f32 %v3329, %v4736
    %v4769 = vmul.f32 %v3380, %v4737
    %v4770 = vmul.f32 %v3431, %v4738
    %v4771 = vmul.f32 %v3482, %v4739
    %v4772 = vmul.f32 %v3533, %v4740
    %v4773 = vmul.f32 %v3584, %v4741
    %v4774 = vmul.f32 %v3635, %v4742
    %v4775 = vmul.f32 %v3686, %v4743
    %v4776 = vmul.f32 %v3737, %v4744
    %v4777 = vmul.f32 %v3788, %v4745
    %v4778 = vmul.f32 %v3839, %v4746
    %v4779 = vmul.f32 %v3890, %v4747
    %v4780 = vmul.f32 %v3941, %v4748
    %v4781 = vmul.f32 %v3992, %v4749
    %v4782 = vmul.f32 %v4043, %v4750
    %v4783 = vmul.f32 %v4094, %v4751
    %v4784 = vmul.f32 %v4145, %v4752
    %v4785 = vmul.f32 %v4196, %v4753
    %v4786 = vmul.f32 %v4247, %v4754
    %v4787 = vmul.f32 %v4298, %v4755
    %v4788 = vmul.f32 %v4349, %v4756
    %v4789 = vmul.f32 %v4400, %v4757
    %v4790 = vpack.c.bf16 %v4759, %v4758
    %v4791 = vpack.c.bf16 %v4761, %v4760
    %v4792 = vpack.c.bf16 %v4763, %v4762
    %v4793 = vpack.c.bf16 %v4765, %v4764
    %v4794 = vpack.c.bf16 %v4767, %v4766
    %v4795 = vpack.c.bf16 %v4769, %v4768
    %v4796 = vpack.c.bf16 %v4771, %v4770
    %v4797 = vpack.c.bf16 %v4773, %v4772
    %v4798 = vpack.c.bf16 %v4775, %v4774
    %v4799 = vpack.c.bf16 %v4777, %v4776
    %v4800 = vpack.c.bf16 %v4779, %v4778
    %v4801 = vpack.c.bf16 %v4781, %v4780
    %v4802 = vpack.c.bf16 %v4783, %v4782
    %v4803 = vpack.c.bf16 %v4785, %v4784
    %v4804 = vpack.c.bf16 %v4787, %v4786
    %v4805 = vpack.c.bf16 %v4789, %v4788
    %v4806 = vld [vmem:[%s5] sm:$0xf]
    %v4807 = vld [vmem:[%s5 + $0x4] sm:$0xf]
    %v4808 = vld [vmem:[%s5 + $0x8] sm:$0xf]
    %v4809 = vld [vmem:[%s5 + $0xc] sm:$0xf]
    %v4810 = vld [vmem:[%s6] sm:$0x1]
    %v4812 = vlaneseq
    %v4813 = vshrl.u32 %v4812, 7
    %v4814 = vsub.s32 0, %v4813
    %v4815 = vrot.slane %v4810, %v4814
    %v4821 = vunpack.c.l.b16 %v4806
    %v4822 = vunpack.c.l.b16 %v4807
    %v4823 = vunpack.c.l.b16 %v4808
    %v4824 = vunpack.c.l.b16 %v4809
    %v4825 = vpack.c.b16 %v4822, %v4821
    %v4826 = vpack.c.b16 %v4824, %v4823
    %v4830 = vsel %vm99, %v4790, 0
    %v4833 = vsel %vm99, %v4791, 0
    %v4836 = vsel %vm99, %v4792, 0
    %v4839 = vsel %vm99, %v4793, 0
    %v4842 = vsel %vm99, %v4794, 0
    %v4845 = vsel %vm99, %v4795, 0
    %v4848 = vsel %vm99, %v4796, 0
    %v4851 = vsel %vm99, %v4797, 0
    %v4854 = vsel %vm99, %v4798, 0
    %v4857 = vsel %vm99, %v4799, 0
    %v4860 = vsel %vm99, %v4800, 0
    %v4863 = vsel %vm99, %v4801, 0
    %v4866 = vsel %vm99, %v4802, 0
    %v4869 = vsel %vm99, %v4803, 0
    %v4872 = vsel %vm99, %v4804, 0
    %v4875 = vsel %vm99, %v4805, 0
    %4877 = vmatprep.subr.bf16.mxu0 0
    %4878 = vmatpush1.bf16.msra.mxu0 0
    %4879 = vmatprep.subr.bf16.mxu0 0
    %4880 = vmatpush1.bf16.msra.mxu0 0
    %4881 = vmatprep.subr.bf16.mxu0 0
    %4882 = vmatpush1.bf16.msra.mxu0 0
    %4883 = vmatprep.subr.bf16.mxu0 0
    %4884 = vmatpush1.bf16.msra.mxu0 0
    %4885 = vmatprep.subr.bf16.mxu0 0
    %4886 = vmatpush1.bf16.msra.mxu0 0
    %4887 = vmatprep.subr.bf16.mxu0 0
    %4888 = vmatpush1.bf16.msra.mxu0 0
    %4889 = vmatprep.subr.bf16.mxu0 0
    %4890 = vmatpush1.bf16.msra.mxu0 %v4826
    %4891 = vmatprep.subr.bf16.mxu0 0
    %4892 = vmatpush1.bf16.msra.mxu0 %v4825
    %4893 = vmatprep.subr.bf16.mxu0 0
    %4894 = vmatpush2.bf16.msra.mxu0 0
    %4895 = vmatprep.subr.bf16.mxu0 0
    %4896 = vmatpush2.bf16.msra.mxu0 0
    %4897 = vmatprep.subr.bf16.mxu0 0
    %4898 = vmatpush2.bf16.msra.mxu0 0
    %4899 = vmatprep.subr.bf16.mxu0 0
    %4900 = vmatpush2.bf16.msra.mxu0 0
    %4901 = vmatprep.subr.bf16.mxu0 0
    %4902 = vmatpush2.bf16.msra.mxu0 0
    %4903 = vmatprep.subr.bf16.mxu0 0
    %4904 = vmatpush2.bf16.msra.mxu0 0
    %4905 = vmatprep.subr.bf16.mxu0 0
    %4906 = vmatpush2.bf16.msra.mxu0 0
    %4907 = vmatprep.subr.bf16.mxu0 0
    %4908 = vmatpush2.bf16.msra.mxu0 0
    %4909 = vmatprep.mubr.bf16.mxu0 0
    %4910 = vmatmul.mubr.bf16.gmra.mxu0 %v4830
    %v4911 = vpop.f32.mrf.mxu0
    %v4912 = vadd.f32 %v4815, %v4911
    %v4913 = vpop.f32.mrf.mxu0
    %v4914 = vpop.f32.mrf.mxu0
    %v4915 = vadd.f32 %v4815, %v4914
    %v4916 = vpop.f32.mrf.mxu0
    %4917 = vmatprep.mubr.bf16.mxu0 0
    %4918 = vmatmul.mubr.bf16.gmra.mxu0 %v4833
    %v4919 = vpop.f32.mrf.mxu0
    %v4920 = vadd.f32 %v4815, %v4919
    %v4921 = vpop.f32.mrf.mxu0
    %v4922 = vpop.f32.mrf.mxu0
    %v4923 = vadd.f32 %v4815, %v4922
    %v4924 = vpop.f32.mrf.mxu0
    %4925 = vmatprep.mubr.bf16.mxu0 0
    %4926 = vmatmul.mubr.bf16.gmra.mxu0 %v4836
    %v4927 = vpop.f32.mrf.mxu0
    %v4928 = vadd.f32 %v4815, %v4927
    %v4929 = vpop.f32.mrf.mxu0
    %v4930 = vpop.f32.mrf.mxu0
    %v4931 = vadd.f32 %v4815, %v4930
    %v4932 = vpop.f32.mrf.mxu0
    %4933 = vmatprep.mubr.bf16.mxu0 0
    %4934 = vmatmul.mubr.bf16.gmra.mxu0 %v4839
    %v4935 = vpop.f32.mrf.mxu0
    %v4936 = vadd.f32 %v4815, %v4935
    %v4937 = vpop.f32.mrf.mxu0
    %v4938 = vpop.f32.mrf.mxu0
    %v4939 = vadd.f32 %v4815, %v4938
    %v4940 = vpop.f32.mrf.mxu0
    %4941 = vmatprep.mubr.bf16.mxu0 0
    %4942 = vmatmul.mubr.bf16.gmra.mxu0 %v4842
    %v4943 = vpop.f32.mrf.mxu0
    %v4944 = vadd.f32 %v4815, %v4943
    %v4945 = vpop.f32.mrf.mxu0
    %v4946 = vpop.f32.mrf.mxu0
    %v4947 = vadd.f32 %v4815, %v4946
    %v4948 = vpop.f32.mrf.mxu0
    %4949 = vmatprep.mubr.bf16.mxu0 0
    %4950 = vmatmul.mubr.bf16.gmra.mxu0 %v4845
    %v4951 = vpop.f32.mrf.mxu0
    %v4952 = vadd.f32 %v4815, %v4951
    %v4953 = vpop.f32.mrf.mxu0
    %v4954 = vpop.f32.mrf.mxu0
    %v4955 = vadd.f32 %v4815, %v4954
    %v4956 = vpop.f32.mrf.mxu0
    %4957 = vmatprep.mubr.bf16.mxu0 0
    %4958 = vmatmul.mubr.bf16.gmra.mxu0 %v4848
    %v4959 = vpop.f32.mrf.mxu0
    %v4960 = vadd.f32 %v4815, %v4959
    %v4961 = vpop.f32.mrf.mxu0
    %v4962 = vpop.f32.mrf.mxu0
    %v4963 = vadd.f32 %v4815, %v4962
    %v4964 = vpop.f32.mrf.mxu0
    %4965 = vmatprep.mubr.bf16.mxu0 0
    %4966 = vmatmul.mubr.bf16.gmra.mxu0 %v4851
    %v4967 = vpop.f32.mrf.mxu0
    %v4968 = vadd.f32 %v4815, %v4967
    %v4969 = vpop.f32.mrf.mxu0
    %v4970 = vpop.f32.mrf.mxu0
    %v4971 = vadd.f32 %v4815, %v4970
    %v4972 = vpop.f32.mrf.mxu0
    %4973 = vmatprep.mubr.bf16.mxu0 0
    %4974 = vmatmul.mubr.bf16.gmra.mxu0 %v4854
    %v4975 = vpop.f32.mrf.mxu0
    %v4976 = vadd.f32 %v4815, %v4975
    %v4977 = vpop.f32.mrf.mxu0
    %v4978 = vpop.f32.mrf.mxu0
    %v4979 = vadd.f32 %v4815, %v4978
    %v4980 = vpop.f32.mrf.mxu0
    %4981 = vmatprep.mubr.bf16.mxu0 0
    %4982 = vmatmul.mubr.bf16.gmra.mxu0 %v4857
    %v4983 = vpop.f32.mrf.mxu0
    %v4984 = vadd.f32 %v4815, %v4983
    %v4985 = vpop.f32.mrf.mxu0
    %v4986 = vpop.f32.mrf.mxu0
    %v4987 = vadd.f32 %v4815, %v4986
    %v4988 = vpop.f32.mrf.mxu0
    %4989 = vmatprep.mubr.bf16.mxu0 0
    %4990 = vmatmul.mubr.bf16.gmra.mxu0 %v4860
    %v4991 = vpop.f32.mrf.mxu0
    %v4992 = vadd.f32 %v4815, %v4991
    %v4993 = vpop.f32.mrf.mxu0
    %v4994 = vpop.f32.mrf.mxu0
    %v4995 = vadd.f32 %v4815, %v4994
    %v4996 = vpop.f32.mrf.mxu0
    %4997 = vmatprep.mubr.bf16.mxu0 0
    %4998 = vmatmul.mubr.bf16.gmra.mxu0 %v4863
    %v4999 = vpop.f32.mrf.mxu0
    %v5000 = vadd.f32 %v4815, %v4999
    %v5001 = vpop.f32.mrf.mxu0
    %v5002 = vpop.f32.mrf.mxu0
    %v5003 = vadd.f32 %v4815, %v5002
    %v5004 = vpop.f32.mrf.mxu0
    %5005 = vmatprep.mubr.bf16.mxu0 0
    %5006 = vmatmul.mubr.bf16.gmra.mxu0 %v4866
    %v5007 = vpop.f32.mrf.mxu0
    %v5008 = vadd.f32 %v4815, %v5007
    %v5009 = vpop.f32.mrf.mxu0
    %v5010 = vpop.f32.mrf.mxu0
    %v5011 = vadd.f32 %v4815, %v5010
    %v5012 = vpop.f32.mrf.mxu0
    %5013 = vmatprep.mubr.bf16.mxu0 0
    %5014 = vmatmul.mubr.bf16.gmra.mxu0 %v4869
    %v5015 = vpop.f32.mrf.mxu0
    %v5016 = vadd.f32 %v4815, %v5015
    %v5017 = vpop.f32.mrf.mxu0
    %v5018 = vpop.f32.mrf.mxu0
    %v5019 = vadd.f32 %v4815, %v5018
    %v5020 = vpop.f32.mrf.mxu0
    %5021 = vmatprep.mubr.bf16.mxu0 0
    %5022 = vmatmul.mubr.bf16.gmra.mxu0 %v4872
    %v5023 = vpop.f32.mrf.mxu0
    %v5024 = vadd.f32 %v4815, %v5023
    %v5025 = vpop.f32.mrf.mxu0
    %v5026 = vpop.f32.mrf.mxu0
    %v5027 = vadd.f32 %v4815, %v5026
    %v5028 = vpop.f32.mrf.mxu0
    %5029 = vmatprep.mubr.bf16.mxu0 0
    %5030 = vmatmul.mubr.bf16.gmra.mxu0 %v4875
    %v5031 = vpop.f32.mrf.mxu0
    %v5032 = vadd.f32 %v4815, %v5031
    %v5033 = vpop.f32.mrf.mxu0
    %v5034 = vpop.f32.mrf.mxu0
    %v5035 = vadd.f32 %v4815, %v5034
    %v5036 = vpop.f32.mrf.mxu0
    %5037 = vdwg.mxu0
    %5038 = vst.msk [vmem:[#allocation2] sm:$0xff] %vm99, %v4912
    %5039 = vst.msk [vmem:[#allocation2 + $0x8] sm:$0xff] %vm99, %v4915
    %5040 = vst.msk [vmem:[#allocation2 + $0x10] sm:$0xff] %vm99, %v4920
    %5041 = vst.msk [vmem:[#allocation2 + $0x18] sm:$0xff] %vm99, %v4923
    %5042 = vst.msk [vmem:[#allocation2 + $0x20] sm:$0xff] %vm99, %v4928
    %5043 = vst.msk [vmem:[#allocation2 + $0x28] sm:$0xff] %vm99, %v4931
    %5044 = vst.msk [vmem:[#allocation2 + $0x30] sm:$0xff] %vm99, %v4936
    %5045 = vst.msk [vmem:[#allocation2 + $0x38] sm:$0xff] %vm99, %v4939
    %5046 = vst.msk [vmem:[#allocation2 + $0x40] sm:$0xff] %vm99, %v4944
    %5047 = vst.msk [vmem:[#allocation2 + $0x48] sm:$0xff] %vm99, %v4947
    %5048 = vst.msk [vmem:[#allocation2 + $0x50] sm:$0xff] %vm99, %v4952
    %5049 = vst.msk [vmem:[#allocation2 + $0x58] sm:$0xff] %vm99, %v4955
    %5050 = vst.msk [vmem:[#allocation2 + $0x60] sm:$0xff] %vm99, %v4960
    %5051 = vst.msk [vmem:[#allocation2 + $0x68] sm:$0xff] %vm99, %v4963
    %5052 = vst.msk [vmem:[#allocation2 + $0x70] sm:$0xff] %vm99, %v4968
    %5053 = vst.msk [vmem:[#allocation2 + $0x78] sm:$0xff] %vm99, %v4971
    %5054 = vst.msk [vmem:[#allocation2 + $0x80] sm:$0xff] %vm99, %v4976
    %5055 = vst.msk [vmem:[#allocation2 + $0x88] sm:$0xff] %vm99, %v4979
    %5056 = vst.msk [vmem:[#allocation2 + $0x90] sm:$0xff] %vm99, %v4984
    %5057 = vst.msk [vmem:[#allocation2 + $0x98] sm:$0xff] %vm99, %v4987
    %5058 = vst.msk [vmem:[#allocation2 + $0xa0] sm:$0xff] %vm99, %v4992
    %5059 = vst.msk [vmem:[#allocation2 + $0xa8] sm:$0xff] %vm99, %v4995
    %5060 = vst.msk [vmem:[#allocation2 + $0xb0] sm:$0xff] %vm99, %v5000
    %5061 = vst.msk [vmem:[#allocation2 + $0xb8] sm:$0xff] %vm99, %v5003
    %5062 = vst.msk [vmem:[#allocation2 + $0xc0] sm:$0xff] %vm99, %v5008
    %5063 = vst.msk [vmem:[#allocation2 + $0xc8] sm:$0xff] %vm99, %v5011
    %5064 = vst.msk [vmem:[#allocation2 + $0xd0] sm:$0xff] %vm99, %v5016
    %5065 = vst.msk [vmem:[#allocation2 + $0xd8] sm:$0xff] %vm99, %v5019
    %5066 = vst.msk [vmem:[#allocation2 + $0xe0] sm:$0xff] %vm99, %v5024
    %5067 = vst.msk [vmem:[#allocation2 + $0xe8] sm:$0xff] %vm99, %v5027
    %5068 = vst.msk [vmem:[#allocation2 + $0xf0] sm:$0xff] %vm99, %v5032
    %5069 = vst.msk [vmem:[#allocation2 + $0xf8] sm:$0xff] %vm99, %v5035
    // Predicated region
    $region30: #{causal_self_attention.1} parent=1 // pred_check
      _
    $region31: #{causal_self_attention.1} parent=1 // pred_check_branch
      %5071 = sbr.rel (0) target = $region33
    $region32: #{causal_self_attention.1} parent=1 // pred_region
      %s5073 = ssub.s32 4096, 4096
      %5074 = vsyncadd [#allocation3], %s5073
      %s5075 = sshll.u32 [#allocation2], 4
      %s5076 = int_to_ptr.vmem [resolvable:$true] %s5075
      %5081 = dma.vmem_to_hbm [thread:$0]  %s5076, 4096, %s7, [#allocation3], 128, 128, 8
    $region33: #{causal_self_attention.1} parent=1 // pred_fallthru
      _
    // Predicated region
    $region34: #{causal_self_attention.1} parent=1 // pred_check
      _
    $region35: #{causal_self_attention.1} parent=1 // pred_check_branch
      %5083 = sbr.rel (0) target = $region37
    $region36: #{causal_self_attention.1} parent=1 // pred_region
      %5084 = dma.done [#allocation3], 4096
    $region37: #{causal_self_attention.1} parent=1 // pred_fallthru
      _
    %5085 = vsyncpa [#allocation3], 1

</llo_original>
